<compile_context>
chip_gen: v7x
topology: tpu7x:2x2x1
jax: 0.10.0
libtpu: 0.0.40
codegen_flags: <defaults>
</compile_context>

<pallas_src>
import functools

import jax
import jax.numpy as jnp
from jax import lax
from jax.experimental import pallas as pl
from jax.experimental.pallas import tpu as pltpu


# ---------------------------------------------------------------------------
# Fused kernel: 1x1 conv -> 3x3 circular conv -> 1x1 conv, per batch image.
# ---------------------------------------------------------------------------
def _wconv_fused_kernel(H, W, x_ref, w1_ref, b1_ref, w2_ref, b2_ref,
                        w3_ref, b3_ref, o_ref):
    # x_ref : (1, Cin, H*W)       NCHW, spatial flattened (lane-dense)
    # w1_ref: (Cin, Cmid)         1x1 conv #1 weights, (in, out)
    # b1_ref: (1, Cmid)
    # w2_ref: (3, 3, Cmid, Cmid)  3x3 conv weights, (ky, kx, in, out)
    # b2_ref: (1, Cmid)
    # w3_ref: (Cout, Cmid)        1x1 conv #2 weights, PyTorch (out, in)
    # b3_ref: (Cout, 1)
    # o_ref : (1, Cout, H*W)      NCHW output tile (lane-dense store)
    HW = H * W
    cmid = w1_ref.shape[1]

    x = x_ref[0]                                        # (Cin, HW)

    # ---- layer 1: 1x1 conv, result in spatial-major (HW, Cmid) ------------
    h1 = lax.dot_general(
        x, w1_ref[...],
        dimension_numbers=(((0,), (0,)), ((), ())),     # contract Cin
        preferred_element_type=jnp.float32)             # (HW, Cmid)
    h1 = h1 + b1_ref[...]
    # Dropout2d(p=0.0) == identity.

    # ---- layer 2: 3x3 conv with circular padding, entirely in VMEM --------
    h1 = h1.reshape(H, W, cmid)
    # circular halo: rows (axis 0) then columns (axis 1)
    hp = jnp.concatenate([h1[H - 1:H], h1, h1[0:1]], axis=0)          # (H+2, W, C)
    hp = jnp.concatenate([hp[:, W - 1:W, :], hp, hp[:, 0:1, :]],
                         axis=1)                                      # (H+2, W+2, C)

    acc = jnp.zeros((HW, cmid), jnp.float32)
    for ky in range(3):
        for kx in range(3):
            win = hp[ky:ky + H, kx:kx + W, :].reshape(HW, cmid)
            acc = acc + lax.dot_general(
                win, w2_ref[ky, kx],
                dimension_numbers=(((1,), (0,)), ((), ())),
                preferred_element_type=jnp.float32)
    h2 = acc + b2_ref[...]                              # (HW, Cmid)
    # Dropout2d(p=0.0) == identity.

    # ---- layer 3: 1x1 conv as (Cout,Cmid) x (HW,Cmid)^T --------------------
    # Produces (Cout, HW) directly so the HBM store is lane-dense.
    out = lax.dot_general(
        w3_ref[...], h2,
        dimension_numbers=(((1,), (1,)), ((), ())),
        preferred_element_type=jnp.float32)             # (Cout, HW)
    out = out + b3_ref[...]
    o_ref[0] = out.astype(o_ref.dtype)


# ---------------------------------------------------------------------------
# WConv forward (NCHW in / NCHW out, PyTorch weight layouts)
# ---------------------------------------------------------------------------
def wconv_forward(x_nchw, params):
    w1, b1, w2, b2, w3, b3 = params
    B, Cin, H, W = x_nchw.shape
    Cmid = w1.shape[0]
    Cout = w3.shape[0]
    HW = H * W

    x_flat = x_nchw.reshape(B, Cin, HW)                 # free reshape (stays NCHW)
    w1t = jnp.transpose(w1[:, :, 0, 0], (1, 0))         # (Cin, Cmid)
    w2t = jnp.transpose(w2, (2, 3, 1, 0))               # (ky, kx, Cin, Cout)
    w3m = w3[:, :, 0, 0]                                # (Cout, Cmid)

    kernel = functools.partial(_wconv_fused_kernel, H, W)
    out = pl.pallas_call(
        kernel,
        out_shape=jax.ShapeDtypeStruct((B, Cout, HW), x_nchw.dtype),
        grid_spec=pltpu.PrefetchScalarGridSpec(
            num_scalar_prefetch=0,
            grid=(B,),
            in_specs=[
                pl.BlockSpec((1, Cin, HW), lambda b: (b, 0, 0)),
                pl.BlockSpec((Cin, Cmid), lambda b: (0, 0)),
                pl.BlockSpec((1, Cmid), lambda b: (0, 0)),
                pl.BlockSpec((3, 3, Cmid, Cmid), lambda b: (0, 0, 0, 0)),
                pl.BlockSpec((1, Cmid), lambda b: (0, 0)),
                pl.BlockSpec((Cout, Cmid), lambda b: (0, 0)),
                pl.BlockSpec((Cout, 1), lambda b: (0, 0)),
            ],
            out_specs=pl.BlockSpec((1, Cout, HW), lambda b: (b, 0, 0)),
        ),
        compiler_params=pltpu.CompilerParams(
            dimension_semantics=("parallel",),
            vmem_limit_bytes=32 * 1024 * 1024),
    )(x_flat, w1t, b1.reshape(1, Cmid), w2t, b2.reshape(1, Cmid),
      w3m, b3.reshape(Cout, 1))
    return out.reshape(B, Cout, H, W)


# ---------------------------------------------------------------------------
# Pure-JAX reference (same math, XLA path) for a sanity check
# ---------------------------------------------------------------------------
def wconv_reference(x_nchw, params):
    w1, b1, w2, b2, w3, b3 = params
    x = jnp.transpose(x_nchw, (0, 2, 3, 1))             # NHWC
    h1 = jnp.einsum("bhwc,oc->bhwo", x, w1[:, :, 0, 0]) + b1
    H, W = h1.shape[1], h1.shape[2]
    hp = jnp.pad(h1, ((0, 0), (1, 1), (1, 1), (0, 0)), mode="wrap")
    h2 = jnp.zeros(h1.shape[:3] + (w2.shape[0],), jnp.float32) + b2
    for ky in range(3):
        for kx in range(3):
            h2 = h2 + jnp.einsum("bhwc,oc->bhwo",
                                 hp[:, ky:ky + H, kx:kx + W, :],
                                 w2[:, :, ky, kx])
    h3 = jnp.einsum("bhwc,oc->bhwo", h2, w3[:, :, 0, 0]) + b3
    return jnp.transpose(h3, (0, 3, 1, 2))


if __name__ == "__main__":
    key = jax.random.PRNGKey(0)
    ks = jax.random.split(key, 7)

    B, Cin, H, W = 2, 32, 16, 16
    Cout = 32
    Cmid = Cin // 4  # 8

    x = jax.random.normal(ks[0], (B, Cin, H, W), jnp.float32)

    # PyTorch weight layouts: (out, in, kh, kw).
    w1 = jax.random.normal(ks[1], (Cmid, Cin, 1, 1), jnp.float32) / jnp.sqrt(Cin * 1.0)
    b1 = jax.random.normal(ks[2], (Cmid,), jnp.float32) * 0.05
    w2 = jax.random.normal(ks[3], (Cmid, Cmid, 3, 3), jnp.float32) / jnp.sqrt(Cmid * 9.0)
    b2 = jax.random.normal(ks[4], (Cmid,), jnp.float32) * 0.05
    w3 = jax.random.normal(ks[5], (Cout, Cmid, 1, 1), jnp.float32) / jnp.sqrt(Cmid * 1.0)
    b3 = jax.random.normal(ks[6], (Cout,), jnp.float32) * 0.05
    params = (w1, b1, w2, b2, w3, b3)

    out = jax.block_until_ready(wconv_forward(x, params))
    assert out.shape == (B, Cout, H, W), out.shape

    ref = jax.block_until_ready(wconv_reference(x, params))
    err = float(jnp.max(jnp.abs(out - ref)))
    assert err < 2e-3, f"mismatch vs reference: max abs err {err}"

    print("KERNEL_OK")
</pallas_src>

<mosaic_0001>
module attributes {stable_mosaic.version = 11 : i64} {
  func.func @_wconv_fused_kernel(%arg0: i32, %arg1: memref<1x32x256xf32, #tpu.memory_space<vmem>>, %arg2: memref<32x8xf32, #tpu.memory_space<vmem>>, %arg3: memref<1x8xf32, #tpu.memory_space<vmem>>, %arg4: memref<3x3x8x8xf32, #tpu.memory_space<vmem>>, %arg5: memref<1x8xf32, #tpu.memory_space<vmem>>, %arg6: memref<32x8xf32, #tpu.memory_space<vmem>>, %arg7: memref<32x1xf32, #tpu.memory_space<vmem>>, %arg8: memref<1x32x256xf32, #tpu.memory_space<vmem>>) attributes {dimension_semantics = [#tpu.dimension_semantics<parallel>], iteration_bounds = array<i64: 2>, scalar_prefetch = 0 : i64, scratch_operands = 0 : i64, tpu.core_type = #tpu.core_type<tc>, window_params = [{transform_indices = @transform_0, window_bounds = array<i64: 1, 32, 256>}, {pipeline_mode = #tpu.pipeline_mode<synchronous>, transform_indices = @transform_1, window_bounds = array<i64: 32, 8>}, {pipeline_mode = #tpu.pipeline_mode<synchronous>, transform_indices = @transform_2, window_bounds = array<i64: 1, 8>}, {pipeline_mode = #tpu.pipeline_mode<synchronous>, transform_indices = @transform_3, window_bounds = array<i64: 3, 3, 8, 8>}, {pipeline_mode = #tpu.pipeline_mode<synchronous>, transform_indices = @transform_4, window_bounds = array<i64: 1, 8>}, {pipeline_mode = #tpu.pipeline_mode<synchronous>, transform_indices = @transform_5, window_bounds = array<i64: 32, 8>}, {pipeline_mode = #tpu.pipeline_mode<synchronous>, transform_indices = @transform_6, window_bounds = array<i64: 32, 1>}, {transform_indices = @transform_7, window_bounds = array<i64: 1, 32, 256>}]} {
    %c0 = arith.constant 0 : index
    %c0_0 = arith.constant 0 : index
    %c0_1 = arith.constant 0 : index
    %0 = vector.load %arg1[%c0, %c0_0, %c0_1] : memref<1x32x256xf32, #tpu.memory_space<vmem>>, vector<1x32x256xf32>
    %1 = vector.shape_cast %0 : vector<1x32x256xf32> to vector<32x256xf32>
    %c0_2 = arith.constant 0 : index
    %c0_3 = arith.constant 0 : index
    %2 = vector.load %arg2[%c0_2, %c0_3] : memref<32x8xf32, #tpu.memory_space<vmem>>, vector<32x8xf32>
    %cst = arith.constant dense<0.000000e+00> : vector<256x8xf32>
    %3 = tpu.matmul %1, %2, %cst {dimension_numbers = #tpu.dot_dimension_numbers<[0], [0], [1], [1], [0, 1, 1, 1], [], []>} : vector<32x256xf32>, vector<32x8xf32>, vector<256x8xf32> -> vector<256x8xf32>
    %c0_4 = arith.constant 0 : index
    %c0_5 = arith.constant 0 : index
    %4 = vector.load %arg3[%c0_4, %c0_5] : memref<1x8xf32, #tpu.memory_space<vmem>>, vector<1x8xf32>
    %5 = vector.broadcast %4 : vector<1x8xf32> to vector<256x8xf32>
    %6 = arith.addf %3, %5 : vector<256x8xf32>
    %7 = vector.shape_cast %6 : vector<256x8xf32> to vector<16x16x8xf32>
    %8 = vector.extract_strided_slice %7 {offsets = [15, 0, 0], sizes = [1, 16, 8], strides = [1, 1, 1]} : vector<16x16x8xf32> to vector<1x16x8xf32>
    %9 = vector.extract_strided_slice %7 {offsets = [0, 0, 0], sizes = [1, 16, 8], strides = [1, 1, 1]} : vector<16x16x8xf32> to vector<1x16x8xf32>
    %10 = tpu.concatenate %8, %7, %9 in 0 : vector<1x16x8xf32>, vector<16x16x8xf32>, vector<1x16x8xf32> -> vector<18x16x8xf32>
    %11 = vector.extract_strided_slice %10 {offsets = [0, 15, 0], sizes = [18, 1, 8], strides = [1, 1, 1]} : vector<18x16x8xf32> to vector<18x1x8xf32>
    %12 = vector.extract_strided_slice %10 {offsets = [0, 0, 0], sizes = [18, 1, 8], strides = [1, 1, 1]} : vector<18x16x8xf32> to vector<18x1x8xf32>
    %13 = tpu.concatenate %11, %10, %12 in 1 : vector<18x1x8xf32>, vector<18x16x8xf32>, vector<18x1x8xf32> -> vector<18x18x8xf32>
    %cst_6 = arith.constant 0.000000e+00 : f32
    %14 = vector.broadcast %cst_6 : f32 to vector<256x8xf32>
    %15 = vector.extract_strided_slice %13 {offsets = [0, 0, 0], sizes = [16, 16, 8], strides = [1, 1, 1]} : vector<18x18x8xf32> to vector<16x16x8xf32>
    %16 = vector.shape_cast %15 : vector<16x16x8xf32> to vector<256x8xf32>
    %c0_7 = arith.constant 0 : index
    %c0_8 = arith.constant 0 : index
    %c0_9 = arith.constant 0 : index
    %c0_10 = arith.constant 0 : index
    %17 = vector.load %arg4[%c0_7, %c0_8, %c0_9, %c0_10] : memref<3x3x8x8xf32, #tpu.memory_space<vmem>>, vector<1x1x8x8xf32>
    %18 = vector.shape_cast %17 : vector<1x1x8x8xf32> to vector<8x8xf32>
    %cst_11 = arith.constant dense<0.000000e+00> : vector<256x8xf32>
    %19 = tpu.matmul %16, %18, %cst_11 {dimension_numbers = #tpu.dot_dimension_numbers<[1], [0], [0], [1], [0, 0, 1, 1], [], []>} : vector<256x8xf32>, vector<8x8xf32>, vector<256x8xf32> -> vector<256x8xf32>
    %20 = arith.addf %14, %19 : vector<256x8xf32>
    %21 = vector.extract_strided_slice %13 {offsets = [0, 1, 0], sizes = [16, 16, 8], strides = [1, 1, 1]} : vector<18x18x8xf32> to vector<16x16x8xf32>
    %22 = vector.shape_cast %21 : vector<16x16x8xf32> to vector<256x8xf32>
    %c0_12 = arith.constant 0 : index
    %c1 = arith.constant 1 : index
    %c0_13 = arith.constant 0 : index
    %c0_14 = arith.constant 0 : index
    %23 = vector.load %arg4[%c0_12, %c1, %c0_13, %c0_14] : memref<3x3x8x8xf32, #tpu.memory_space<vmem>>, vector<1x1x8x8xf32>
    %24 = vector.shape_cast %23 : vector<1x1x8x8xf32> to vector<8x8xf32>
    %cst_15 = arith.constant dense<0.000000e+00> : vector<256x8xf32>
    %25 = tpu.matmul %22, %24, %cst_15 {dimension_numbers = #tpu.dot_dimension_numbers<[1], [0], [0], [1], [0, 0, 1, 1], [], []>} : vector<256x8xf32>, vector<8x8xf32>, vector<256x8xf32> -> vector<256x8xf32>
    %26 = arith.addf %20, %25 : vector<256x8xf32>
    %27 = vector.extract_strided_slice %13 {offsets = [0, 2, 0], sizes = [16, 16, 8], strides = [1, 1, 1]} : vector<18x18x8xf32> to vector<16x16x8xf32>
    %28 = vector.shape_cast %27 : vector<16x16x8xf32> to vector<256x8xf32>
    %c0_16 = arith.constant 0 : index
    %c2 = arith.constant 2 : index
    %c0_17 = arith.constant 0 : index
    %c0_18 = arith.constant 0 : index
    %29 = vector.load %arg4[%c0_16, %c2, %c0_17, %c0_18] : memref<3x3x8x8xf32, #tpu.memory_space<vmem>>, vector<1x1x8x8xf32>
    %30 = vector.shape_cast %29 : vector<1x1x8x8xf32> to vector<8x8xf32>
    %cst_19 = arith.constant dense<0.000000e+00> : vector<256x8xf32>
    %31 = tpu.matmul %28, %30, %cst_19 {dimension_numbers = #tpu.dot_dimension_numbers<[1], [0], [0], [1], [0, 0, 1, 1], [], []>} : vector<256x8xf32>, vector<8x8xf32>, vector<256x8xf32> -> vector<256x8xf32>
    %32 = arith.addf %26, %31 : vector<256x8xf32>
    %33 = vector.extract_strided_slice %13 {offsets = [1, 0, 0], sizes = [16, 16, 8], strides = [1, 1, 1]} : vector<18x18x8xf32> to vector<16x16x8xf32>
    %34 = vector.shape_cast %33 : vector<16x16x8xf32> to vector<256x8xf32>
    %c1_20 = arith.constant 1 : index
    %c0_21 = arith.constant 0 : index
    %c0_22 = arith.constant 0 : index
    %c0_23 = arith.constant 0 : index
    %35 = vector.load %arg4[%c1_20, %c0_21, %c0_22, %c0_23] : memref<3x3x8x8xf32, #tpu.memory_space<vmem>>, vector<1x1x8x8xf32>
    %36 = vector.shape_cast %35 : vector<1x1x8x8xf32> to vector<8x8xf32>
    %cst_24 = arith.constant dense<0.000000e+00> : vector<256x8xf32>
    %37 = tpu.matmul %34, %36, %cst_24 {dimension_numbers = #tpu.dot_dimension_numbers<[1], [0], [0], [1], [0, 0, 1, 1], [], []>} : vector<256x8xf32>, vector<8x8xf32>, vector<256x8xf32> -> vector<256x8xf32>
    %38 = arith.addf %32, %37 : vector<256x8xf32>
    %39 = vector.extract_strided_slice %13 {offsets = [1, 1, 0], sizes = [16, 16, 8], strides = [1, 1, 1]} : vector<18x18x8xf32> to vector<16x16x8xf32>
    %40 = vector.shape_cast %39 : vector<16x16x8xf32> to vector<256x8xf32>
    %c1_25 = arith.constant 1 : index
    %c1_26 = arith.constant 1 : index
    %c0_27 = arith.constant 0 : index
    %c0_28 = arith.constant 0 : index
    %41 = vector.load %arg4[%c1_25, %c1_26, %c0_27, %c0_28] : memref<3x3x8x8xf32, #tpu.memory_space<vmem>>, vector<1x1x8x8xf32>
    %42 = vector.shape_cast %41 : vector<1x1x8x8xf32> to vector<8x8xf32>
    %cst_29 = arith.constant dense<0.000000e+00> : vector<256x8xf32>
    %43 = tpu.matmul %40, %42, %cst_29 {dimension_numbers = #tpu.dot_dimension_numbers<[1], [0], [0], [1], [0, 0, 1, 1], [], []>} : vector<256x8xf32>, vector<8x8xf32>, vector<256x8xf32> -> vector<256x8xf32>
    %44 = arith.addf %38, %43 : vector<256x8xf32>
    %45 = vector.extract_strided_slice %13 {offsets = [1, 2, 0], sizes = [16, 16, 8], strides = [1, 1, 1]} : vector<18x18x8xf32> to vector<16x16x8xf32>
    %46 = vector.shape_cast %45 : vector<16x16x8xf32> to vector<256x8xf32>
    %c1_30 = arith.constant 1 : index
    %c2_31 = arith.constant 2 : index
    %c0_32 = arith.constant 0 : index
    %c0_33 = arith.constant 0 : index
    %47 = vector.load %arg4[%c1_30, %c2_31, %c0_32, %c0_33] : memref<3x3x8x8xf32, #tpu.memory_space<vmem>>, vector<1x1x8x8xf32>
    %48 = vector.shape_cast %47 : vector<1x1x8x8xf32> to vector<8x8xf32>
    %cst_34 = arith.constant dense<0.000000e+00> : vector<256x8xf32>
    %49 = tpu.matmul %46, %48, %cst_34 {dimension_numbers = #tpu.dot_dimension_numbers<[1], [0], [0], [1], [0, 0, 1, 1], [], []>} : vector<256x8xf32>, vector<8x8xf32>, vector<256x8xf32> -> vector<256x8xf32>
    %50 = arith.addf %44, %49 : vector<256x8xf32>
    %51 = vector.extract_strided_slice %13 {offsets = [2, 0, 0], sizes = [16, 16, 8], strides = [1, 1, 1]} : vector<18x18x8xf32> to vector<16x16x8xf32>
    %52 = vector.shape_cast %51 : vector<16x16x8xf32> to vector<256x8xf32>
    %c2_35 = arith.constant 2 : index
    %c0_36 = arith.constant 0 : index
    %c0_37 = arith.constant 0 : index
    %c0_38 = arith.constant 0 : index
    %53 = vector.load %arg4[%c2_35, %c0_36, %c0_37, %c0_38] : memref<3x3x8x8xf32, #tpu.memory_space<vmem>>, vector<1x1x8x8xf32>
    %54 = vector.shape_cast %53 : vector<1x1x8x8xf32> to vector<8x8xf32>
    %cst_39 = arith.constant dense<0.000000e+00> : vector<256x8xf32>
    %55 = tpu.matmul %52, %54, %cst_39 {dimension_numbers = #tpu.dot_dimension_numbers<[1], [0], [0], [1], [0, 0, 1, 1], [], []>} : vector<256x8xf32>, vector<8x8xf32>, vector<256x8xf32> -> vector<256x8xf32>
    %56 = arith.addf %50, %55 : vector<256x8xf32>
    %57 = vector.extract_strided_slice %13 {offsets = [2, 1, 0], sizes = [16, 16, 8], strides = [1, 1, 1]} : vector<18x18x8xf32> to vector<16x16x8xf32>
    %58 = vector.shape_cast %57 : vector<16x16x8xf32> to vector<256x8xf32>
    %c2_40 = arith.constant 2 : index
    %c1_41 = arith.constant 1 : index
    %c0_42 = arith.constant 0 : index
    %c0_43 = arith.constant 0 : index
    %59 = vector.load %arg4[%c2_40, %c1_41, %c0_42, %c0_43] : memref<3x3x8x8xf32, #tpu.memory_space<vmem>>, vector<1x1x8x8xf32>
    %60 = vector.shape_cast %59 : vector<1x1x8x8xf32> to vector<8x8xf32>
    %cst_44 = arith.constant dense<0.000000e+00> : vector<256x8xf32>
    %61 = tpu.matmul %58, %60, %cst_44 {dimension_numbers = #tpu.dot_dimension_numbers<[1], [0], [0], [1], [0, 0, 1, 1], [], []>} : vector<256x8xf32>, vector<8x8xf32>, vector<256x8xf32> -> vector<256x8xf32>
    %62 = arith.addf %56, %61 : vector<256x8xf32>
    %63 = vector.extract_strided_slice %13 {offsets = [2, 2, 0], sizes = [16, 16, 8], strides = [1, 1, 1]} : vector<18x18x8xf32> to vector<16x16x8xf32>
    %64 = vector.shape_cast %63 : vector<16x16x8xf32> to vector<256x8xf32>
    %c2_45 = arith.constant 2 : index
    %c2_46 = arith.constant 2 : index
    %c0_47 = arith.constant 0 : index
    %c0_48 = arith.constant 0 : index
    %65 = vector.load %arg4[%c2_45, %c2_46, %c0_47, %c0_48] : memref<3x3x8x8xf32, #tpu.memory_space<vmem>>, vector<1x1x8x8xf32>
    %66 = vector.shape_cast %65 : vector<1x1x8x8xf32> to vector<8x8xf32>
    %cst_49 = arith.constant dense<0.000000e+00> : vector<256x8xf32>
    %67 = tpu.matmul %64, %66, %cst_49 {dimension_numbers = #tpu.dot_dimension_numbers<[1], [0], [0], [1], [0, 0, 1, 1], [], []>} : vector<256x8xf32>, vector<8x8xf32>, vector<256x8xf32> -> vector<256x8xf32>
    %68 = arith.addf %62, %67 : vector<256x8xf32>
    %c0_50 = arith.constant 0 : index
    %c0_51 = arith.constant 0 : index
    %69 = vector.load %arg5[%c0_50, %c0_51] : memref<1x8xf32, #tpu.memory_space<vmem>>, vector<1x8xf32>
    %70 = vector.broadcast %69 : vector<1x8xf32> to vector<256x8xf32>
    %71 = arith.addf %68, %70 : vector<256x8xf32>
    %c0_52 = arith.constant 0 : index
    %c0_53 = arith.constant 0 : index
    %72 = vector.load %arg6[%c0_52, %c0_53] : memref<32x8xf32, #tpu.memory_space<vmem>>, vector<32x8xf32>
    %cst_54 = arith.constant dense<0.000000e+00> : vector<32x256xf32>
    %73 = tpu.matmul %72, %71, %cst_54 {dimension_numbers = #tpu.dot_dimension_numbers<[1], [1], [0], [0], [0, 0, 1, 0], [], []>} : vector<32x8xf32>, vector<256x8xf32>, vector<32x256xf32> -> vector<32x256xf32>
    %c0_55 = arith.constant 0 : index
    %c0_56 = arith.constant 0 : index
    %74 = vector.load %arg7[%c0_55, %c0_56] : memref<32x1xf32, #tpu.memory_space<vmem>>, vector<32x1xf32>
    %75 = vector.broadcast %74 : vector<32x1xf32> to vector<32x256xf32>
    %76 = arith.addf %73, %75 : vector<32x256xf32>
    %c0_57 = arith.constant 0 : index
    %c0_58 = arith.constant 0 : index
    %c0_59 = arith.constant 0 : index
    %77 = vector.load %arg8[%c0_57, %c0_58, %c0_59] : memref<1x32x256xf32, #tpu.memory_space<vmem>>, vector<1x32x256xf32>
    %78 = vector.shape_cast %77 : vector<1x32x256xf32> to vector<32x256xf32>
    %79 = vector.shape_cast %76 : vector<32x256xf32> to vector<1x32x256xf32>
    tpu.vector_store %arg8[%c0_57, %c0_58, %c0_59], %79 {strides = array<i32>} : memref<1x32x256xf32, #tpu.memory_space<vmem>>, vector<1x32x256xf32>,
    return
  }
  func.func @transform_0(%arg0: i32) -> (i32, i32, i32) {
    %c0_i32 = arith.constant 0 : i32
    %c0_i32_0 = arith.constant 0 : i32
    %c0_i32_1 = arith.constant 0 : i32
    return %arg0, %c0_i32, %c0_i32_0 : i32, i32, i32
  }
  func.func @transform_1(%arg0: i32) -> (i32, i32) {
    %c0_i32 = arith.constant 0 : i32
    %c0_i32_0 = arith.constant 0 : i32
    %c0_i32_1 = arith.constant 0 : i32
    return %c0_i32, %c0_i32_0 : i32, i32
  }
  func.func @transform_2(%arg0: i32) -> (i32, i32) {
    %c0_i32 = arith.constant 0 : i32
    %c0_i32_0 = arith.constant 0 : i32
    %c0_i32_1 = arith.constant 0 : i32
    return %c0_i32, %c0_i32_0 : i32, i32
  }
  func.func @transform_3(%arg0: i32) -> (i32, i32, i32, i32) {
    %c0_i32 = arith.constant 0 : i32
    %c0_i32_0 = arith.constant 0 : i32
    %c0_i32_1 = arith.constant 0 : i32
    %c0_i32_2 = arith.constant 0 : i32
    %c0_i32_3 = arith.constant 0 : i32
    return %c0_i32, %c0_i32_0, %c0_i32_1, %c0_i32_2 : i32, i32, i32, i32
  }
  func.func @transform_4(%arg0: i32) -> (i32, i32) {
    %c0_i32 = arith.constant 0 : i32
    %c0_i32_0 = arith.constant 0 : i32
    %c0_i32_1 = arith.constant 0 : i32
    return %c0_i32, %c0_i32_0 : i32, i32
  }
  func.func @transform_5(%arg0: i32) -> (i32, i32) {
    %c0_i32 = arith.constant 0 : i32
    %c0_i32_0 = arith.constant 0 : i32
    %c0_i32_1 = arith.constant 0 : i32
    return %c0_i32, %c0_i32_0 : i32, i32
  }
  func.func @transform_6(%arg0: i32) -> (i32, i32) {
    %c0_i32 = arith.constant 0 : i32
    %c0_i32_0 = arith.constant 0 : i32
    %c0_i32_1 = arith.constant 0 : i32
    return %c0_i32, %c0_i32_0 : i32, i32
  }
  func.func @transform_7(%arg0: i32) -> (i32, i32, i32) {
    %c0_i32 = arith.constant 0 : i32
    %c0_i32_0 = arith.constant 0 : i32
    %c0_i32_1 = arith.constant 0 : i32
    return %arg0, %c0_i32, %c0_i32_0 : i32, i32, i32
  }
}

</mosaic_0001>

<llo_original>
// kernel: tpu_custom_call.1
$region0: #{tpu_custom_call.1}
  #allocation0 [shape = 'u32[]', space=smem, size = 0x4, offset = 0x4, fixed_abs, tag = 'smem constant byte address 0x4 - core index']
  #allocation1 [shape = 'u32[144,128]{1,0:T(1,128)}', space=vmem, size = 0x12000, scoped, tag = 'internal scratch']
  %s0 = inlined_call_operand.hbm [shape: f32[2,32,256], index: 0, kind: input, shape index: {}]
  %s1 = inlined_call_operand.vmem [shape: f32[32,8], index: 1, kind: input, shape index: {}]
  %s2 = inlined_call_operand.vmem [shape: f32[1,8], index: 2, kind: input, shape index: {}]
  %s3 = inlined_call_operand.vmem [shape: f32[3,3,8,8], index: 3, kind: input, shape index: {}]
  %s4 = inlined_call_operand.vmem [shape: f32[1,8], index: 4, kind: input, shape index: {}]
  %s5 = inlined_call_operand.vmem [shape: f32[32,8], index: 5, kind: input, shape index: {}]
  %s6 = inlined_call_operand.vmem [shape: f32[32,1], index: 6, kind: input, shape index: {}]
  %s7 = inlined_call_operand.hbm [shape: f32[2,32,256], index: 7, kind: output, shape index: {}]
  %s8 = sld [smem:[#allocation0]]
  $region65: #{tpu_custom_call.1} parent=0
    _
  %s10 = ssub.s32 1, %s8
  %s11 = scalar_select 0, %s10, %s8
  $region1: #{tpu_custom_call.1} parent=0
    #allocation2 [shape = 'u8[65536]{0}', space=vmem, size = 0x10000, scoped, tag = 'input window, operand 0']
    #allocation3 [shape = 's32[2]{0}', space=sflag, size = 0x8, scoped, tag = 'scoped memory for tpu_custom_call.1']
    #allocation4 [shape = 's32[2]{0}', space=sflag, size = 0x8, scoped, tag = 'scoped memory for tpu_custom_call.1']
    #allocation5 [shape = 'u8[65536]{0}', space=vmem, size = 0x10000, scoped, tag = 'output window, operand 0']
    %12 = vsyncpa [#allocation3], 0
    %s13 = scalar_lea.sflag [#allocation3], 1
    %14 = vsyncpa %s13, 0
    %15 = vsyncpa [#allocation4], 0
    %s16 = scalar_lea.sflag [#allocation4], 1
    %17 = vsyncpa %s16, 0
    loop: start=0, step=1, limit=4
    $region2: #{tpu_custom_call.1} parent=1 // loop_pre_header
      _
    $region3: #{tpu_custom_call.1} parent=1 // loop_header
      %s19 = sphi 0, %s23
      %p20 = scmp.ge.s32.totalorder %s19, 4
      %s29 = sphi 0, %s31
      %s32 = sphi 0, %s29
      %s33 = sphi 0, %s32
      %s49 = sphi 0, %s33
      %s53 = sphi 0, %s53
      %s55 = sphi 0, %s53
      %s56 = sphi 0, %s55
      %s70 = sphi 0, %s56
      %s74 = sphi 0, %s74
      %s76 = sphi 0, %s74
      %s77 = sphi 0, %s76
      %s91 = sphi 0, %s77
      %s95 = sphi 0, %s95
      %s97 = sphi 0, %s95
      %s98 = sphi 0, %s97
      %s112 = sphi 0, %s98
      %s116 = sphi 0, %s116
      %s118 = sphi 0, %s116
      %s119 = sphi 0, %s118
      %s133 = sphi 0, %s119
      %s137 = sphi 0, %s137
      %s139 = sphi 0, %s137
      %s140 = sphi 0, %s139
      %s154 = sphi 0, %s140
      %s158 = sphi 0, %s158
      %s160 = sphi 0, %s158
      %s161 = sphi 0, %s160
      %s175 = sphi 0, %s161
      %s181 = sphi 0, %s183
      %s184 = sphi 0, %s181
      %s185 = sphi 0, %s184
      %s201 = sphi 0, %s185
    $region4: #{tpu_custom_call.1} parent=1 // loop_header_branch
      %22 = sbr.rel (%p20) target = $region8
    $region5: #{tpu_custom_call.1} parent=1 // loop_body
      %s24 = ssub.s32 %s19, 1
      %s25 = ssub.s32 %s19, 2
      %s26 = sadd.s32 %s19, 1
      %s27 = ssub.s32 %s19, %s26
      %p28 = scmp.eq.s32.totalorder %s27, 0
      %s30 = sadd.s32 %s29, 1
      %s31 = scalar_select %p28, %s29, %s30
      %p34 = pneg %p28
      %p35 = scmp.eq.s32.totalorder %s19, 1
      %p36 = por %p34, %p35
      %p37 = scmp.ne.s32.totalorder %s29, %s32
      %p38 = scmp.eq.s32.totalorder %s19, 0
      %p39 = por %p37, %p38
      %p40 = scmp.ne.s32.totalorder %s29, %s32
      %p41 = scmp.eq.s32.totalorder %s24, 1
      %p42 = por %p40, %p41
      %p43 = scmp.ne.s32.totalorder %s32, %s33
      %p44 = scmp.eq.s32.totalorder %s24, 0
      %p45 = por %p43, %p44
      %p46 = scmp.ne.s32.totalorder %s32, %s33
      %p47 = scmp.eq.s32.totalorder %s25, 1
      %p48 = por %p46, %p47
      %p50 = scmp.ne.s32.totalorder %s33, %s49
      %p51 = scmp.eq.s32.totalorder %s25, 0
      %p52 = por %p50, %p51
      %s54 = sadd.s32 %s53, 1
      %p57 = scmp.eq.s32.totalorder %s19, 1
      %p58 = scmp.ne.s32.totalorder %s53, %s55
      %p59 = scmp.eq.s32.totalorder %s19, 0
      %p60 = por %p58, %p59
      %p61 = scmp.ne.s32.totalorder %s53, %s55
      %p62 = scmp.eq.s32.totalorder %s24, 1
      %p63 = por %p61, %p62
      %p64 = scmp.ne.s32.totalorder %s55, %s56
      %p65 = scmp.eq.s32.totalorder %s24, 0
      %p66 = por %p64, %p65
      %p67 = scmp.ne.s32.totalorder %s55, %s56
      %p68 = scmp.eq.s32.totalorder %s25, 1
      %p69 = por %p67, %p68
      %p71 = scmp.ne.s32.totalorder %s56, %s70
      %p72 = scmp.eq.s32.totalorder %s25, 0
      %p73 = por %p71, %p72
      %s75 = sadd.s32 %s74, 1
      %p78 = scmp.eq.s32.totalorder %s19, 1
      %p79 = scmp.ne.s32.totalorder %s74, %s76
      %p80 = scmp.eq.s32.totalorder %s19, 0
      %p81 = por %p79, %p80
      %p82 = scmp.ne.s32.totalorder %s74, %s76
      %p83 = scmp.eq.s32.totalorder %s24, 1
      %p84 = por %p82, %p83
      %p85 = scmp.ne.s32.totalorder %s76, %s77
      %p86 = scmp.eq.s32.totalorder %s24, 0
      %p87 = por %p85, %p86
      %p88 = scmp.ne.s32.totalorder %s76, %s77
      %p89 = scmp.eq.s32.totalorder %s25, 1
      %p90 = por %p88, %p89
      %p92 = scmp.ne.s32.totalorder %s77, %s91
      %p93 = scmp.eq.s32.totalorder %s25, 0
      %p94 = por %p92, %p93
      %s96 = sadd.s32 %s95, 1
      %p99 = scmp.eq.s32.totalorder %s19, 1
      %p100 = scmp.ne.s32.totalorder %s95, %s97
      %p101 = scmp.eq.s32.totalorder %s19, 0
      %p102 = por %p100, %p101
      %p103 = scmp.ne.s32.totalorder %s95, %s97
      %p104 = scmp.eq.s32.totalorder %s24, 1
      %p105 = por %p103, %p104
      %p106 = scmp.ne.s32.totalorder %s97, %s98
      %p107 = scmp.eq.s32.totalorder %s24, 0
      %p108 = por %p106, %p107
      %p109 = scmp.ne.s32.totalorder %s97, %s98
      %p110 = scmp.eq.s32.totalorder %s25, 1
      %p111 = por %p109, %p110
      %p113 = scmp.ne.s32.totalorder %s98, %s112
      %p114 = scmp.eq.s32.totalorder %s25, 0
      %p115 = por %p113, %p114
      %s117 = sadd.s32 %s116, 1
      %p120 = scmp.eq.s32.totalorder %s19, 1
      %p121 = scmp.ne.s32.totalorder %s116, %s118
      %p122 = scmp.eq.s32.totalorder %s19, 0
      %p123 = por %p121, %p122
      %p124 = scmp.ne.s32.totalorder %s116, %s118
      %p125 = scmp.eq.s32.totalorder %s24, 1
      %p126 = por %p124, %p125
      %p127 = scmp.ne.s32.totalorder %s118, %s119
      %p128 = scmp.eq.s32.totalorder %s24, 0
      %p129 = por %p127, %p128
      %p130 = scmp.ne.s32.totalorder %s118, %s119
      %p131 = scmp.eq.s32.totalorder %s25, 1
      %p132 = por %p130, %p131
      %p134 = scmp.ne.s32.totalorder %s119, %s133
      %p135 = scmp.eq.s32.totalorder %s25, 0
      %p136 = por %p134, %p135
      %s138 = sadd.s32 %s137, 1
      %p141 = scmp.eq.s32.totalorder %s19, 1
      %p142 = scmp.ne.s32.totalorder %s137, %s139
      %p143 = scmp.eq.s32.totalorder %s19, 0
      %p144 = por %p142, %p143
      %p145 = scmp.ne.s32.totalorder %s137, %s139
      %p146 = scmp.eq.s32.totalorder %s24, 1
      %p147 = por %p145, %p146
      %p148 = scmp.ne.s32.totalorder %s139, %s140
      %p149 = scmp.eq.s32.totalorder %s24, 0
      %p150 = por %p148, %p149
      %p151 = scmp.ne.s32.totalorder %s139, %s140
      %p152 = scmp.eq.s32.totalorder %s25, 1
      %p153 = por %p151, %p152
      %p155 = scmp.ne.s32.totalorder %s140, %s154
      %p156 = scmp.eq.s32.totalorder %s25, 0
      %p157 = por %p155, %p156
      %s159 = sadd.s32 %s158, 1
      %p162 = scmp.eq.s32.totalorder %s19, 1
      %p163 = scmp.ne.s32.totalorder %s158, %s160
      %p164 = scmp.eq.s32.totalorder %s19, 0
      %p165 = por %p163, %p164
      %p166 = scmp.ne.s32.totalorder %s158, %s160
      %p167 = scmp.eq.s32.totalorder %s24, 1
      %p168 = por %p166, %p167
      %p169 = scmp.ne.s32.totalorder %s160, %s161
      %p170 = scmp.eq.s32.totalorder %s24, 0
      %p171 = por %p169, %p170
      %p172 = scmp.ne.s32.totalorder %s160, %s161
      %p173 = scmp.eq.s32.totalorder %s25, 1
      %p174 = por %p172, %p173
      %p176 = scmp.ne.s32.totalorder %s161, %s175
      %p177 = scmp.eq.s32.totalorder %s25, 0
      %p178 = por %p176, %p177
      %s179 = ssub.s32 %s19, %s26
      %p180 = scmp.eq.s32.totalorder %s179, 0
      %s182 = sadd.s32 %s181, 1
      %s183 = scalar_select %p180, %s181, %s182
      %p186 = pneg %p180
      %p187 = scmp.eq.s32.totalorder %s19, 1
      %p188 = por %p186, %p187
      %p189 = scmp.ne.s32.totalorder %s181, %s184
      %p190 = scmp.eq.s32.totalorder %s19, 0
      %p191 = por %p189, %p190
      %p192 = scmp.ne.s32.totalorder %s181, %s184
      %p193 = scmp.eq.s32.totalorder %s24, 1
      %p194 = por %p192, %p193
      %p195 = scmp.ne.s32.totalorder %s184, %s185
      %p196 = scmp.eq.s32.totalorder %s24, 0
      %p197 = por %p195, %p196
      %p198 = scmp.ne.s32.totalorder %s184, %s185
      %p199 = scmp.eq.s32.totalorder %s25, 1
      %p200 = por %p198, %p199
      %p202 = scmp.ne.s32.totalorder %s185, %s201
      %p203 = scmp.eq.s32.totalorder %s25, 0
      %p204 = por %p202, %p203
      %p205 = scmp.le.s32.totalorder 1, %s19
      %p206 = scmp.lt.s32.totalorder %s19, 3
      %p207 = pnand %p205, %p206
      %p208 = pneg %p207
      // Predicated region
      $region9: #{tpu_custom_call.1} parent=5 // pred_check
        _
      $region10: #{tpu_custom_call.1} parent=5 // pred_check_branch
        %210 = sbr.rel (%p207) target = $region12
      $region11: #{tpu_custom_call.1} parent=5 // pred_region
        %s211 = ssub.s32 %s19, 1
        // Predicated region
        $region13: #{tpu_custom_call.1} parent=11 // pred_check
          %p212 = pneg %p66
        $region14: #{tpu_custom_call.1} parent=11 // pred_check_branch
          %214 = sbr.rel (%p212) target = $region16
        $region15: #{tpu_custom_call.1} parent=11 // pred_region
          _
        $region16: #{tpu_custom_call.1} parent=11 // pred_fallthru
          _
        // Predicated region
        $region17: #{tpu_custom_call.1} parent=11 // pred_check
          %p215 = pneg %p87
        $region18: #{tpu_custom_call.1} parent=11 // pred_check_branch
          %217 = sbr.rel (%p215) target = $region20
        $region19: #{tpu_custom_call.1} parent=11 // pred_region
          _
        $region20: #{tpu_custom_call.1} parent=11 // pred_fallthru
          _
        // Predicated region
        $region21: #{tpu_custom_call.1} parent=11 // pred_check
          %p218 = pneg %p108
        $region22: #{tpu_custom_call.1} parent=11 // pred_check_branch
          %220 = sbr.rel (%p218) target = $region24
        $region23: #{tpu_custom_call.1} parent=11 // pred_region
          _
        $region24: #{tpu_custom_call.1} parent=11 // pred_fallthru
          _
        // Predicated region
        $region25: #{tpu_custom_call.1} parent=11 // pred_check
          %p221 = pneg %p129
        $region26: #{tpu_custom_call.1} parent=11 // pred_check_branch
          %223 = sbr.rel (%p221) target = $region28
        $region27: #{tpu_custom_call.1} parent=11 // pred_region
          _
        $region28: #{tpu_custom_call.1} parent=11 // pred_fallthru
          _
        // Predicated region
        $region29: #{tpu_custom_call.1} parent=11 // pred_check
          %p224 = pneg %p150
        $region30: #{tpu_custom_call.1} parent=11 // pred_check_branch
          %226 = sbr.rel (%p224) target = $region32
        $region31: #{tpu_custom_call.1} parent=11 // pred_region
          _
        $region32: #{tpu_custom_call.1} parent=11 // pred_fallthru
          _
        // Predicated region
        $region33: #{tpu_custom_call.1} parent=11 // pred_check
          %p227 = pneg %p171
        $region34: #{tpu_custom_call.1} parent=11 // pred_check_branch
          %229 = sbr.rel (%p227) target = $region36
        $region35: #{tpu_custom_call.1} parent=11 // pred_region
          _
        $region36: #{tpu_custom_call.1} parent=11 // pred_fallthru
          _
      $region12: #{tpu_custom_call.1} parent=5 // pred_fallthru
        _
      %p230 = scmp.lt.s32.totalorder %s19, 2
      // Predicated region
      $region37: #{tpu_custom_call.1} parent=5 // pred_check
        %p231 = pneg %p230
      $region38: #{tpu_custom_call.1} parent=5 // pred_check_branch
        %233 = sbr.rel (%p231) target = $region40
      $region39: #{tpu_custom_call.1} parent=5 // pred_region
        // Predicated region
        $region41: #{tpu_custom_call.1} parent=39 // pred_check
          %p234 = pneg %p39
        $region42: #{tpu_custom_call.1} parent=39 // pred_check_branch
          %236 = sbr.rel (%p234) target = $region44
        $region43: #{tpu_custom_call.1} parent=39 // pred_region
          %s237 = sand.u32 %s29, 1
          %s238 = scalar_lea.sflag [#allocation3], %s237
          %s239 = sand.u32 %s29, 1
          %s240 = smul.addr %s239, 64
          %s241 = scalar_lea.vmem [#allocation2], %s240
          %s243 = ssub.s32 1024, 1024
          %244 = vsyncadd %s238, %s243
          %s245 = smul.addr %s19, 8
          %s246 = smul.addr %s245, 128
          %s247 = scalar_lea.hbm %s0, %s246
          %s248 = sshll.u32 %s241, 4
          %s249 = int_to_ptr.vmem [resolvable:$true] %s248
          %254 = dma.hbm_to_vmem [thread:$0]  %s247, 1024, %s249, %s238, 256, 256, 16
        $region44: #{tpu_custom_call.1} parent=39 // pred_fallthru
          _
      $region40: #{tpu_custom_call.1} parent=5 // pred_fallthru
        _
      %p255 = scmp.le.s32.totalorder 1, %s19
      %p256 = scmp.lt.s32.totalorder %s19, 3
      %p257 = pnand %p255, %p256
      %p258 = pneg %p257
      // Predicated region
      $region45: #{tpu_custom_call.1} parent=5 // pred_check
        _
      $region46: #{tpu_custom_call.1} parent=5 // pred_check_branch
        %260 = sbr.rel (%p257) target = $region48
      $region47: #{tpu_custom_call.1} parent=5 // pred_region
        %s261 = ssub.s32 %s19, 1
        %s262 = sand.u32 %s32, 1
        %s263 = scalar_lea.sflag [#allocation3], %s262
        %s264 = sand.u32 %s32, 1
        %s265 = smul.addr %s264, 64
        %s266 = scalar_lea.vmem [#allocation2], %s265
        // Predicated region
        $region49: #{tpu_custom_call.1} parent=47 // pred_check
          %p267 = pneg %p45
        $region50: #{tpu_custom_call.1} parent=47 // pred_check_branch
          %269 = sbr.rel (%p267) target = $region52
        $region51: #{tpu_custom_call.1} parent=47 // pred_region
          %270 = dma.done %s263, 1024
        $region52: #{tpu_custom_call.1} parent=47 // pred_fallthru
          _
        %s271 = sand.u32 %s32, 1
        %s272 = scalar_lea.sflag [#allocation3], %s271
        %s273 = sand.u32 %s32, 1
        %s274 = smul.addr %s273, 64
        %s275 = scalar_lea.vmem [#allocation2], %s274
        %p276 = pneg %p45
        %p277 = pneg %p42
        %p278 = pneg %p66
        %p279 = pneg %p63
        %p280 = pneg %p87
        %p281 = pneg %p84
        %p282 = pneg %p108
        %p283 = pneg %p105
        %p284 = pneg %p129
        %p285 = pneg %p126
        %p286 = pneg %p150
        %p287 = pneg %p147
        %p288 = pneg %p171
        %p289 = pneg %p168
        %p290 = pneg %p197
        %p291 = pneg %p194
        %s292 = sand.u32 %s184, 1
        %s293 = scalar_lea.sflag [#allocation4], %s292
        %s294 = sand.u32 %s184, 1
        %s295 = smul.addr %s294, 64
        %s296 = scalar_lea.vmem [#allocation5], %s295
        %v297 = vld [vmem:[%s266] sm:$0xff]
        %v298 = vld [vmem:[%s266 + $0x8] sm:$0xff]
        %v299 = vld [vmem:[%s266 + $0x10] sm:$0xff]
        %v300 = vld [vmem:[%s266 + $0x18] sm:$0xff]
        %v301 = vld [vmem:[%s266 + $0x20] sm:$0xff]
        %v302 = vld [vmem:[%s266 + $0x28] sm:$0xff]
        %v303 = vld [vmem:[%s266 + $0x30] sm:$0xff]
        %v304 = vld [vmem:[%s266 + $0x38] sm:$0xff]
        %v305 = vld [vmem:[%s1] sm:$0xff]
        %v306 = vld [vmem:[%s1 + $0x8] sm:$0xff]
        %v307 = vld [vmem:[%s1 + $0x10] sm:$0xff]
        %v308 = vld [vmem:[%s1 + $0x18] sm:$0xff]
        %v309 = vld [vmem:[%s2] sm:$0x1]
        %v311 = vlaneseq
        %v312 = vshrl.u32 %v311, 7
        %v313 = vsub.s32 0, %v312
        %v314 = vrot.slane %v309, %v313
        %316 = vxpose.xlu0.b32.start [1/16] %v297, 128
        %317 = vxpose.xlu0.b32.cont [2/16] %v299, 128
        %318 = vxpose.xlu0.b32.cont [3/16] %v301, 128
        %319 = vxpose.xlu0.b32.cont [4/16] %v303, 128
        %320 = vxpose.xlu0.b32.cont [5/16] 0.0, 128
        %321 = vxpose.xlu0.b32.cont [6/16] 0.0, 128
        %322 = vxpose.xlu0.b32.cont [7/16] 0.0, 128
        %323 = vxpose.xlu0.b32.cont [8/16] 0.0, 128
        %324 = vxpose.xlu0.b32.cont [9/16] 0.0, 128
        %325 = vxpose.xlu0.b32.cont [10/16] 0.0, 128
        %326 = vxpose.xlu0.b32.cont [11/16] 0.0, 128
        %327 = vxpose.xlu0.b32.cont [12/16] 0.0, 128
        %328 = vxpose.xlu0.b32.cont [13/16] 0.0, 128
        %329 = vxpose.xlu0.b32.cont [14/16] 0.0, 128
        %330 = vxpose.xlu0.b32.cont [15/16] 0.0, 128
        %331 = vxpose.xlu0.b32.end [16/16] 0.0, 128
        %v332 = vpop.trf.xlu0
        %v333 = vpop.trf.xlu0
        %v334 = vpop.trf.xlu0
        %v335 = vpop.trf.xlu0
        %v336 = vpop.trf.xlu0
        %v337 = vpop.trf.xlu0
        %v338 = vpop.trf.xlu0
        %v339 = vpop.trf.xlu0
        %v340 = vpop.trf.xlu0
        %v341 = vpop.trf.xlu0
        %v342 = vpop.trf.xlu0
        %v343 = vpop.trf.xlu0
        %v344 = vpop.trf.xlu0
        %v345 = vpop.trf.xlu0
        %v346 = vpop.trf.xlu0
        %v347 = vpop.trf.xlu0
        %348 = vxpose.xlu0.b32.start [1/16] %v298, 128
        %349 = vxpose.xlu0.b32.cont [2/16] %v300, 128
        %350 = vxpose.xlu0.b32.cont [3/16] %v302, 128
        %351 = vxpose.xlu0.b32.cont [4/16] %v304, 128
        %352 = vxpose.xlu0.b32.cont [5/16] 0.0, 128
        %353 = vxpose.xlu0.b32.cont [6/16] 0.0, 128
        %354 = vxpose.xlu0.b32.cont [7/16] 0.0, 128
        %355 = vxpose.xlu0.b32.cont [8/16] 0.0, 128
        %356 = vxpose.xlu0.b32.cont [9/16] 0.0, 128
        %357 = vxpose.xlu0.b32.cont [10/16] 0.0, 128
        %358 = vxpose.xlu0.b32.cont [11/16] 0.0, 128
        %359 = vxpose.xlu0.b32.cont [12/16] 0.0, 128
        %360 = vxpose.xlu0.b32.cont [13/16] 0.0, 128
        %361 = vxpose.xlu0.b32.cont [14/16] 0.0, 128
        %362 = vxpose.xlu0.b32.cont [15/16] 0.0, 128
        %363 = vxpose.xlu0.b32.end [16/16] 0.0, 128
        %v364 = vpop.trf.xlu0
        %v365 = vpop.trf.xlu0
        %v366 = vpop.trf.xlu0
        %v367 = vpop.trf.xlu0
        %v368 = vpop.trf.xlu0
        %v369 = vpop.trf.xlu0
        %v370 = vpop.trf.xlu0
        %v371 = vpop.trf.xlu0
        %v372 = vpop.trf.xlu0
        %v373 = vpop.trf.xlu0
        %v374 = vpop.trf.xlu0
        %v375 = vpop.trf.xlu0
        %v376 = vpop.trf.xlu0
        %v377 = vpop.trf.xlu0
        %v378 = vpop.trf.xlu0
        %v379 = vpop.trf.xlu0
        %vm380 = vcmask 261120
        %v382 = vsel %vm380, %v332, 0
        %v385 = vsel %vm380, %v333, 0
        %v388 = vsel %vm380, %v334, 0
        %v391 = vsel %vm380, %v335, 0
        %v394 = vsel %vm380, %v336, 0
        %v397 = vsel %vm380, %v337, 0
        %v400 = vsel %vm380, %v338, 0
        %v403 = vsel %vm380, %v339, 0
        %v406 = vsel %vm380, %v340, 0
        %v409 = vsel %vm380, %v341, 0
        %v412 = vsel %vm380, %v342, 0
        %v415 = vsel %vm380, %v343, 0
        %v418 = vsel %vm380, %v344, 0
        %v421 = vsel %vm380, %v345, 0
        %v424 = vsel %vm380, %v346, 0
        %v427 = vsel %vm380, %v347, 0
        %v430 = vsel %vm380, %v364, 0
        %v433 = vsel %vm380, %v365, 0
        %v436 = vsel %vm380, %v366, 0
        %v439 = vsel %vm380, %v367, 0
        %v442 = vsel %vm380, %v368, 0
        %v445 = vsel %vm380, %v369, 0
        %v448 = vsel %vm380, %v370, 0
        %v451 = vsel %vm380, %v371, 0
        %v454 = vsel %vm380, %v372, 0
        %v457 = vsel %vm380, %v373, 0
        %v460 = vsel %vm380, %v374, 0
        %v463 = vsel %vm380, %v375, 0
        %v466 = vsel %vm380, %v376, 0
        %v469 = vsel %vm380, %v377, 0
        %v472 = vsel %vm380, %v378, 0
        %v475 = vsel %vm380, %v379, 0
        %477 = vmatprep.subr.mxu0 0.0
        %478 = vmatpush1.msra.mxu0 %v305
        %479 = vmatprep.subr.mxu0 0.0
        %480 = vmatpush1.msra.mxu0 %v306
        %481 = vmatprep.subr.mxu0 0.0
        %482 = vmatpush1.msra.mxu0 %v307
        %483 = vmatprep.subr.mxu0 0.0
        %484 = vmatpush1.msra.mxu0 %v308
        %485 = vmatprep.subr.mxu0 0.0
        %486 = vmatpush1.msra.mxu0 0.0
        %487 = vmatprep.subr.mxu0 0.0
        %488 = vmatpush1.msra.mxu0 0.0
        %489 = vmatprep.subr.mxu0 0.0
        %490 = vmatpush1.msra.mxu0 0.0
        %491 = vmatprep.subr.mxu0 0.0
        %492 = vmatpush1.msra.mxu0 0.0
        %493 = vmatprep.subr.mxu0 0.0
        %494 = vmatpush1.msra.mxu0 0.0
        %495 = vmatprep.subr.mxu0 0.0
        %496 = vmatpush1.msra.mxu0 0.0
        %497 = vmatprep.subr.mxu0 0.0
        %498 = vmatpush1.msra.mxu0 0.0
        %499 = vmatprep.subr.mxu0 0.0
        %500 = vmatpush1.msra.mxu0 0.0
        %501 = vmatprep.subr.mxu0 0.0
        %502 = vmatpush1.msra.mxu0 0.0
        %503 = vmatprep.subr.mxu0 0.0
        %504 = vmatpush1.msra.mxu0 0.0
        %505 = vmatprep.subr.mxu0 0.0
        %506 = vmatpush1.msra.mxu0 0.0
        %507 = vmatprep.subr.mxu0 0.0
        %508 = vmatpush1.msra.mxu0 0.0
        %509 = vmatprep.subr.mxu0 0.0
        %510 = vmatpush1.msra.mxu0 0.0
        %511 = vmatprep.subr.mxu0 0.0
        %512 = vmatpush1.msra.mxu0 0.0
        %513 = vmatprep.subr.mxu0 0.0
        %514 = vmatpush1.msra.mxu0 0.0
        %515 = vmatprep.subr.mxu0 0.0
        %516 = vmatpush1.msra.mxu0 0.0
        %517 = vmatprep.subr.mxu0 0.0
        %518 = vmatpush1.msra.mxu0 0.0
        %519 = vmatprep.subr.mxu0 0.0
        %520 = vmatpush1.msra.mxu0 0.0
        %521 = vmatprep.subr.mxu0 0.0
        %522 = vmatpush1.msra.mxu0 0.0
        %523 = vmatprep.subr.mxu0 0.0
        %524 = vmatpush1.msra.mxu0 0.0
        %525 = vmatprep.subr.mxu0 0.0
        %526 = vmatpush1.msra.mxu0 0.0
        %527 = vmatprep.subr.mxu0 0.0
        %528 = vmatpush1.msra.mxu0 0.0
        %529 = vmatprep.subr.mxu0 0.0
        %530 = vmatpush1.msra.mxu0 0.0
        %531 = vmatprep.subr.mxu0 0.0
        %532 = vmatpush1.msra.mxu0 0.0
        %533 = vmatprep.subr.mxu0 0.0
        %534 = vmatpush1.msra.mxu0 0.0
        %535 = vmatprep.subr.mxu0 0.0
        %536 = vmatpush1.msra.mxu0 0.0
        %537 = vmatprep.subr.mxu0 0.0
        %538 = vmatpush1.msra.mxu0 0.0
        %539 = vmatprep.subr.mxu0 0.0
        %540 = vmatpush1.msra.mxu0 0.0
        %541 = vmatprep.mubr.f32.mxu0 0.0
        %542 = vmatmul.mubr.f32.gmra.mrb[0].mxu0 %v382
        %v543 = vpop.f32.mrb[0].mxu0
        %v544 = vadd.f32 %v314, %v543
        %v545 = vpop.f32.mrb[0].mxu0
        %546 = vmatprep.mubr.f32.mxu0 0.0
        %547 = vmatmul.mubr.f32.gmra.mrb[0].mxu0 %v385
        %v548 = vpop.f32.mrb[0].mxu0
        %v549 = vadd.f32 %v314, %v548
        %v550 = vpop.f32.mrb[0].mxu0
        %551 = vmatprep.mubr.f32.mxu0 0.0
        %552 = vmatmul.mubr.f32.gmra.mrb[0].mxu0 %v388
        %v553 = vpop.f32.mrb[0].mxu0
        %v554 = vadd.f32 %v314, %v553
        %v555 = vpop.f32.mrb[0].mxu0
        %556 = vmatprep.mubr.f32.mxu0 0.0
        %557 = vmatmul.mubr.f32.gmra.mrb[0].mxu0 %v391
        %v558 = vpop.f32.mrb[0].mxu0
        %v559 = vadd.f32 %v314, %v558
        %v560 = vpop.f32.mrb[0].mxu0
        %561 = vmatprep.mubr.f32.mxu0 0.0
        %562 = vmatmul.mubr.f32.gmra.mrb[0].mxu0 %v394
        %v563 = vpop.f32.mrb[0].mxu0
        %v564 = vadd.f32 %v314, %v563
        %v565 = vpop.f32.mrb[0].mxu0
        %566 = vmatprep.mubr.f32.mxu0 0.0
        %567 = vmatmul.mubr.f32.gmra.mrb[0].mxu0 %v397
        %v568 = vpop.f32.mrb[0].mxu0
        %v569 = vadd.f32 %v314, %v568
        %v570 = vpop.f32.mrb[0].mxu0
        %571 = vmatprep.mubr.f32.mxu0 0.0
        %572 = vmatmul.mubr.f32.gmra.mrb[0].mxu0 %v400
        %v573 = vpop.f32.mrb[0].mxu0
        %v574 = vadd.f32 %v314, %v573
        %v575 = vpop.f32.mrb[0].mxu0
        %576 = vmatprep.mubr.f32.mxu0 0.0
        %577 = vmatmul.mubr.f32.gmra.mrb[0].mxu0 %v403
        %v578 = vpop.f32.mrb[0].mxu0
        %v579 = vadd.f32 %v314, %v578
        %v580 = vpop.f32.mrb[0].mxu0
        %581 = vmatprep.mubr.f32.mxu0 0.0
        %582 = vmatmul.mubr.f32.gmra.mrb[0].mxu0 %v406
        %v583 = vpop.f32.mrb[0].mxu0
        %v584 = vadd.f32 %v314, %v583
        %v585 = vpop.f32.mrb[0].mxu0
        %586 = vmatprep.mubr.f32.mxu0 0.0
        %587 = vmatmul.mubr.f32.gmra.mrb[0].mxu0 %v409
        %v588 = vpop.f32.mrb[0].mxu0
        %v589 = vadd.f32 %v314, %v588
        %v590 = vpop.f32.mrb[0].mxu0
        %591 = vmatprep.mubr.f32.mxu0 0.0
        %592 = vmatmul.mubr.f32.gmra.mrb[0].mxu0 %v412
        %v593 = vpop.f32.mrb[0].mxu0
        %v594 = vadd.f32 %v314, %v593
        %v595 = vpop.f32.mrb[0].mxu0
        %596 = vmatprep.mubr.f32.mxu0 0.0
        %597 = vmatmul.mubr.f32.gmra.mrb[0].mxu0 %v415
        %v598 = vpop.f32.mrb[0].mxu0
        %v599 = vadd.f32 %v314, %v598
        %v600 = vpop.f32.mrb[0].mxu0
        %601 = vmatprep.mubr.f32.mxu0 0.0
        %602 = vmatmul.mubr.f32.gmra.mrb[0].mxu0 %v418
        %v603 = vpop.f32.mrb[0].mxu0
        %v604 = vadd.f32 %v314, %v603
        %v605 = vpop.f32.mrb[0].mxu0
        %606 = vmatprep.mubr.f32.mxu0 0.0
        %607 = vmatmul.mubr.f32.gmra.mrb[0].mxu0 %v421
        %v608 = vpop.f32.mrb[0].mxu0
        %v609 = vadd.f32 %v314, %v608
        %v610 = vpop.f32.mrb[0].mxu0
        %611 = vmatprep.mubr.f32.mxu0 0.0
        %612 = vmatmul.mubr.f32.gmra.mrb[0].mxu0 %v424
        %v613 = vpop.f32.mrb[0].mxu0
        %v614 = vadd.f32 %v314, %v613
        %v615 = vpop.f32.mrb[0].mxu0
        %616 = vmatprep.mubr.f32.mxu0 0.0
        %617 = vmatmul.mubr.f32.gmra.mrb[0].mxu0 %v427
        %v618 = vpop.f32.mrb[0].mxu0
        %v619 = vadd.f32 %v314, %v618
        %v620 = vpop.f32.mrb[0].mxu0
        %621 = vmatprep.mubr.f32.mxu0 0.0
        %622 = vmatmul.mubr.f32.gmra.mrb[0].mxu0 %v430
        %v623 = vpop.f32.mrb[0].mxu0
        %v624 = vadd.f32 %v314, %v623
        %v625 = vpop.f32.mrb[0].mxu0
        %626 = vmatprep.mubr.f32.mxu0 0.0
        %627 = vmatmul.mubr.f32.gmra.mrb[0].mxu0 %v433
        %v628 = vpop.f32.mrb[0].mxu0
        %v629 = vadd.f32 %v314, %v628
        %v630 = vpop.f32.mrb[0].mxu0
        %631 = vmatprep.mubr.f32.mxu0 0.0
        %632 = vmatmul.mubr.f32.gmra.mrb[0].mxu0 %v436
        %v633 = vpop.f32.mrb[0].mxu0
        %v634 = vadd.f32 %v314, %v633
        %v635 = vpop.f32.mrb[0].mxu0
        %636 = vmatprep.mubr.f32.mxu0 0.0
        %637 = vmatmul.mubr.f32.gmra.mrb[0].mxu0 %v439
        %v638 = vpop.f32.mrb[0].mxu0
        %v639 = vadd.f32 %v314, %v638
        %v640 = vpop.f32.mrb[0].mxu0
        %641 = vmatprep.mubr.f32.mxu0 0.0
        %642 = vmatmul.mubr.f32.gmra.mrb[0].mxu0 %v442
        %v643 = vpop.f32.mrb[0].mxu0
        %v644 = vadd.f32 %v314, %v643
        %v645 = vpop.f32.mrb[0].mxu0
        %646 = vmatprep.mubr.f32.mxu0 0.0
        %647 = vmatmul.mubr.f32.gmra.mrb[0].mxu0 %v445
        %v648 = vpop.f32.mrb[0].mxu0
        %v649 = vadd.f32 %v314, %v648
        %v650 = vpop.f32.mrb[0].mxu0
        %651 = vmatprep.mubr.f32.mxu0 0.0
        %652 = vmatmul.mubr.f32.gmra.mrb[0].mxu0 %v448
        %v653 = vpop.f32.mrb[0].mxu0
        %v654 = vadd.f32 %v314, %v653
        %v655 = vpop.f32.mrb[0].mxu0
        %656 = vmatprep.mubr.f32.mxu0 0.0
        %657 = vmatmul.mubr.f32.gmra.mrb[0].mxu0 %v451
        %v658 = vpop.f32.mrb[0].mxu0
        %v659 = vadd.f32 %v314, %v658
        %v660 = vpop.f32.mrb[0].mxu0
        %661 = vmatprep.mubr.f32.mxu0 0.0
        %662 = vmatmul.mubr.f32.gmra.mrb[0].mxu0 %v454
        %v663 = vpop.f32.mrb[0].mxu0
        %v664 = vadd.f32 %v314, %v663
        %v665 = vpop.f32.mrb[0].mxu0
        %666 = vmatprep.mubr.f32.mxu0 0.0
        %667 = vmatmul.mubr.f32.gmra.mrb[0].mxu0 %v457
        %v668 = vpop.f32.mrb[0].mxu0
        %v669 = vadd.f32 %v314, %v668
        %v670 = vpop.f32.mrb[0].mxu0
        %671 = vmatprep.mubr.f32.mxu0 0.0
        %672 = vmatmul.mubr.f32.gmra.mrb[0].mxu0 %v460
        %v673 = vpop.f32.mrb[0].mxu0
        %v674 = vadd.f32 %v314, %v673
        %v675 = vpop.f32.mrb[0].mxu0
        %676 = vmatprep.mubr.f32.mxu0 0.0
        %677 = vmatmul.mubr.f32.gmra.mrb[0].mxu0 %v463
        %v678 = vpop.f32.mrb[0].mxu0
        %v679 = vadd.f32 %v314, %v678
        %v680 = vpop.f32.mrb[0].mxu0
        %681 = vmatprep.mubr.f32.mxu0 0.0
        %682 = vmatmul.mubr.f32.gmra.mrb[0].mxu0 %v466
        %v683 = vpop.f32.mrb[0].mxu0
        %v684 = vadd.f32 %v314, %v683
        %v685 = vpop.f32.mrb[0].mxu0
        %686 = vmatprep.mubr.f32.mxu0 0.0
        %687 = vmatmul.mubr.f32.gmra.mrb[0].mxu0 %v469
        %v688 = vpop.f32.mrb[0].mxu0
        %v689 = vadd.f32 %v314, %v688
        %v690 = vpop.f32.mrb[0].mxu0
        %691 = vmatprep.mubr.f32.mxu0 0.0
        %692 = vmatmul.mubr.f32.gmra.mrb[0].mxu0 %v472
        %v693 = vpop.f32.mrb[0].mxu0
        %v694 = vadd.f32 %v314, %v693
        %v695 = vpop.f32.mrb[0].mxu0
        %696 = vmatprep.mubr.f32.mxu0 0.0
        %697 = vmatmul.mubr.f32.gmra.mrb[0].mxu0 %v475
        %v698 = vpop.f32.mrb[0].mxu0
        %v699 = vadd.f32 %v314, %v698
        %v700 = vpop.f32.mrb[0].mxu0
        %701 = vdwg.mxu0
        %v718 = vrot.slane %v699, 7
        %v719 = vrot.slane %v549, 7
        %v720 = vrot.slane %v559, 7
        %v721 = vrot.slane %v569, 7
        %v722 = vrot.slane %v579, 7
        %v723 = vrot.slane %v589, 7
        %v724 = vrot.slane %v599, 7
        %v725 = vrot.slane %v609, 7
        %v726 = vrot.slane %v619, 7
        %v727 = vrot.slane %v629, 7
        %v728 = vrot.slane %v639, 7
        %v729 = vrot.slane %v649, 7
        %v730 = vrot.slane %v659, 7
        %v731 = vrot.slane %v669, 7
        %v732 = vrot.slane %v679, 7
        %v733 = vrot.slane %v689, 7
        %vm766 = vcmask 1040384
        %v767 = vrot.slane %v694, 7
        %v768 = vsel %vm766, %v767, %v718
        %v769 = vrot.slane %v544, 7
        %v770 = vsel %vm766, %v769, %v719
        %v771 = vrot.slane %v554, 7
        %v772 = vsel %vm766, %v771, %v720
        %v773 = vrot.slane %v564, 7
        %v774 = vsel %vm766, %v773, %v721
        %v775 = vrot.slane %v574, 7
        %v776 = vsel %vm766, %v775, %v722
        %v777 = vrot.slane %v584, 7
        %v778 = vsel %vm766, %v777, %v723
        %v779 = vrot.slane %v594, 7
        %v780 = vsel %vm766, %v779, %v724
        %v781 = vrot.slane %v604, 7
        %v782 = vsel %vm766, %v781, %v725
        %v783 = vrot.slane %v614, 7
        %v784 = vsel %vm766, %v783, %v726
        %v785 = vrot.slane %v624, 7
        %v786 = vsel %vm766, %v785, %v727
        %v787 = vrot.slane %v634, 7
        %v788 = vsel %vm766, %v787, %v728
        %v789 = vrot.slane %v644, 7
        %v790 = vsel %vm766, %v789, %v729
        %v791 = vrot.slane %v654, 7
        %v792 = vsel %vm766, %v791, %v730
        %v793 = vrot.slane %v664, 7
        %v794 = vsel %vm766, %v793, %v731
        %v795 = vrot.slane %v674, 7
        %v796 = vsel %vm766, %v795, %v732
        %v797 = vrot.slane %v684, 7
        %v798 = vsel %vm766, %v797, %v733
        %v815 = vsel %vm766, %v718, %v767
        %v816 = vsel %vm766, %v719, %v769
        %v817 = vsel %vm766, %v720, %v771
        %v818 = vsel %vm766, %v721, %v773
        %v819 = vsel %vm766, %v722, %v775
        %v820 = vsel %vm766, %v723, %v777
        %v821 = vsel %vm766, %v724, %v779
        %v822 = vsel %vm766, %v725, %v781
        %v823 = vsel %vm766, %v726, %v783
        %v824 = vsel %vm766, %v727, %v785
        %v825 = vsel %vm766, %v728, %v787
        %v826 = vsel %vm766, %v729, %v789
        %v827 = vsel %vm766, %v730, %v791
        %v828 = vsel %vm766, %v731, %v793
        %v829 = vsel %vm766, %v732, %v795
        %v830 = vsel %vm766, %v733, %v797
        %v831 = vld [vmem:[%s3] sm:$0xff]
        %vm848 = vcmask 1046528
        %v849 = vrot.slane %v815, 1
        %v850 = vrot.slane %v768, 1
        %v851 = vsel %vm848, %v849, %v850
        %v852 = vsel %vm848, %v850, %v849
        %v853 = vrot.slane %v816, 1
        %v854 = vrot.slane %v770, 1
        %v855 = vsel %vm848, %v853, %v854
        %v856 = vsel %vm848, %v854, %v853
        %v857 = vrot.slane %v817, 1
        %v858 = vrot.slane %v772, 1
        %v859 = vsel %vm848, %v857, %v858
        %v860 = vsel %vm848, %v858, %v857
        %v861 = vrot.slane %v818, 1
        %v862 = vrot.slane %v774, 1
        %v863 = vsel %vm848, %v861, %v862
        %v864 = vsel %vm848, %v862, %v861
        %v865 = vrot.slane %v819, 1
        %v866 = vrot.slane %v776, 1
        %v867 = vsel %vm848, %v865, %v866
        %v868 = vsel %vm848, %v866, %v865
        %v869 = vrot.slane %v820, 1
        %v870 = vrot.slane %v778, 1
        %v871 = vsel %vm848, %v869, %v870
        %v872 = vsel %vm848, %v870, %v869
        %v873 = vrot.slane %v821, 1
        %v874 = vrot.slane %v780, 1
        %v875 = vsel %vm848, %v873, %v874
        %v876 = vsel %vm848, %v874, %v873
        %v877 = vrot.slane %v822, 1
        %v878 = vrot.slane %v782, 1
        %v879 = vsel %vm848, %v877, %v878
        %v880 = vsel %vm848, %v878, %v877
        %v881 = vrot.slane %v823, 1
        %v882 = vrot.slane %v784, 1
        %v883 = vsel %vm848, %v881, %v882
        %v884 = vsel %vm848, %v882, %v881
        %v885 = vrot.slane %v824, 1
        %v886 = vrot.slane %v786, 1
        %v887 = vsel %vm848, %v885, %v886
        %v888 = vsel %vm848, %v886, %v885
        %v889 = vrot.slane %v825, 1
        %v890 = vrot.slane %v788, 1
        %v891 = vsel %vm848, %v889, %v890
        %v892 = vsel %vm848, %v890, %v889
        %v893 = vrot.slane %v826, 1
        %v894 = vrot.slane %v790, 1
        %v895 = vsel %vm848, %v893, %v894
        %v896 = vsel %vm848, %v894, %v893
        %v897 = vrot.slane %v827, 1
        %v898 = vrot.slane %v792, 1
        %v899 = vsel %vm848, %v897, %v898
        %v900 = vsel %vm848, %v898, %v897
        %v901 = vrot.slane %v828, 1
        %v902 = vrot.slane %v794, 1
        %v903 = vsel %vm848, %v901, %v902
        %v904 = vsel %vm848, %v902, %v901
        %v905 = vrot.slane %v829, 1
        %v906 = vrot.slane %v796, 1
        %v907 = vsel %vm848, %v905, %v906
        %v908 = vsel %vm848, %v906, %v905
        %v909 = vrot.slane %v830, 1
        %v910 = vrot.slane %v798, 1
        %v911 = vsel %vm848, %v909, %v910
        %v912 = vsel %vm848, %v910, %v909
        %s913 = scalar_lea.vmem %s3, 8
        %v914 = vld [vmem:[%s913] sm:$0xff]
        %vm915 = vcmask 64512
        %v916 = vsel %vm915, %v851, 0
        %v918 = vsel %vm915, %v852, 0
        %v920 = vsel %vm915, %v855, 0
        %v922 = vsel %vm915, %v856, 0
        %v924 = vsel %vm915, %v859, 0
        %v926 = vsel %vm915, %v860, 0
        %v928 = vsel %vm915, %v863, 0
        %v930 = vsel %vm915, %v864, 0
        %v932 = vsel %vm915, %v867, 0
        %v934 = vsel %vm915, %v868, 0
        %v936 = vsel %vm915, %v871, 0
        %v938 = vsel %vm915, %v872, 0
        %v940 = vsel %vm915, %v875, 0
        %v942 = vsel %vm915, %v876, 0
        %v944 = vsel %vm915, %v879, 0
        %v946 = vsel %vm915, %v880, 0
        %v948 = vsel %vm915, %v883, 0
        %v950 = vsel %vm915, %v884, 0
        %v952 = vsel %vm915, %v887, 0
        %v954 = vsel %vm915, %v888, 0
        %v956 = vsel %vm915, %v891, 0
        %v958 = vsel %vm915, %v892, 0
        %v960 = vsel %vm915, %v895, 0
        %v962 = vsel %vm915, %v896, 0
        %v964 = vsel %vm915, %v899, 0
        %v966 = vsel %vm915, %v900, 0
        %v968 = vsel %vm915, %v903, 0
        %v970 = vsel %vm915, %v904, 0
        %v972 = vsel %vm915, %v907, 0
        %v974 = vsel %vm915, %v908, 0
        %v976 = vsel %vm915, %v911, 0
        %v978 = vsel %vm915, %v912, 0
        %980 = vmatprep.subr.mxu0 0.0
        %981 = vmatpush1.msra.mxu0 %v914
        %982 = vmatprep.subr.mxu0 0.0
        %983 = vmatpush1.msra.mxu0 0.0
        %984 = vmatprep.subr.mxu0 0.0
        %985 = vmatpush1.msra.mxu0 0.0
        %986 = vmatprep.subr.mxu0 0.0
        %987 = vmatpush1.msra.mxu0 0.0
        %988 = vmatprep.subr.mxu0 0.0
        %989 = vmatpush1.msra.mxu0 0.0
        %990 = vmatprep.subr.mxu0 0.0
        %991 = vmatpush1.msra.mxu0 0.0
        %992 = vmatprep.subr.mxu0 0.0
        %993 = vmatpush1.msra.mxu0 0.0
        %994 = vmatprep.subr.mxu0 0.0
        %995 = vmatpush1.msra.mxu0 0.0
        %996 = vmatprep.subr.mxu0 0.0
        %997 = vmatpush1.msra.mxu0 0.0
        %998 = vmatprep.subr.mxu0 0.0
        %999 = vmatpush1.msra.mxu0 0.0
        %1000 = vmatprep.subr.mxu0 0.0
        %1001 = vmatpush1.msra.mxu0 0.0
        %1002 = vmatprep.subr.mxu0 0.0
        %1003 = vmatpush1.msra.mxu0 0.0
        %1004 = vmatprep.subr.mxu0 0.0
        %1005 = vmatpush1.msra.mxu0 0.0
        %1006 = vmatprep.subr.mxu0 0.0
        %1007 = vmatpush1.msra.mxu0 0.0
        %1008 = vmatprep.subr.mxu0 0.0
        %1009 = vmatpush1.msra.mxu0 0.0
        %1010 = vmatprep.subr.mxu0 0.0
        %1011 = vmatpush1.msra.mxu0 0.0
        %1012 = vmatprep.subr.mxu0 0.0
        %1013 = vmatpush1.msra.mxu0 0.0
        %1014 = vmatprep.subr.mxu0 0.0
        %1015 = vmatpush1.msra.mxu0 0.0
        %1016 = vmatprep.subr.mxu0 0.0
        %1017 = vmatpush1.msra.mxu0 0.0
        %1018 = vmatprep.subr.mxu0 0.0
        %1019 = vmatpush1.msra.mxu0 0.0
        %1020 = vmatprep.subr.mxu0 0.0
        %1021 = vmatpush1.msra.mxu0 0.0
        %1022 = vmatprep.subr.mxu0 0.0
        %1023 = vmatpush1.msra.mxu0 0.0
        %1024 = vmatprep.subr.mxu0 0.0
        %1025 = vmatpush1.msra.mxu0 0.0
        %1026 = vmatprep.subr.mxu0 0.0
        %1027 = vmatpush1.msra.mxu0 0.0
        %1028 = vmatprep.subr.mxu0 0.0
        %1029 = vmatpush1.msra.mxu0 0.0
        %1030 = vmatprep.subr.mxu0 0.0
        %1031 = vmatpush1.msra.mxu0 0.0
        %1032 = vmatprep.subr.mxu0 0.0
        %1033 = vmatpush1.msra.mxu0 0.0
        %1034 = vmatprep.subr.mxu0 0.0
        %1035 = vmatpush1.msra.mxu0 0.0
        %1036 = vmatprep.subr.mxu0 0.0
        %1037 = vmatpush1.msra.mxu0 0.0
        %1038 = vmatprep.subr.mxu0 0.0
        %1039 = vmatpush1.msra.mxu0 0.0
        %1040 = vmatprep.subr.mxu0 0.0
        %1041 = vmatpush1.msra.mxu0 0.0
        %1042 = vmatprep.subr.mxu0 0.0
        %1043 = vmatpush1.msra.mxu0 0.0
        %1044 = vmatprep.mubr.f32.mxu0 0.0
        %1045 = vmatmul.mubr.f32.gmra.mrb[0].mxu0 %v916
        %v1046 = vpop.f32.mrb[0].mxu0
        %v1047 = vadd.f32 0.0, %v1046
        %v1048 = vpop.f32.mrb[0].mxu0
        %1049 = vmatprep.mubr.f32.mxu0 0.0
        %1050 = vmatmul.mubr.f32.gmra.mrb[0].mxu0 %v918
        %v1051 = vpop.f32.mrb[0].mxu0
        %v1052 = vadd.f32 0.0, %v1051
        %v1053 = vpop.f32.mrb[0].mxu0
        %1054 = vmatprep.mubr.f32.mxu0 0.0
        %1055 = vmatmul.mubr.f32.gmra.mrb[0].mxu0 %v920
        %v1056 = vpop.f32.mrb[0].mxu0
        %v1057 = vadd.f32 0.0, %v1056
        %v1058 = vpop.f32.mrb[0].mxu0
        %1059 = vmatprep.mubr.f32.mxu0 0.0
        %1060 = vmatmul.mubr.f32.gmra.mrb[0].mxu0 %v922
        %v1061 = vpop.f32.mrb[0].mxu0
        %v1062 = vadd.f32 0.0, %v1061
        %v1063 = vpop.f32.mrb[0].mxu0
        %1064 = vmatprep.mubr.f32.mxu0 0.0
        %1065 = vmatmul.mubr.f32.gmra.mrb[0].mxu0 %v924
        %v1066 = vpop.f32.mrb[0].mxu0
        %v1067 = vadd.f32 0.0, %v1066
        %v1068 = vpop.f32.mrb[0].mxu0
        %1069 = vmatprep.mubr.f32.mxu0 0.0
        %1070 = vmatmul.mubr.f32.gmra.mrb[0].mxu0 %v926
        %v1071 = vpop.f32.mrb[0].mxu0
        %v1072 = vadd.f32 0.0, %v1071
        %v1073 = vpop.f32.mrb[0].mxu0
        %1074 = vmatprep.mubr.f32.mxu0 0.0
        %1075 = vmatmul.mubr.f32.gmra.mrb[0].mxu0 %v928
        %v1076 = vpop.f32.mrb[0].mxu0
        %v1077 = vadd.f32 0.0, %v1076
        %v1078 = vpop.f32.mrb[0].mxu0
        %1079 = vmatprep.mubr.f32.mxu0 0.0
        %1080 = vmatmul.mubr.f32.gmra.mrb[0].mxu0 %v930
        %v1081 = vpop.f32.mrb[0].mxu0
        %v1082 = vadd.f32 0.0, %v1081
        %v1083 = vpop.f32.mrb[0].mxu0
        %1084 = vmatprep.mubr.f32.mxu0 0.0
        %1085 = vmatmul.mubr.f32.gmra.mrb[0].mxu0 %v932
        %v1086 = vpop.f32.mrb[0].mxu0
        %v1087 = vadd.f32 0.0, %v1086
        %v1088 = vpop.f32.mrb[0].mxu0
        %1089 = vmatprep.mubr.f32.mxu0 0.0
        %1090 = vmatmul.mubr.f32.gmra.mrb[0].mxu0 %v934
        %v1091 = vpop.f32.mrb[0].mxu0
        %v1092 = vadd.f32 0.0, %v1091
        %v1093 = vpop.f32.mrb[0].mxu0
        %1094 = vmatprep.mubr.f32.mxu0 0.0
        %1095 = vmatmul.mubr.f32.gmra.mrb[0].mxu0 %v936
        %v1096 = vpop.f32.mrb[0].mxu0
        %v1097 = vadd.f32 0.0, %v1096
        %v1098 = vpop.f32.mrb[0].mxu0
        %1099 = vmatprep.mubr.f32.mxu0 0.0
        %1100 = vmatmul.mubr.f32.gmra.mrb[0].mxu0 %v938
        %v1101 = vpop.f32.mrb[0].mxu0
        %v1102 = vadd.f32 0.0, %v1101
        %v1103 = vpop.f32.mrb[0].mxu0
        %1104 = vmatprep.mubr.f32.mxu0 0.0
        %1105 = vmatmul.mubr.f32.gmra.mrb[0].mxu0 %v940
        %v1106 = vpop.f32.mrb[0].mxu0
        %v1107 = vadd.f32 0.0, %v1106
        %v1108 = vpop.f32.mrb[0].mxu0
        %1109 = vmatprep.mubr.f32.mxu0 0.0
        %1110 = vmatmul.mubr.f32.gmra.mrb[0].mxu0 %v942
        %v1111 = vpop.f32.mrb[0].mxu0
        %v1112 = vadd.f32 0.0, %v1111
        %v1113 = vpop.f32.mrb[0].mxu0
        %1114 = vmatprep.mubr.f32.mxu0 0.0
        %1115 = vmatmul.mubr.f32.gmra.mrb[0].mxu0 %v944
        %v1116 = vpop.f32.mrb[0].mxu0
        %v1117 = vadd.f32 0.0, %v1116
        %v1118 = vpop.f32.mrb[0].mxu0
        %1119 = vmatprep.mubr.f32.mxu0 0.0
        %1120 = vmatmul.mubr.f32.gmra.mrb[0].mxu0 %v946
        %v1121 = vpop.f32.mrb[0].mxu0
        %v1122 = vadd.f32 0.0, %v1121
        %v1123 = vpop.f32.mrb[0].mxu0
        %1124 = vmatprep.mubr.f32.mxu0 0.0
        %1125 = vmatmul.mubr.f32.gmra.mrb[0].mxu0 %v948
        %v1126 = vpop.f32.mrb[0].mxu0
        %v1127 = vadd.f32 0.0, %v1126
        %v1128 = vpop.f32.mrb[0].mxu0
        %1129 = vmatprep.mubr.f32.mxu0 0.0
        %1130 = vmatmul.mubr.f32.gmra.mrb[0].mxu0 %v950
        %v1131 = vpop.f32.mrb[0].mxu0
        %v1132 = vadd.f32 0.0, %v1131
        %v1133 = vpop.f32.mrb[0].mxu0
        %1134 = vmatprep.mubr.f32.mxu0 0.0
        %1135 = vmatmul.mubr.f32.gmra.mrb[0].mxu0 %v952
        %v1136 = vpop.f32.mrb[0].mxu0
        %v1137 = vadd.f32 0.0, %v1136
        %v1138 = vpop.f32.mrb[0].mxu0
        %1139 = vmatprep.mubr.f32.mxu0 0.0
        %1140 = vmatmul.mubr.f32.gmra.mrb[0].mxu0 %v954
        %v1141 = vpop.f32.mrb[0].mxu0
        %v1142 = vadd.f32 0.0, %v1141
        %v1143 = vpop.f32.mrb[0].mxu0
        %1144 = vmatprep.mubr.f32.mxu0 0.0
        %1145 = vmatmul.mubr.f32.gmra.mrb[0].mxu0 %v956
        %v1146 = vpop.f32.mrb[0].mxu0
        %v1147 = vadd.f32 0.0, %v1146
        %v1148 = vpop.f32.mrb[0].mxu0
        %1149 = vmatprep.mubr.f32.mxu0 0.0
        %1150 = vmatmul.mubr.f32.gmra.mrb[0].mxu0 %v958
        %v1151 = vpop.f32.mrb[0].mxu0
        %v1152 = vadd.f32 0.0, %v1151
        %v1153 = vpop.f32.mrb[0].mxu0
        %1154 = vmatprep.mubr.f32.mxu0 0.0
        %1155 = vmatmul.mubr.f32.gmra.mrb[0].mxu0 %v960
        %v1156 = vpop.f32.mrb[0].mxu0
        %v1157 = vadd.f32 0.0, %v1156
        %v1158 = vpop.f32.mrb[0].mxu0
        %1159 = vmatprep.mubr.f32.mxu0 0.0
        %1160 = vmatmul.mubr.f32.gmra.mrb[0].mxu0 %v962
        %v1161 = vpop.f32.mrb[0].mxu0
        %v1162 = vadd.f32 0.0, %v1161
        %v1163 = vpop.f32.mrb[0].mxu0
        %1164 = vmatprep.mubr.f32.mxu0 0.0
        %1165 = vmatmul.mubr.f32.gmra.mrb[0].mxu0 %v964
        %v1166 = vpop.f32.mrb[0].mxu0
        %v1167 = vadd.f32 0.0, %v1166
        %v1168 = vpop.f32.mrb[0].mxu0
        %1169 = vmatprep.mubr.f32.mxu0 0.0
        %1170 = vmatmul.mubr.f32.gmra.mrb[0].mxu0 %v966
        %v1171 = vpop.f32.mrb[0].mxu0
        %v1172 = vadd.f32 0.0, %v1171
        %v1173 = vpop.f32.mrb[0].mxu0
        %1174 = vmatprep.mubr.f32.mxu0 0.0
        %1175 = vmatmul.mubr.f32.gmra.mrb[0].mxu0 %v968
        %v1176 = vpop.f32.mrb[0].mxu0
        %v1177 = vadd.f32 0.0, %v1176
        %v1178 = vpop.f32.mrb[0].mxu0
        %1179 = vmatprep.mubr.f32.mxu0 0.0
        %1180 = vmatmul.mubr.f32.gmra.mrb[0].mxu0 %v970
        %v1181 = vpop.f32.mrb[0].mxu0
        %v1182 = vadd.f32 0.0, %v1181
        %v1183 = vpop.f32.mrb[0].mxu0
        %1184 = vmatprep.mubr.f32.mxu0 0.0
        %1185 = vmatmul.mubr.f32.gmra.mrb[0].mxu0 %v972
        %v1186 = vpop.f32.mrb[0].mxu0
        %v1187 = vadd.f32 0.0, %v1186
        %v1188 = vpop.f32.mrb[0].mxu0
        %1189 = vmatprep.mubr.f32.mxu0 0.0
        %1190 = vmatmul.mubr.f32.gmra.mrb[0].mxu0 %v974
        %v1191 = vpop.f32.mrb[0].mxu0
        %v1192 = vadd.f32 0.0, %v1191
        %v1193 = vpop.f32.mrb[0].mxu0
        %1194 = vmatprep.mubr.f32.mxu0 0.0
        %1195 = vmatmul.mubr.f32.gmra.mrb[0].mxu0 %v976
        %v1196 = vpop.f32.mrb[0].mxu0
        %v1197 = vadd.f32 0.0, %v1196
        %v1198 = vpop.f32.mrb[0].mxu0
        %1199 = vmatprep.mubr.f32.mxu0 0.0
        %1200 = vmatmul.mubr.f32.gmra.mrb[0].mxu0 %v978
        %v1201 = vpop.f32.mrb[0].mxu0
        %v1202 = vadd.f32 0.0, %v1201
        %v1203 = vpop.f32.mrb[0].mxu0
        %1204 = vdwg.mxu0
        %v1205 = vsel %vm915, %v815, 0
        %v1207 = vsel %vm915, %v768, 0
        %v1209 = vsel %vm915, %v816, 0
        %v1211 = vsel %vm915, %v770, 0
        %v1213 = vsel %vm915, %v817, 0
        %v1215 = vsel %vm915, %v772, 0
        %v1217 = vsel %vm915, %v818, 0
        %v1219 = vsel %vm915, %v774, 0
        %v1221 = vsel %vm915, %v819, 0
        %v1223 = vsel %vm915, %v776, 0
        %v1225 = vsel %vm915, %v820, 0
        %v1227 = vsel %vm915, %v778, 0
        %v1229 = vsel %vm915, %v821, 0
        %v1231 = vsel %vm915, %v780, 0
        %v1233 = vsel %vm915, %v822, 0
        %v1235 = vsel %vm915, %v782, 0
        %v1237 = vsel %vm915, %v823, 0
        %v1239 = vsel %vm915, %v784, 0
        %v1241 = vsel %vm915, %v824, 0
        %v1243 = vsel %vm915, %v786, 0
        %v1245 = vsel %vm915, %v825, 0
        %v1247 = vsel %vm915, %v788, 0
        %v1249 = vsel %vm915, %v826, 0
        %v1251 = vsel %vm915, %v790, 0
        %v1253 = vsel %vm915, %v827, 0
        %v1255 = vsel %vm915, %v792, 0
        %v1257 = vsel %vm915, %v828, 0
        %v1259 = vsel %vm915, %v794, 0
        %v1261 = vsel %vm915, %v829, 0
        %v1263 = vsel %vm915, %v796, 0
        %v1265 = vsel %vm915, %v830, 0
        %v1267 = vsel %vm915, %v798, 0
        %1269 = vmatprep.subr.mxu0 0.0
        %1270 = vmatpush1.msra.mxu0 %v831
        %1271 = vmatprep.subr.mxu0 0.0
        %1272 = vmatpush1.msra.mxu0 0.0
        %1273 = vmatprep.subr.mxu0 0.0
        %1274 = vmatpush1.msra.mxu0 0.0
        %1275 = vmatprep.subr.mxu0 0.0
        %1276 = vmatpush1.msra.mxu0 0.0
        %1277 = vmatprep.subr.mxu0 0.0
        %1278 = vmatpush1.msra.mxu0 0.0
        %1279 = vmatprep.subr.mxu0 0.0
        %1280 = vmatpush1.msra.mxu0 0.0
        %1281 = vmatprep.subr.mxu0 0.0
        %1282 = vmatpush1.msra.mxu0 0.0
        %1283 = vmatprep.subr.mxu0 0.0
        %1284 = vmatpush1.msra.mxu0 0.0
        %1285 = vmatprep.subr.mxu0 0.0
        %1286 = vmatpush1.msra.mxu0 0.0
        %1287 = vmatprep.subr.mxu0 0.0
        %1288 = vmatpush1.msra.mxu0 0.0
        %1289 = vmatprep.subr.mxu0 0.0
        %1290 = vmatpush1.msra.mxu0 0.0
        %1291 = vmatprep.subr.mxu0 0.0
        %1292 = vmatpush1.msra.mxu0 0.0
        %1293 = vmatprep.subr.mxu0 0.0
        %1294 = vmatpush1.msra.mxu0 0.0
        %1295 = vmatprep.subr.mxu0 0.0
        %1296 = vmatpush1.msra.mxu0 0.0
        %1297 = vmatprep.subr.mxu0 0.0
        %1298 = vmatpush1.msra.mxu0 0.0
        %1299 = vmatprep.subr.mxu0 0.0
        %1300 = vmatpush1.msra.mxu0 0.0
        %1301 = vmatprep.subr.mxu0 0.0
        %1302 = vmatpush1.msra.mxu0 0.0
        %1303 = vmatprep.subr.mxu0 0.0
        %1304 = vmatpush1.msra.mxu0 0.0
        %1305 = vmatprep.subr.mxu0 0.0
        %1306 = vmatpush1.msra.mxu0 0.0
        %1307 = vmatprep.subr.mxu0 0.0
        %1308 = vmatpush1.msra.mxu0 0.0
        %1309 = vmatprep.subr.mxu0 0.0
        %1310 = vmatpush1.msra.mxu0 0.0
        %1311 = vmatprep.subr.mxu0 0.0
        %1312 = vmatpush1.msra.mxu0 0.0
        %1313 = vmatprep.subr.mxu0 0.0
        %1314 = vmatpush1.msra.mxu0 0.0
        %1315 = vmatprep.subr.mxu0 0.0
        %1316 = vmatpush1.msra.mxu0 0.0
        %1317 = vmatprep.subr.mxu0 0.0
        %1318 = vmatpush1.msra.mxu0 0.0
        %1319 = vmatprep.subr.mxu0 0.0
        %1320 = vmatpush1.msra.mxu0 0.0
        %1321 = vmatprep.subr.mxu0 0.0
        %1322 = vmatpush1.msra.mxu0 0.0
        %1323 = vmatprep.subr.mxu0 0.0
        %1324 = vmatpush1.msra.mxu0 0.0
        %1325 = vmatprep.subr.mxu0 0.0
        %1326 = vmatpush1.msra.mxu0 0.0
        %1327 = vmatprep.subr.mxu0 0.0
        %1328 = vmatpush1.msra.mxu0 0.0
        %1329 = vmatprep.subr.mxu0 0.0
        %1330 = vmatpush1.msra.mxu0 0.0
        %1331 = vmatprep.subr.mxu0 0.0
        %1332 = vmatpush1.msra.mxu0 0.0
        %1333 = vmatprep.mubr.f32.mxu0 0.0
        %1334 = vmatmul.mubr.f32.gmra.mrb[0].mxu0 %v1205
        %v1335 = vpop.f32.mrb[0].mxu0
        %v1336 = vadd.f32 %v1047, %v1335
        %v1337 = vpop.f32.mrb[0].mxu0
        %1338 = vmatprep.mubr.f32.mxu0 0.0
        %1339 = vmatmul.mubr.f32.gmra.mrb[0].mxu0 %v1207
        %v1340 = vpop.f32.mrb[0].mxu0
        %v1341 = vadd.f32 %v1052, %v1340
        %v1342 = vpop.f32.mrb[0].mxu0
        %1343 = vmatprep.mubr.f32.mxu0 0.0
        %1344 = vmatmul.mubr.f32.gmra.mrb[0].mxu0 %v1209
        %v1345 = vpop.f32.mrb[0].mxu0
        %v1346 = vadd.f32 %v1057, %v1345
        %v1347 = vpop.f32.mrb[0].mxu0
        %1348 = vmatprep.mubr.f32.mxu0 0.0
        %1349 = vmatmul.mubr.f32.gmra.mrb[0].mxu0 %v1211
        %v1350 = vpop.f32.mrb[0].mxu0
        %v1351 = vadd.f32 %v1062, %v1350
        %v1352 = vpop.f32.mrb[0].mxu0
        %1353 = vmatprep.mubr.f32.mxu0 0.0
        %1354 = vmatmul.mubr.f32.gmra.mrb[0].mxu0 %v1213
        %v1355 = vpop.f32.mrb[0].mxu0
        %v1356 = vadd.f32 %v1067, %v1355
        %v1357 = vpop.f32.mrb[0].mxu0
        %1358 = vmatprep.mubr.f32.mxu0 0.0
        %1359 = vmatmul.mubr.f32.gmra.mrb[0].mxu0 %v1215
        %v1360 = vpop.f32.mrb[0].mxu0
        %v1361 = vadd.f32 %v1072, %v1360
        %v1362 = vpop.f32.mrb[0].mxu0
        %1363 = vmatprep.mubr.f32.mxu0 0.0
        %1364 = vmatmul.mubr.f32.gmra.mrb[0].mxu0 %v1217
        %v1365 = vpop.f32.mrb[0].mxu0
        %v1366 = vadd.f32 %v1077, %v1365
        %v1367 = vpop.f32.mrb[0].mxu0
        %1368 = vmatprep.mubr.f32.mxu0 0.0
        %1369 = vmatmul.mubr.f32.gmra.mrb[0].mxu0 %v1219
        %v1370 = vpop.f32.mrb[0].mxu0
        %v1371 = vadd.f32 %v1082, %v1370
        %v1372 = vpop.f32.mrb[0].mxu0
        %1373 = vmatprep.mubr.f32.mxu0 0.0
        %1374 = vmatmul.mubr.f32.gmra.mrb[0].mxu0 %v1221
        %v1375 = vpop.f32.mrb[0].mxu0
        %v1376 = vadd.f32 %v1087, %v1375
        %v1377 = vpop.f32.mrb[0].mxu0
        %1378 = vmatprep.mubr.f32.mxu0 0.0
        %1379 = vmatmul.mubr.f32.gmra.mrb[0].mxu0 %v1223
        %v1380 = vpop.f32.mrb[0].mxu0
        %v1381 = vadd.f32 %v1092, %v1380
        %v1382 = vpop.f32.mrb[0].mxu0
        %1383 = vmatprep.mubr.f32.mxu0 0.0
        %1384 = vmatmul.mubr.f32.gmra.mrb[0].mxu0 %v1225
        %v1385 = vpop.f32.mrb[0].mxu0
        %v1386 = vadd.f32 %v1097, %v1385
        %v1387 = vpop.f32.mrb[0].mxu0
        %1388 = vmatprep.mubr.f32.mxu0 0.0
        %1389 = vmatmul.mubr.f32.gmra.mrb[0].mxu0 %v1227
        %v1390 = vpop.f32.mrb[0].mxu0
        %v1391 = vadd.f32 %v1102, %v1390
        %v1392 = vpop.f32.mrb[0].mxu0
        %1393 = vmatprep.mubr.f32.mxu0 0.0
        %1394 = vmatmul.mubr.f32.gmra.mrb[0].mxu0 %v1229
        %v1395 = vpop.f32.mrb[0].mxu0
        %v1396 = vadd.f32 %v1107, %v1395
        %v1397 = vpop.f32.mrb[0].mxu0
        %1398 = vmatprep.mubr.f32.mxu0 0.0
        %1399 = vmatmul.mubr.f32.gmra.mrb[0].mxu0 %v1231
        %v1400 = vpop.f32.mrb[0].mxu0
        %v1401 = vadd.f32 %v1112, %v1400
        %v1402 = vpop.f32.mrb[0].mxu0
        %1403 = vmatprep.mubr.f32.mxu0 0.0
        %1404 = vmatmul.mubr.f32.gmra.mrb[0].mxu0 %v1233
        %v1405 = vpop.f32.mrb[0].mxu0
        %v1406 = vadd.f32 %v1117, %v1405
        %v1407 = vpop.f32.mrb[0].mxu0
        %1408 = vmatprep.mubr.f32.mxu0 0.0
        %1409 = vmatmul.mubr.f32.gmra.mrb[0].mxu0 %v1235
        %v1410 = vpop.f32.mrb[0].mxu0
        %v1411 = vadd.f32 %v1122, %v1410
        %v1412 = vpop.f32.mrb[0].mxu0
        %1413 = vmatprep.mubr.f32.mxu0 0.0
        %1414 = vmatmul.mubr.f32.gmra.mrb[0].mxu0 %v1237
        %v1415 = vpop.f32.mrb[0].mxu0
        %v1416 = vadd.f32 %v1127, %v1415
        %v1417 = vpop.f32.mrb[0].mxu0
        %1418 = vmatprep.mubr.f32.mxu0 0.0
        %1419 = vmatmul.mubr.f32.gmra.mrb[0].mxu0 %v1239
        %v1420 = vpop.f32.mrb[0].mxu0
        %v1421 = vadd.f32 %v1132, %v1420
        %v1422 = vpop.f32.mrb[0].mxu0
        %1423 = vmatprep.mubr.f32.mxu0 0.0
        %1424 = vmatmul.mubr.f32.gmra.mrb[0].mxu0 %v1241
        %v1425 = vpop.f32.mrb[0].mxu0
        %v1426 = vadd.f32 %v1137, %v1425
        %v1427 = vpop.f32.mrb[0].mxu0
        %1428 = vmatprep.mubr.f32.mxu0 0.0
        %1429 = vmatmul.mubr.f32.gmra.mrb[0].mxu0 %v1243
        %v1430 = vpop.f32.mrb[0].mxu0
        %v1431 = vadd.f32 %v1142, %v1430
        %v1432 = vpop.f32.mrb[0].mxu0
        %1433 = vmatprep.mubr.f32.mxu0 0.0
        %1434 = vmatmul.mubr.f32.gmra.mrb[0].mxu0 %v1245
        %v1435 = vpop.f32.mrb[0].mxu0
        %v1436 = vadd.f32 %v1147, %v1435
        %v1437 = vpop.f32.mrb[0].mxu0
        %1438 = vmatprep.mubr.f32.mxu0 0.0
        %1439 = vmatmul.mubr.f32.gmra.mrb[0].mxu0 %v1247
        %v1440 = vpop.f32.mrb[0].mxu0
        %v1441 = vadd.f32 %v1152, %v1440
        %v1442 = vpop.f32.mrb[0].mxu0
        %1443 = vmatprep.mubr.f32.mxu0 0.0
        %1444 = vmatmul.mubr.f32.gmra.mrb[0].mxu0 %v1249
        %v1445 = vpop.f32.mrb[0].mxu0
        %v1446 = vadd.f32 %v1157, %v1445
        %v1447 = vpop.f32.mrb[0].mxu0
        %1448 = vmatprep.mubr.f32.mxu0 0.0
        %1449 = vmatmul.mubr.f32.gmra.mrb[0].mxu0 %v1251
        %v1450 = vpop.f32.mrb[0].mxu0
        %v1451 = vadd.f32 %v1162, %v1450
        %v1452 = vpop.f32.mrb[0].mxu0
        %1453 = vmatprep.mubr.f32.mxu0 0.0
        %1454 = vmatmul.mubr.f32.gmra.mrb[0].mxu0 %v1253
        %v1455 = vpop.f32.mrb[0].mxu0
        %v1456 = vadd.f32 %v1167, %v1455
        %v1457 = vpop.f32.mrb[0].mxu0
        %1458 = vmatprep.mubr.f32.mxu0 0.0
        %1459 = vmatmul.mubr.f32.gmra.mrb[0].mxu0 %v1255
        %v1460 = vpop.f32.mrb[0].mxu0
        %v1461 = vadd.f32 %v1172, %v1460
        %v1462 = vpop.f32.mrb[0].mxu0
        %1463 = vmatprep.mubr.f32.mxu0 0.0
        %1464 = vmatmul.mubr.f32.gmra.mrb[0].mxu0 %v1257
        %v1465 = vpop.f32.mrb[0].mxu0
        %v1466 = vadd.f32 %v1177, %v1465
        %v1467 = vpop.f32.mrb[0].mxu0
        %1468 = vmatprep.mubr.f32.mxu0 0.0
        %1469 = vmatmul.mubr.f32.gmra.mrb[0].mxu0 %v1259
        %v1470 = vpop.f32.mrb[0].mxu0
        %v1471 = vadd.f32 %v1182, %v1470
        %v1472 = vpop.f32.mrb[0].mxu0
        %1473 = vmatprep.mubr.f32.mxu0 0.0
        %1474 = vmatmul.mubr.f32.gmra.mrb[0].mxu0 %v1261
        %v1475 = vpop.f32.mrb[0].mxu0
        %v1476 = vadd.f32 %v1187, %v1475
        %v1477 = vpop.f32.mrb[0].mxu0
        %1478 = vmatprep.mubr.f32.mxu0 0.0
        %1479 = vmatmul.mubr.f32.gmra.mrb[0].mxu0 %v1263
        %v1480 = vpop.f32.mrb[0].mxu0
        %v1481 = vadd.f32 %v1192, %v1480
        %v1482 = vpop.f32.mrb[0].mxu0
        %1483 = vmatprep.mubr.f32.mxu0 0.0
        %1484 = vmatmul.mubr.f32.gmra.mrb[0].mxu0 %v1265
        %v1485 = vpop.f32.mrb[0].mxu0
        %v1486 = vadd.f32 %v1197, %v1485
        %v1487 = vpop.f32.mrb[0].mxu0
        %1488 = vmatprep.mubr.f32.mxu0 0.0
        %1489 = vmatmul.mubr.f32.gmra.mrb[0].mxu0 %v1267
        %v1490 = vpop.f32.mrb[0].mxu0
        %v1491 = vadd.f32 %v1202, %v1490
        %v1492 = vpop.f32.mrb[0].mxu0
        %1493 = vdwg.mxu0
        %vm1494 = vcmask 1045504
        %v1495 = vrot.slane %v815, 2
        %v1496 = vrot.slane %v768, 2
        %v1497 = vsel %vm1494, %v1495, %v1496
        %v1498 = vsel %vm1494, %v1496, %v1495
        %v1499 = vrot.slane %v816, 2
        %v1500 = vrot.slane %v770, 2
        %v1501 = vsel %vm1494, %v1499, %v1500
        %v1502 = vsel %vm1494, %v1500, %v1499
        %v1503 = vrot.slane %v817, 2
        %v1504 = vrot.slane %v772, 2
        %v1505 = vsel %vm1494, %v1503, %v1504
        %v1506 = vsel %vm1494, %v1504, %v1503
        %v1507 = vrot.slane %v818, 2
        %v1508 = vrot.slane %v774, 2
        %v1509 = vsel %vm1494, %v1507, %v1508
        %v1510 = vsel %vm1494, %v1508, %v1507
        %v1511 = vrot.slane %v819, 2
        %v1512 = vrot.slane %v776, 2
        %v1513 = vsel %vm1494, %v1511, %v1512
        %v1514 = vsel %vm1494, %v1512, %v1511
        %v1515 = vrot.slane %v820, 2
        %v1516 = vrot.slane %v778, 2
        %v1517 = vsel %vm1494, %v1515, %v1516
        %v1518 = vsel %vm1494, %v1516, %v1515
        %v1519 = vrot.slane %v821, 2
        %v1520 = vrot.slane %v780, 2
        %v1521 = vsel %vm1494, %v1519, %v1520
        %v1522 = vsel %vm1494, %v1520, %v1519
        %v1523 = vrot.slane %v822, 2
        %v1524 = vrot.slane %v782, 2
        %v1525 = vsel %vm1494, %v1523, %v1524
        %v1526 = vsel %vm1494, %v1524, %v1523
        %v1527 = vrot.slane %v823, 2
        %v1528 = vrot.slane %v784, 2
        %v1529 = vsel %vm1494, %v1527, %v1528
        %v1530 = vsel %vm1494, %v1528, %v1527
        %v1531 = vrot.slane %v824, 2
        %v1532 = vrot.slane %v786, 2
        %v1533 = vsel %vm1494, %v1531, %v1532
        %v1534 = vsel %vm1494, %v1532, %v1531
        %v1535 = vrot.slane %v825, 2
        %v1536 = vrot.slane %v788, 2
        %v1537 = vsel %vm1494, %v1535, %v1536
        %v1538 = vsel %vm1494, %v1536, %v1535
        %v1539 = vrot.slane %v826, 2
        %v1540 = vrot.slane %v790, 2
        %v1541 = vsel %vm1494, %v1539, %v1540
        %v1542 = vsel %vm1494, %v1540, %v1539
        %v1543 = vrot.slane %v827, 2
        %v1544 = vrot.slane %v792, 2
        %v1545 = vsel %vm1494, %v1543, %v1544
        %v1546 = vsel %vm1494, %v1544, %v1543
        %v1547 = vrot.slane %v828, 2
        %v1548 = vrot.slane %v794, 2
        %v1549 = vsel %vm1494, %v1547, %v1548
        %v1550 = vsel %vm1494, %v1548, %v1547
        %v1551 = vrot.slane %v829, 2
        %v1552 = vrot.slane %v796, 2
        %v1553 = vsel %vm1494, %v1551, %v1552
        %v1554 = vsel %vm1494, %v1552, %v1551
        %v1555 = vrot.slane %v830, 2
        %v1556 = vrot.slane %v798, 2
        %v1557 = vsel %vm1494, %v1555, %v1556
        %v1558 = vsel %vm1494, %v1556, %v1555
        %s1559 = scalar_lea.vmem %s3, 16
        %v1560 = vld [vmem:[%s1559] sm:$0xff]
        %v1561 = vsel %vm915, %v1497, 0
        %v1563 = vsel %vm915, %v1498, 0
        %v1565 = vsel %vm915, %v1501, 0
        %v1567 = vsel %vm915, %v1502, 0
        %v1569 = vsel %vm915, %v1505, 0
        %v1571 = vsel %vm915, %v1506, 0
        %v1573 = vsel %vm915, %v1509, 0
        %v1575 = vsel %vm915, %v1510, 0
        %v1577 = vsel %vm915, %v1513, 0
        %v1579 = vsel %vm915, %v1514, 0
        %v1581 = vsel %vm915, %v1517, 0
        %v1583 = vsel %vm915, %v1518, 0
        %v1585 = vsel %vm915, %v1521, 0
        %v1587 = vsel %vm915, %v1522, 0
        %v1589 = vsel %vm915, %v1525, 0
        %v1591 = vsel %vm915, %v1526, 0
        %v1593 = vsel %vm915, %v1529, 0
        %v1595 = vsel %vm915, %v1530, 0
        %v1597 = vsel %vm915, %v1533, 0
        %v1599 = vsel %vm915, %v1534, 0
        %v1601 = vsel %vm915, %v1537, 0
        %v1603 = vsel %vm915, %v1538, 0
        %v1605 = vsel %vm915, %v1541, 0
        %v1607 = vsel %vm915, %v1542, 0
        %v1609 = vsel %vm915, %v1545, 0
        %v1611 = vsel %vm915, %v1546, 0
        %v1613 = vsel %vm915, %v1549, 0
        %v1615 = vsel %vm915, %v1550, 0
        %v1617 = vsel %vm915, %v1553, 0
        %v1619 = vsel %vm915, %v1554, 0
        %v1621 = vsel %vm915, %v1557, 0
        %v1623 = vsel %vm915, %v1558, 0
        %1625 = vmatprep.subr.mxu0 0.0
        %1626 = vmatpush1.msra.mxu0 %v1560
        %1627 = vmatprep.subr.mxu0 0.0
        %1628 = vmatpush1.msra.mxu0 0.0
        %1629 = vmatprep.subr.mxu0 0.0
        %1630 = vmatpush1.msra.mxu0 0.0
        %1631 = vmatprep.subr.mxu0 0.0
        %1632 = vmatpush1.msra.mxu0 0.0
        %1633 = vmatprep.subr.mxu0 0.0
        %1634 = vmatpush1.msra.mxu0 0.0
        %1635 = vmatprep.subr.mxu0 0.0
        %1636 = vmatpush1.msra.mxu0 0.0
        %1637 = vmatprep.subr.mxu0 0.0
        %1638 = vmatpush1.msra.mxu0 0.0
        %1639 = vmatprep.subr.mxu0 0.0
        %1640 = vmatpush1.msra.mxu0 0.0
        %1641 = vmatprep.subr.mxu0 0.0
        %1642 = vmatpush1.msra.mxu0 0.0
        %1643 = vmatprep.subr.mxu0 0.0
        %1644 = vmatpush1.msra.mxu0 0.0
        %1645 = vmatprep.subr.mxu0 0.0
        %1646 = vmatpush1.msra.mxu0 0.0
        %1647 = vmatprep.subr.mxu0 0.0
        %1648 = vmatpush1.msra.mxu0 0.0
        %1649 = vmatprep.subr.mxu0 0.0
        %1650 = vmatpush1.msra.mxu0 0.0
        %1651 = vmatprep.subr.mxu0 0.0
        %1652 = vmatpush1.msra.mxu0 0.0
        %1653 = vmatprep.subr.mxu0 0.0
        %1654 = vmatpush1.msra.mxu0 0.0
        %1655 = vmatprep.subr.mxu0 0.0
        %1656 = vmatpush1.msra.mxu0 0.0
        %1657 = vmatprep.subr.mxu0 0.0
        %1658 = vmatpush1.msra.mxu0 0.0
        %1659 = vmatprep.subr.mxu0 0.0
        %1660 = vmatpush1.msra.mxu0 0.0
        %1661 = vmatprep.subr.mxu0 0.0
        %1662 = vmatpush1.msra.mxu0 0.0
        %1663 = vmatprep.subr.mxu0 0.0
        %1664 = vmatpush1.msra.mxu0 0.0
        %1665 = vmatprep.subr.mxu0 0.0
        %1666 = vmatpush1.msra.mxu0 0.0
        %1667 = vmatprep.subr.mxu0 0.0
        %1668 = vmatpush1.msra.mxu0 0.0
        %1669 = vmatprep.subr.mxu0 0.0
        %1670 = vmatpush1.msra.mxu0 0.0
        %1671 = vmatprep.subr.mxu0 0.0
        %1672 = vmatpush1.msra.mxu0 0.0
        %1673 = vmatprep.subr.mxu0 0.0
        %1674 = vmatpush1.msra.mxu0 0.0
        %1675 = vmatprep.subr.mxu0 0.0
        %1676 = vmatpush1.msra.mxu0 0.0
        %1677 = vmatprep.subr.mxu0 0.0
        %1678 = vmatpush1.msra.mxu0 0.0
        %1679 = vmatprep.subr.mxu0 0.0
        %1680 = vmatpush1.msra.mxu0 0.0
        %1681 = vmatprep.subr.mxu0 0.0
        %1682 = vmatpush1.msra.mxu0 0.0
        %1683 = vmatprep.subr.mxu0 0.0
        %1684 = vmatpush1.msra.mxu0 0.0
        %1685 = vmatprep.subr.mxu0 0.0
        %1686 = vmatpush1.msra.mxu0 0.0
        %1687 = vmatprep.subr.mxu0 0.0
        %1688 = vmatpush1.msra.mxu0 0.0
        %1689 = vmatprep.mubr.f32.mxu0 0.0
        %1690 = vmatmul.mubr.f32.gmra.mrb[0].mxu0 %v1561
        %v1691 = vpop.f32.mrb[0].mxu0
        %v1692 = vadd.f32 0.0, %v1691
        %v1693 = vpop.f32.mrb[0].mxu0
        %1694 = vmatprep.mubr.f32.mxu0 0.0
        %1695 = vmatmul.mubr.f32.gmra.mrb[0].mxu0 %v1563
        %v1696 = vpop.f32.mrb[0].mxu0
        %v1697 = vadd.f32 0.0, %v1696
        %v1698 = vpop.f32.mrb[0].mxu0
        %1699 = vmatprep.mubr.f32.mxu0 0.0
        %1700 = vmatmul.mubr.f32.gmra.mrb[0].mxu0 %v1565
        %v1701 = vpop.f32.mrb[0].mxu0
        %v1702 = vadd.f32 0.0, %v1701
        %v1703 = vpop.f32.mrb[0].mxu0
        %1704 = vmatprep.mubr.f32.mxu0 0.0
        %1705 = vmatmul.mubr.f32.gmra.mrb[0].mxu0 %v1567
        %v1706 = vpop.f32.mrb[0].mxu0
        %v1707 = vadd.f32 0.0, %v1706
        %v1708 = vpop.f32.mrb[0].mxu0
        %1709 = vmatprep.mubr.f32.mxu0 0.0
        %1710 = vmatmul.mubr.f32.gmra.mrb[0].mxu0 %v1569
        %v1711 = vpop.f32.mrb[0].mxu0
        %v1712 = vadd.f32 0.0, %v1711
        %v1713 = vpop.f32.mrb[0].mxu0
        %1714 = vmatprep.mubr.f32.mxu0 0.0
        %1715 = vmatmul.mubr.f32.gmra.mrb[0].mxu0 %v1571
        %v1716 = vpop.f32.mrb[0].mxu0
        %v1717 = vadd.f32 0.0, %v1716
        %v1718 = vpop.f32.mrb[0].mxu0
        %1719 = vmatprep.mubr.f32.mxu0 0.0
        %1720 = vmatmul.mubr.f32.gmra.mrb[0].mxu0 %v1573
        %v1721 = vpop.f32.mrb[0].mxu0
        %v1722 = vadd.f32 0.0, %v1721
        %v1723 = vpop.f32.mrb[0].mxu0
        %1724 = vmatprep.mubr.f32.mxu0 0.0
        %1725 = vmatmul.mubr.f32.gmra.mrb[0].mxu0 %v1575
        %v1726 = vpop.f32.mrb[0].mxu0
        %v1727 = vadd.f32 0.0, %v1726
        %v1728 = vpop.f32.mrb[0].mxu0
        %1729 = vmatprep.mubr.f32.mxu0 0.0
        %1730 = vmatmul.mubr.f32.gmra.mrb[0].mxu0 %v1577
        %v1731 = vpop.f32.mrb[0].mxu0
        %v1732 = vadd.f32 0.0, %v1731
        %v1733 = vpop.f32.mrb[0].mxu0
        %1734 = vmatprep.mubr.f32.mxu0 0.0
        %1735 = vmatmul.mubr.f32.gmra.mrb[0].mxu0 %v1579
        %v1736 = vpop.f32.mrb[0].mxu0
        %v1737 = vadd.f32 0.0, %v1736
        %v1738 = vpop.f32.mrb[0].mxu0
        %1739 = vmatprep.mubr.f32.mxu0 0.0
        %1740 = vmatmul.mubr.f32.gmra.mrb[0].mxu0 %v1581
        %v1741 = vpop.f32.mrb[0].mxu0
        %v1742 = vadd.f32 0.0, %v1741
        %v1743 = vpop.f32.mrb[0].mxu0
        %1744 = vmatprep.mubr.f32.mxu0 0.0
        %1745 = vmatmul.mubr.f32.gmra.mrb[0].mxu0 %v1583
        %v1746 = vpop.f32.mrb[0].mxu0
        %v1747 = vadd.f32 0.0, %v1746
        %v1748 = vpop.f32.mrb[0].mxu0
        %1749 = vmatprep.mubr.f32.mxu0 0.0
        %1750 = vmatmul.mubr.f32.gmra.mrb[0].mxu0 %v1585
        %v1751 = vpop.f32.mrb[0].mxu0
        %v1752 = vadd.f32 0.0, %v1751
        %v1753 = vpop.f32.mrb[0].mxu0
        %1754 = vmatprep.mubr.f32.mxu0 0.0
        %1755 = vmatmul.mubr.f32.gmra.mrb[0].mxu0 %v1587
        %v1756 = vpop.f32.mrb[0].mxu0
        %v1757 = vadd.f32 0.0, %v1756
        %v1758 = vpop.f32.mrb[0].mxu0
        %1759 = vmatprep.mubr.f32.mxu0 0.0
        %1760 = vmatmul.mubr.f32.gmra.mrb[0].mxu0 %v1589
        %v1761 = vpop.f32.mrb[0].mxu0
        %v1762 = vadd.f32 0.0, %v1761
        %v1763 = vpop.f32.mrb[0].mxu0
        %1764 = vmatprep.mubr.f32.mxu0 0.0
        %1765 = vmatmul.mubr.f32.gmra.mrb[0].mxu0 %v1591
        %v1766 = vpop.f32.mrb[0].mxu0
        %v1767 = vadd.f32 0.0, %v1766
        %v1768 = vpop.f32.mrb[0].mxu0
        %1769 = vmatprep.mubr.f32.mxu0 0.0
        %1770 = vmatmul.mubr.f32.gmra.mrb[0].mxu0 %v1593
        %v1771 = vpop.f32.mrb[0].mxu0
        %v1772 = vadd.f32 0.0, %v1771
        %v1773 = vpop.f32.mrb[0].mxu0
        %1774 = vmatprep.mubr.f32.mxu0 0.0
        %1775 = vmatmul.mubr.f32.gmra.mrb[0].mxu0 %v1595
        %v1776 = vpop.f32.mrb[0].mxu0
        %v1777 = vadd.f32 0.0, %v1776
        %v1778 = vpop.f32.mrb[0].mxu0
        %1779 = vmatprep.mubr.f32.mxu0 0.0
        %1780 = vmatmul.mubr.f32.gmra.mrb[0].mxu0 %v1597
        %v1781 = vpop.f32.mrb[0].mxu0
        %v1782 = vadd.f32 0.0, %v1781
        %v1783 = vpop.f32.mrb[0].mxu0
        %1784 = vmatprep.mubr.f32.mxu0 0.0
        %1785 = vmatmul.mubr.f32.gmra.mrb[0].mxu0 %v1599
        %v1786 = vpop.f32.mrb[0].mxu0
        %v1787 = vadd.f32 0.0, %v1786
        %v1788 = vpop.f32.mrb[0].mxu0
        %1789 = vmatprep.mubr.f32.mxu0 0.0
        %1790 = vmatmul.mubr.f32.gmra.mrb[0].mxu0 %v1601
        %v1791 = vpop.f32.mrb[0].mxu0
        %v1792 = vadd.f32 0.0, %v1791
        %v1793 = vpop.f32.mrb[0].mxu0
        %1794 = vmatprep.mubr.f32.mxu0 0.0
        %1795 = vmatmul.mubr.f32.gmra.mrb[0].mxu0 %v1603
        %v1796 = vpop.f32.mrb[0].mxu0
        %v1797 = vadd.f32 0.0, %v1796
        %v1798 = vpop.f32.mrb[0].mxu0
        %1799 = vmatprep.mubr.f32.mxu0 0.0
        %1800 = vmatmul.mubr.f32.gmra.mrb[0].mxu0 %v1605
        %v1801 = vpop.f32.mrb[0].mxu0
        %v1802 = vadd.f32 0.0, %v1801
        %v1803 = vpop.f32.mrb[0].mxu0
        %1804 = vmatprep.mubr.f32.mxu0 0.0
        %1805 = vmatmul.mubr.f32.gmra.mrb[0].mxu0 %v1607
        %v1806 = vpop.f32.mrb[0].mxu0
        %v1807 = vadd.f32 0.0, %v1806
        %v1808 = vpop.f32.mrb[0].mxu0
        %1809 = vmatprep.mubr.f32.mxu0 0.0
        %1810 = vmatmul.mubr.f32.gmra.mrb[0].mxu0 %v1609
        %v1811 = vpop.f32.mrb[0].mxu0
        %v1812 = vadd.f32 0.0, %v1811
        %v1813 = vpop.f32.mrb[0].mxu0
        %1814 = vmatprep.mubr.f32.mxu0 0.0
        %1815 = vmatmul.mubr.f32.gmra.mrb[0].mxu0 %v1611
        %v1816 = vpop.f32.mrb[0].mxu0
        %v1817 = vadd.f32 0.0, %v1816
        %v1818 = vpop.f32.mrb[0].mxu0
        %1819 = vmatprep.mubr.f32.mxu0 0.0
        %1820 = vmatmul.mubr.f32.gmra.mrb[0].mxu0 %v1613
        %v1821 = vpop.f32.mrb[0].mxu0
        %v1822 = vadd.f32 0.0, %v1821
        %v1823 = vpop.f32.mrb[0].mxu0
        %1824 = vmatprep.mubr.f32.mxu0 0.0
        %1825 = vmatmul.mubr.f32.gmra.mrb[0].mxu0 %v1615
        %v1826 = vpop.f32.mrb[0].mxu0
        %v1827 = vadd.f32 0.0, %v1826
        %v1828 = vpop.f32.mrb[0].mxu0
        %1829 = vmatprep.mubr.f32.mxu0 0.0
        %1830 = vmatmul.mubr.f32.gmra.mrb[0].mxu0 %v1617
        %v1831 = vpop.f32.mrb[0].mxu0
        %v1832 = vadd.f32 0.0, %v1831
        %v1833 = vpop.f32.mrb[0].mxu0
        %1834 = vmatprep.mubr.f32.mxu0 0.0
        %1835 = vmatmul.mubr.f32.gmra.mrb[0].mxu0 %v1619
        %v1836 = vpop.f32.mrb[0].mxu0
        %v1837 = vadd.f32 0.0, %v1836
        %v1838 = vpop.f32.mrb[0].mxu0
        %1839 = vmatprep.mubr.f32.mxu0 0.0
        %1840 = vmatmul.mubr.f32.gmra.mrb[0].mxu0 %v1621
        %v1841 = vpop.f32.mrb[0].mxu0
        %v1842 = vadd.f32 0.0, %v1841
        %v1843 = vpop.f32.mrb[0].mxu0
        %1844 = vmatprep.mubr.f32.mxu0 0.0
        %1845 = vmatmul.mubr.f32.gmra.mrb[0].mxu0 %v1623
        %v1846 = vpop.f32.mrb[0].mxu0
        %v1847 = vadd.f32 0.0, %v1846
        %v1848 = vpop.f32.mrb[0].mxu0
        %1849 = vdwg.mxu0
        %v1850 = vadd.f32 %v1336, %v1692
        %v1851 = vadd.f32 %v1341, %v1697
        %v1852 = vadd.f32 %v1346, %v1702
        %v1853 = vadd.f32 %v1351, %v1707
        %v1854 = vadd.f32 %v1356, %v1712
        %v1855 = vadd.f32 %v1361, %v1717
        %v1856 = vadd.f32 %v1366, %v1722
        %v1857 = vadd.f32 %v1371, %v1727
        %v1858 = vadd.f32 %v1376, %v1732
        %v1859 = vadd.f32 %v1381, %v1737
        %v1860 = vadd.f32 %v1386, %v1742
        %v1861 = vadd.f32 %v1391, %v1747
        %v1862 = vadd.f32 %v1396, %v1752
        %v1863 = vadd.f32 %v1401, %v1757
        %v1864 = vadd.f32 %v1406, %v1762
        %v1865 = vadd.f32 %v1411, %v1767
        %v1866 = vadd.f32 %v1416, %v1772
        %v1867 = vadd.f32 %v1421, %v1777
        %v1868 = vadd.f32 %v1426, %v1782
        %v1869 = vadd.f32 %v1431, %v1787
        %v1870 = vadd.f32 %v1436, %v1792
        %v1871 = vadd.f32 %v1441, %v1797
        %v1872 = vadd.f32 %v1446, %v1802
        %v1873 = vadd.f32 %v1451, %v1807
        %v1874 = vadd.f32 %v1456, %v1812
        %v1875 = vadd.f32 %v1461, %v1817
        %v1876 = vadd.f32 %v1466, %v1822
        %v1877 = vadd.f32 %v1471, %v1827
        %v1878 = vadd.f32 %v1476, %v1832
        %v1879 = vadd.f32 %v1481, %v1837
        %v1880 = vadd.f32 %v1486, %v1842
        %v1881 = vadd.f32 %v1491, %v1847
        %s1882 = scalar_lea.vmem %s3, 24
        %v1883 = vld [vmem:[%s1882] sm:$0xff]
        %1884 = vmatprep.subr.mxu0 0.0
        %1885 = vmatpush1.msra.mxu0 %v1883
        %1886 = vmatprep.subr.mxu0 0.0
        %1887 = vmatpush1.msra.mxu0 0.0
        %1888 = vmatprep.subr.mxu0 0.0
        %1889 = vmatpush1.msra.mxu0 0.0
        %1890 = vmatprep.subr.mxu0 0.0
        %1891 = vmatpush1.msra.mxu0 0.0
        %1892 = vmatprep.subr.mxu0 0.0
        %1893 = vmatpush1.msra.mxu0 0.0
        %1894 = vmatprep.subr.mxu0 0.0
        %1895 = vmatpush1.msra.mxu0 0.0
        %1896 = vmatprep.subr.mxu0 0.0
        %1897 = vmatpush1.msra.mxu0 0.0
        %1898 = vmatprep.subr.mxu0 0.0
        %1899 = vmatpush1.msra.mxu0 0.0
        %1900 = vmatprep.subr.mxu0 0.0
        %1901 = vmatpush1.msra.mxu0 0.0
        %1902 = vmatprep.subr.mxu0 0.0
        %1903 = vmatpush1.msra.mxu0 0.0
        %1904 = vmatprep.subr.mxu0 0.0
        %1905 = vmatpush1.msra.mxu0 0.0
        %1906 = vmatprep.subr.mxu0 0.0
        %1907 = vmatpush1.msra.mxu0 0.0
        %1908 = vmatprep.subr.mxu0 0.0
        %1909 = vmatpush1.msra.mxu0 0.0
        %1910 = vmatprep.subr.mxu0 0.0
        %1911 = vmatpush1.msra.mxu0 0.0
        %1912 = vmatprep.subr.mxu0 0.0
        %1913 = vmatpush1.msra.mxu0 0.0
        %1914 = vmatprep.subr.mxu0 0.0
        %1915 = vmatpush1.msra.mxu0 0.0
        %1916 = vmatprep.subr.mxu0 0.0
        %1917 = vmatpush1.msra.mxu0 0.0
        %1918 = vmatprep.subr.mxu0 0.0
        %1919 = vmatpush1.msra.mxu0 0.0
        %1920 = vmatprep.subr.mxu0 0.0
        %1921 = vmatpush1.msra.mxu0 0.0
        %1922 = vmatprep.subr.mxu0 0.0
        %1923 = vmatpush1.msra.mxu0 0.0
        %1924 = vmatprep.subr.mxu0 0.0
        %1925 = vmatpush1.msra.mxu0 0.0
        %1926 = vmatprep.subr.mxu0 0.0
        %1927 = vmatpush1.msra.mxu0 0.0
        %1928 = vmatprep.subr.mxu0 0.0
        %1929 = vmatpush1.msra.mxu0 0.0
        %1930 = vmatprep.subr.mxu0 0.0
        %1931 = vmatpush1.msra.mxu0 0.0
        %1932 = vmatprep.subr.mxu0 0.0
        %1933 = vmatpush1.msra.mxu0 0.0
        %1934 = vmatprep.subr.mxu0 0.0
        %1935 = vmatpush1.msra.mxu0 0.0
        %1936 = vmatprep.subr.mxu0 0.0
        %1937 = vmatpush1.msra.mxu0 0.0
        %1938 = vmatprep.subr.mxu0 0.0
        %1939 = vmatpush1.msra.mxu0 0.0
        %1940 = vmatprep.subr.mxu0 0.0
        %1941 = vmatpush1.msra.mxu0 0.0
        %1942 = vmatprep.subr.mxu0 0.0
        %1943 = vmatpush1.msra.mxu0 0.0
        %1944 = vmatprep.subr.mxu0 0.0
        %1945 = vmatpush1.msra.mxu0 0.0
        %1946 = vmatprep.subr.mxu0 0.0
        %1947 = vmatpush1.msra.mxu0 0.0
        %1948 = vmatprep.mubr.f32.mxu0 0.0
        %1949 = vmatmul.mubr.f32.gmra.mrb[0].mxu0 %v1209
        %v1950 = vpop.f32.mrb[0].mxu0
        %v1951 = vadd.f32 0.0, %v1950
        %v1952 = vpop.f32.mrb[0].mxu0
        %1953 = vmatprep.mubr.f32.mxu0 0.0
        %1954 = vmatmul.mubr.f32.gmra.mrb[0].mxu0 %v1211
        %v1955 = vpop.f32.mrb[0].mxu0
        %v1956 = vadd.f32 0.0, %v1955
        %v1957 = vpop.f32.mrb[0].mxu0
        %1958 = vmatprep.mubr.f32.mxu0 0.0
        %1959 = vmatmul.mubr.f32.gmra.mrb[0].mxu0 %v1213
        %v1960 = vpop.f32.mrb[0].mxu0
        %v1961 = vadd.f32 0.0, %v1960
        %v1962 = vpop.f32.mrb[0].mxu0
        %1963 = vmatprep.mubr.f32.mxu0 0.0
        %1964 = vmatmul.mubr.f32.gmra.mrb[0].mxu0 %v1215
        %v1965 = vpop.f32.mrb[0].mxu0
        %v1966 = vadd.f32 0.0, %v1965
        %v1967 = vpop.f32.mrb[0].mxu0
        %1968 = vmatprep.mubr.f32.mxu0 0.0
        %1969 = vmatmul.mubr.f32.gmra.mrb[0].mxu0 %v1217
        %v1970 = vpop.f32.mrb[0].mxu0
        %v1971 = vadd.f32 0.0, %v1970
        %v1972 = vpop.f32.mrb[0].mxu0
        %1973 = vmatprep.mubr.f32.mxu0 0.0
        %1974 = vmatmul.mubr.f32.gmra.mrb[0].mxu0 %v1219
        %v1975 = vpop.f32.mrb[0].mxu0
        %v1976 = vadd.f32 0.0, %v1975
        %v1977 = vpop.f32.mrb[0].mxu0
        %1978 = vmatprep.mubr.f32.mxu0 0.0
        %1979 = vmatmul.mubr.f32.gmra.mrb[0].mxu0 %v1221
        %v1980 = vpop.f32.mrb[0].mxu0
        %v1981 = vadd.f32 0.0, %v1980
        %v1982 = vpop.f32.mrb[0].mxu0
        %1983 = vmatprep.mubr.f32.mxu0 0.0
        %1984 = vmatmul.mubr.f32.gmra.mrb[0].mxu0 %v1223
        %v1985 = vpop.f32.mrb[0].mxu0
        %v1986 = vadd.f32 0.0, %v1985
        %v1987 = vpop.f32.mrb[0].mxu0
        %1988 = vmatprep.mubr.f32.mxu0 0.0
        %1989 = vmatmul.mubr.f32.gmra.mrb[0].mxu0 %v1225
        %v1990 = vpop.f32.mrb[0].mxu0
        %v1991 = vadd.f32 0.0, %v1990
        %v1992 = vpop.f32.mrb[0].mxu0
        %1993 = vmatprep.mubr.f32.mxu0 0.0
        %1994 = vmatmul.mubr.f32.gmra.mrb[0].mxu0 %v1227
        %v1995 = vpop.f32.mrb[0].mxu0
        %v1996 = vadd.f32 0.0, %v1995
        %v1997 = vpop.f32.mrb[0].mxu0
        %1998 = vmatprep.mubr.f32.mxu0 0.0
        %1999 = vmatmul.mubr.f32.gmra.mrb[0].mxu0 %v1229
        %v2000 = vpop.f32.mrb[0].mxu0
        %v2001 = vadd.f32 0.0, %v2000
        %v2002 = vpop.f32.mrb[0].mxu0
        %2003 = vmatprep.mubr.f32.mxu0 0.0
        %2004 = vmatmul.mubr.f32.gmra.mrb[0].mxu0 %v1231
        %v2005 = vpop.f32.mrb[0].mxu0
        %v2006 = vadd.f32 0.0, %v2005
        %v2007 = vpop.f32.mrb[0].mxu0
        %2008 = vmatprep.mubr.f32.mxu0 0.0
        %2009 = vmatmul.mubr.f32.gmra.mrb[0].mxu0 %v1233
        %v2010 = vpop.f32.mrb[0].mxu0
        %v2011 = vadd.f32 0.0, %v2010
        %v2012 = vpop.f32.mrb[0].mxu0
        %2013 = vmatprep.mubr.f32.mxu0 0.0
        %2014 = vmatmul.mubr.f32.gmra.mrb[0].mxu0 %v1235
        %v2015 = vpop.f32.mrb[0].mxu0
        %v2016 = vadd.f32 0.0, %v2015
        %v2017 = vpop.f32.mrb[0].mxu0
        %2018 = vmatprep.mubr.f32.mxu0 0.0
        %2019 = vmatmul.mubr.f32.gmra.mrb[0].mxu0 %v1237
        %v2020 = vpop.f32.mrb[0].mxu0
        %v2021 = vadd.f32 0.0, %v2020
        %v2022 = vpop.f32.mrb[0].mxu0
        %2023 = vmatprep.mubr.f32.mxu0 0.0
        %2024 = vmatmul.mubr.f32.gmra.mrb[0].mxu0 %v1239
        %v2025 = vpop.f32.mrb[0].mxu0
        %v2026 = vadd.f32 0.0, %v2025
        %v2027 = vpop.f32.mrb[0].mxu0
        %2028 = vmatprep.mubr.f32.mxu0 0.0
        %2029 = vmatmul.mubr.f32.gmra.mrb[0].mxu0 %v1241
        %v2030 = vpop.f32.mrb[0].mxu0
        %v2031 = vadd.f32 0.0, %v2030
        %v2032 = vpop.f32.mrb[0].mxu0
        %2033 = vmatprep.mubr.f32.mxu0 0.0
        %2034 = vmatmul.mubr.f32.gmra.mrb[0].mxu0 %v1243
        %v2035 = vpop.f32.mrb[0].mxu0
        %v2036 = vadd.f32 0.0, %v2035
        %v2037 = vpop.f32.mrb[0].mxu0
        %2038 = vmatprep.mubr.f32.mxu0 0.0
        %2039 = vmatmul.mubr.f32.gmra.mrb[0].mxu0 %v1245
        %v2040 = vpop.f32.mrb[0].mxu0
        %v2041 = vadd.f32 0.0, %v2040
        %v2042 = vpop.f32.mrb[0].mxu0
        %2043 = vmatprep.mubr.f32.mxu0 0.0
        %2044 = vmatmul.mubr.f32.gmra.mrb[0].mxu0 %v1247
        %v2045 = vpop.f32.mrb[0].mxu0
        %v2046 = vadd.f32 0.0, %v2045
        %v2047 = vpop.f32.mrb[0].mxu0
        %2048 = vmatprep.mubr.f32.mxu0 0.0
        %2049 = vmatmul.mubr.f32.gmra.mrb[0].mxu0 %v1249
        %v2050 = vpop.f32.mrb[0].mxu0
        %v2051 = vadd.f32 0.0, %v2050
        %v2052 = vpop.f32.mrb[0].mxu0
        %2053 = vmatprep.mubr.f32.mxu0 0.0
        %2054 = vmatmul.mubr.f32.gmra.mrb[0].mxu0 %v1251
        %v2055 = vpop.f32.mrb[0].mxu0
        %v2056 = vadd.f32 0.0, %v2055
        %v2057 = vpop.f32.mrb[0].mxu0
        %2058 = vmatprep.mubr.f32.mxu0 0.0
        %2059 = vmatmul.mubr.f32.gmra.mrb[0].mxu0 %v1253
        %v2060 = vpop.f32.mrb[0].mxu0
        %v2061 = vadd.f32 0.0, %v2060
        %v2062 = vpop.f32.mrb[0].mxu0
        %2063 = vmatprep.mubr.f32.mxu0 0.0
        %2064 = vmatmul.mubr.f32.gmra.mrb[0].mxu0 %v1255
        %v2065 = vpop.f32.mrb[0].mxu0
        %v2066 = vadd.f32 0.0, %v2065
        %v2067 = vpop.f32.mrb[0].mxu0
        %2068 = vmatprep.mubr.f32.mxu0 0.0
        %2069 = vmatmul.mubr.f32.gmra.mrb[0].mxu0 %v1257
        %v2070 = vpop.f32.mrb[0].mxu0
        %v2071 = vadd.f32 0.0, %v2070
        %v2072 = vpop.f32.mrb[0].mxu0
        %2073 = vmatprep.mubr.f32.mxu0 0.0
        %2074 = vmatmul.mubr.f32.gmra.mrb[0].mxu0 %v1259
        %v2075 = vpop.f32.mrb[0].mxu0
        %v2076 = vadd.f32 0.0, %v2075
        %v2077 = vpop.f32.mrb[0].mxu0
        %2078 = vmatprep.mubr.f32.mxu0 0.0
        %2079 = vmatmul.mubr.f32.gmra.mrb[0].mxu0 %v1261
        %v2080 = vpop.f32.mrb[0].mxu0
        %v2081 = vadd.f32 0.0, %v2080
        %v2082 = vpop.f32.mrb[0].mxu0
        %2083 = vmatprep.mubr.f32.mxu0 0.0
        %2084 = vmatmul.mubr.f32.gmra.mrb[0].mxu0 %v1263
        %v2085 = vpop.f32.mrb[0].mxu0
        %v2086 = vadd.f32 0.0, %v2085
        %v2087 = vpop.f32.mrb[0].mxu0
        %2088 = vmatprep.mubr.f32.mxu0 0.0
        %2089 = vmatmul.mubr.f32.gmra.mrb[0].mxu0 %v1265
        %v2090 = vpop.f32.mrb[0].mxu0
        %v2091 = vadd.f32 0.0, %v2090
        %v2092 = vpop.f32.mrb[0].mxu0
        %2093 = vmatprep.mubr.f32.mxu0 0.0
        %2094 = vmatmul.mubr.f32.gmra.mrb[0].mxu0 %v1267
        %v2095 = vpop.f32.mrb[0].mxu0
        %v2096 = vadd.f32 0.0, %v2095
        %v2097 = vpop.f32.mrb[0].mxu0
        %2098 = vmatprep.mubr.f32.mxu0 0.0
        %2099 = vmatmul.mubr.f32.gmra.mrb[0].mxu0 %v1205
        %v2100 = vpop.f32.mrb[0].mxu0
        %v2101 = vadd.f32 0.0, %v2100
        %v2102 = vpop.f32.mrb[0].mxu0
        %2103 = vmatprep.mubr.f32.mxu0 0.0
        %2104 = vmatmul.mubr.f32.gmra.mrb[0].mxu0 %v1207
        %v2105 = vpop.f32.mrb[0].mxu0
        %v2106 = vadd.f32 0.0, %v2105
        %v2107 = vpop.f32.mrb[0].mxu0
        %2108 = vdwg.mxu0
        %v2109 = vadd.f32 %v1850, %v1951
        %v2110 = vadd.f32 %v1851, %v1956
        %v2111 = vadd.f32 %v1852, %v1961
        %v2112 = vadd.f32 %v1853, %v1966
        %v2113 = vadd.f32 %v1854, %v1971
        %v2114 = vadd.f32 %v1855, %v1976
        %v2115 = vadd.f32 %v1856, %v1981
        %v2116 = vadd.f32 %v1857, %v1986
        %v2117 = vadd.f32 %v1858, %v1991
        %v2118 = vadd.f32 %v1859, %v1996
        %v2119 = vadd.f32 %v1860, %v2001
        %v2120 = vadd.f32 %v1861, %v2006
        %v2121 = vadd.f32 %v1862, %v2011
        %v2122 = vadd.f32 %v1863, %v2016
        %v2123 = vadd.f32 %v1864, %v2021
        %v2124 = vadd.f32 %v1865, %v2026
        %v2125 = vadd.f32 %v1866, %v2031
        %v2126 = vadd.f32 %v1867, %v2036
        %v2127 = vadd.f32 %v1868, %v2041
        %v2128 = vadd.f32 %v1869, %v2046
        %v2129 = vadd.f32 %v1870, %v2051
        %v2130 = vadd.f32 %v1871, %v2056
        %v2131 = vadd.f32 %v1872, %v2061
        %v2132 = vadd.f32 %v1873, %v2066
        %v2133 = vadd.f32 %v1874, %v2071
        %v2134 = vadd.f32 %v1875, %v2076
        %v2135 = vadd.f32 %v1876, %v2081
        %v2136 = vadd.f32 %v1877, %v2086
        %v2137 = vadd.f32 %v1878, %v2091
        %v2138 = vadd.f32 %v1879, %v2096
        %v2139 = vadd.f32 %v1880, %v2101
        %v2140 = vadd.f32 %v1881, %v2106
        %s2141 = scalar_lea.vmem %s3, 32
        %v2142 = vld [vmem:[%s2141] sm:$0xff]
        %2143 = vmatprep.subr.mxu0 0.0
        %2144 = vmatpush1.msra.mxu0 %v2142
        %2145 = vmatprep.subr.mxu0 0.0
        %2146 = vmatpush1.msra.mxu0 0.0
        %2147 = vmatprep.subr.mxu0 0.0
        %2148 = vmatpush1.msra.mxu0 0.0
        %2149 = vmatprep.subr.mxu0 0.0
        %2150 = vmatpush1.msra.mxu0 0.0
        %2151 = vmatprep.subr.mxu0 0.0
        %2152 = vmatpush1.msra.mxu0 0.0
        %2153 = vmatprep.subr.mxu0 0.0
        %2154 = vmatpush1.msra.mxu0 0.0
        %2155 = vmatprep.subr.mxu0 0.0
        %2156 = vmatpush1.msra.mxu0 0.0
        %2157 = vmatprep.subr.mxu0 0.0
        %2158 = vmatpush1.msra.mxu0 0.0
        %2159 = vmatprep.subr.mxu0 0.0
        %2160 = vmatpush1.msra.mxu0 0.0
        %2161 = vmatprep.subr.mxu0 0.0
        %2162 = vmatpush1.msra.mxu0 0.0
        %2163 = vmatprep.subr.mxu0 0.0
        %2164 = vmatpush1.msra.mxu0 0.0
        %2165 = vmatprep.subr.mxu0 0.0
        %2166 = vmatpush1.msra.mxu0 0.0
        %2167 = vmatprep.subr.mxu0 0.0
        %2168 = vmatpush1.msra.mxu0 0.0
        %2169 = vmatprep.subr.mxu0 0.0
        %2170 = vmatpush1.msra.mxu0 0.0
        %2171 = vmatprep.subr.mxu0 0.0
        %2172 = vmatpush1.msra.mxu0 0.0
        %2173 = vmatprep.subr.mxu0 0.0
        %2174 = vmatpush1.msra.mxu0 0.0
        %2175 = vmatprep.subr.mxu0 0.0
        %2176 = vmatpush1.msra.mxu0 0.0
        %2177 = vmatprep.subr.mxu0 0.0
        %2178 = vmatpush1.msra.mxu0 0.0
        %2179 = vmatprep.subr.mxu0 0.0
        %2180 = vmatpush1.msra.mxu0 0.0
        %2181 = vmatprep.subr.mxu0 0.0
        %2182 = vmatpush1.msra.mxu0 0.0
        %2183 = vmatprep.subr.mxu0 0.0
        %2184 = vmatpush1.msra.mxu0 0.0
        %2185 = vmatprep.subr.mxu0 0.0
        %2186 = vmatpush1.msra.mxu0 0.0
        %2187 = vmatprep.subr.mxu0 0.0
        %2188 = vmatpush1.msra.mxu0 0.0
        %2189 = vmatprep.subr.mxu0 0.0
        %2190 = vmatpush1.msra.mxu0 0.0
        %2191 = vmatprep.subr.mxu0 0.0
        %2192 = vmatpush1.msra.mxu0 0.0
        %2193 = vmatprep.subr.mxu0 0.0
        %2194 = vmatpush1.msra.mxu0 0.0
        %2195 = vmatprep.subr.mxu0 0.0
        %2196 = vmatpush1.msra.mxu0 0.0
        %2197 = vmatprep.subr.mxu0 0.0
        %2198 = vmatpush1.msra.mxu0 0.0
        %2199 = vmatprep.subr.mxu0 0.0
        %2200 = vmatpush1.msra.mxu0 0.0
        %2201 = vmatprep.subr.mxu0 0.0
        %2202 = vmatpush1.msra.mxu0 0.0
        %2203 = vmatprep.subr.mxu0 0.0
        %2204 = vmatpush1.msra.mxu0 0.0
        %2205 = vmatprep.subr.mxu0 0.0
        %2206 = vmatpush1.msra.mxu0 0.0
        %2207 = vmatprep.mubr.f32.mxu0 0.0
        %2208 = vmatmul.mubr.f32.gmra.mrb[0].mxu0 %v920
        %v2209 = vpop.f32.mrb[0].mxu0
        %v2210 = vadd.f32 0.0, %v2209
        %v2211 = vpop.f32.mrb[0].mxu0
        %2212 = vmatprep.mubr.f32.mxu0 0.0
        %2213 = vmatmul.mubr.f32.gmra.mrb[0].mxu0 %v922
        %v2214 = vpop.f32.mrb[0].mxu0
        %v2215 = vadd.f32 0.0, %v2214
        %v2216 = vpop.f32.mrb[0].mxu0
        %2217 = vmatprep.mubr.f32.mxu0 0.0
        %2218 = vmatmul.mubr.f32.gmra.mrb[0].mxu0 %v924
        %v2219 = vpop.f32.mrb[0].mxu0
        %v2220 = vadd.f32 0.0, %v2219
        %v2221 = vpop.f32.mrb[0].mxu0
        %2222 = vmatprep.mubr.f32.mxu0 0.0
        %2223 = vmatmul.mubr.f32.gmra.mrb[0].mxu0 %v926
        %v2224 = vpop.f32.mrb[0].mxu0
        %v2225 = vadd.f32 0.0, %v2224
        %v2226 = vpop.f32.mrb[0].mxu0
        %2227 = vmatprep.mubr.f32.mxu0 0.0
        %2228 = vmatmul.mubr.f32.gmra.mrb[0].mxu0 %v928
        %v2229 = vpop.f32.mrb[0].mxu0
        %v2230 = vadd.f32 0.0, %v2229
        %v2231 = vpop.f32.mrb[0].mxu0
        %2232 = vmatprep.mubr.f32.mxu0 0.0
        %2233 = vmatmul.mubr.f32.gmra.mrb[0].mxu0 %v930
        %v2234 = vpop.f32.mrb[0].mxu0
        %v2235 = vadd.f32 0.0, %v2234
        %v2236 = vpop.f32.mrb[0].mxu0
        %2237 = vmatprep.mubr.f32.mxu0 0.0
        %2238 = vmatmul.mubr.f32.gmra.mrb[0].mxu0 %v932
        %v2239 = vpop.f32.mrb[0].mxu0
        %v2240 = vadd.f32 0.0, %v2239
        %v2241 = vpop.f32.mrb[0].mxu0
        %2242 = vmatprep.mubr.f32.mxu0 0.0
        %2243 = vmatmul.mubr.f32.gmra.mrb[0].mxu0 %v934
        %v2244 = vpop.f32.mrb[0].mxu0
        %v2245 = vadd.f32 0.0, %v2244
        %v2246 = vpop.f32.mrb[0].mxu0
        %2247 = vmatprep.mubr.f32.mxu0 0.0
        %2248 = vmatmul.mubr.f32.gmra.mrb[0].mxu0 %v936
        %v2249 = vpop.f32.mrb[0].mxu0
        %v2250 = vadd.f32 0.0, %v2249
        %v2251 = vpop.f32.mrb[0].mxu0
        %2252 = vmatprep.mubr.f32.mxu0 0.0
        %2253 = vmatmul.mubr.f32.gmra.mrb[0].mxu0 %v938
        %v2254 = vpop.f32.mrb[0].mxu0
        %v2255 = vadd.f32 0.0, %v2254
        %v2256 = vpop.f32.mrb[0].mxu0
        %2257 = vmatprep.mubr.f32.mxu0 0.0
        %2258 = vmatmul.mubr.f32.gmra.mrb[0].mxu0 %v940
        %v2259 = vpop.f32.mrb[0].mxu0
        %v2260 = vadd.f32 0.0, %v2259
        %v2261 = vpop.f32.mrb[0].mxu0
        %2262 = vmatprep.mubr.f32.mxu0 0.0
        %2263 = vmatmul.mubr.f32.gmra.mrb[0].mxu0 %v942
        %v2264 = vpop.f32.mrb[0].mxu0
        %v2265 = vadd.f32 0.0, %v2264
        %v2266 = vpop.f32.mrb[0].mxu0
        %2267 = vmatprep.mubr.f32.mxu0 0.0
        %2268 = vmatmul.mubr.f32.gmra.mrb[0].mxu0 %v944
        %v2269 = vpop.f32.mrb[0].mxu0
        %v2270 = vadd.f32 0.0, %v2269
        %v2271 = vpop.f32.mrb[0].mxu0
        %2272 = vmatprep.mubr.f32.mxu0 0.0
        %2273 = vmatmul.mubr.f32.gmra.mrb[0].mxu0 %v946
        %v2274 = vpop.f32.mrb[0].mxu0
        %v2275 = vadd.f32 0.0, %v2274
        %v2276 = vpop.f32.mrb[0].mxu0
        %2277 = vmatprep.mubr.f32.mxu0 0.0
        %2278 = vmatmul.mubr.f32.gmra.mrb[0].mxu0 %v948
        %v2279 = vpop.f32.mrb[0].mxu0
        %v2280 = vadd.f32 0.0, %v2279
        %v2281 = vpop.f32.mrb[0].mxu0
        %2282 = vmatprep.mubr.f32.mxu0 0.0
        %2283 = vmatmul.mubr.f32.gmra.mrb[0].mxu0 %v950
        %v2284 = vpop.f32.mrb[0].mxu0
        %v2285 = vadd.f32 0.0, %v2284
        %v2286 = vpop.f32.mrb[0].mxu0
        %2287 = vmatprep.mubr.f32.mxu0 0.0
        %2288 = vmatmul.mubr.f32.gmra.mrb[0].mxu0 %v952
        %v2289 = vpop.f32.mrb[0].mxu0
        %v2290 = vadd.f32 0.0, %v2289
        %v2291 = vpop.f32.mrb[0].mxu0
        %2292 = vmatprep.mubr.f32.mxu0 0.0
        %2293 = vmatmul.mubr.f32.gmra.mrb[0].mxu0 %v954
        %v2294 = vpop.f32.mrb[0].mxu0
        %v2295 = vadd.f32 0.0, %v2294
        %v2296 = vpop.f32.mrb[0].mxu0
        %2297 = vmatprep.mubr.f32.mxu0 0.0
        %2298 = vmatmul.mubr.f32.gmra.mrb[0].mxu0 %v956
        %v2299 = vpop.f32.mrb[0].mxu0
        %v2300 = vadd.f32 0.0, %v2299
        %v2301 = vpop.f32.mrb[0].mxu0
        %2302 = vmatprep.mubr.f32.mxu0 0.0
        %2303 = vmatmul.mubr.f32.gmra.mrb[0].mxu0 %v958
        %v2304 = vpop.f32.mrb[0].mxu0
        %v2305 = vadd.f32 0.0, %v2304
        %v2306 = vpop.f32.mrb[0].mxu0
        %2307 = vmatprep.mubr.f32.mxu0 0.0
        %2308 = vmatmul.mubr.f32.gmra.mrb[0].mxu0 %v960
        %v2309 = vpop.f32.mrb[0].mxu0
        %v2310 = vadd.f32 0.0, %v2309
        %v2311 = vpop.f32.mrb[0].mxu0
        %2312 = vmatprep.mubr.f32.mxu0 0.0
        %2313 = vmatmul.mubr.f32.gmra.mrb[0].mxu0 %v962
        %v2314 = vpop.f32.mrb[0].mxu0
        %v2315 = vadd.f32 0.0, %v2314
        %v2316 = vpop.f32.mrb[0].mxu0
        %2317 = vmatprep.mubr.f32.mxu0 0.0
        %2318 = vmatmul.mubr.f32.gmra.mrb[0].mxu0 %v964
        %v2319 = vpop.f32.mrb[0].mxu0
        %v2320 = vadd.f32 0.0, %v2319
        %v2321 = vpop.f32.mrb[0].mxu0
        %2322 = vmatprep.mubr.f32.mxu0 0.0
        %2323 = vmatmul.mubr.f32.gmra.mrb[0].mxu0 %v966
        %v2324 = vpop.f32.mrb[0].mxu0
        %v2325 = vadd.f32 0.0, %v2324
        %v2326 = vpop.f32.mrb[0].mxu0
        %2327 = vmatprep.mubr.f32.mxu0 0.0
        %2328 = vmatmul.mubr.f32.gmra.mrb[0].mxu0 %v968
        %v2329 = vpop.f32.mrb[0].mxu0
        %v2330 = vadd.f32 0.0, %v2329
        %v2331 = vpop.f32.mrb[0].mxu0
        %2332 = vmatprep.mubr.f32.mxu0 0.0
        %2333 = vmatmul.mubr.f32.gmra.mrb[0].mxu0 %v970
        %v2334 = vpop.f32.mrb[0].mxu0
        %v2335 = vadd.f32 0.0, %v2334
        %v2336 = vpop.f32.mrb[0].mxu0
        %2337 = vmatprep.mubr.f32.mxu0 0.0
        %2338 = vmatmul.mubr.f32.gmra.mrb[0].mxu0 %v972
        %v2339 = vpop.f32.mrb[0].mxu0
        %v2340 = vadd.f32 0.0, %v2339
        %v2341 = vpop.f32.mrb[0].mxu0
        %2342 = vmatprep.mubr.f32.mxu0 0.0
        %2343 = vmatmul.mubr.f32.gmra.mrb[0].mxu0 %v974
        %v2344 = vpop.f32.mrb[0].mxu0
        %v2345 = vadd.f32 0.0, %v2344
        %v2346 = vpop.f32.mrb[0].mxu0
        %2347 = vmatprep.mubr.f32.mxu0 0.0
        %2348 = vmatmul.mubr.f32.gmra.mrb[0].mxu0 %v976
        %v2349 = vpop.f32.mrb[0].mxu0
        %v2350 = vadd.f32 0.0, %v2349
        %v2351 = vpop.f32.mrb[0].mxu0
        %2352 = vmatprep.mubr.f32.mxu0 0.0
        %2353 = vmatmul.mubr.f32.gmra.mrb[0].mxu0 %v978
        %v2354 = vpop.f32.mrb[0].mxu0
        %v2355 = vadd.f32 0.0, %v2354
        %v2356 = vpop.f32.mrb[0].mxu0
        %2357 = vmatprep.mubr.f32.mxu0 0.0
        %2358 = vmatmul.mubr.f32.gmra.mrb[0].mxu0 %v916
        %v2359 = vpop.f32.mrb[0].mxu0
        %v2360 = vadd.f32 0.0, %v2359
        %v2361 = vpop.f32.mrb[0].mxu0
        %2362 = vmatprep.mubr.f32.mxu0 0.0
        %2363 = vmatmul.mubr.f32.gmra.mrb[0].mxu0 %v918
        %v2364 = vpop.f32.mrb[0].mxu0
        %v2365 = vadd.f32 0.0, %v2364
        %v2366 = vpop.f32.mrb[0].mxu0
        %2367 = vdwg.mxu0
        %v2368 = vadd.f32 %v2109, %v2210
        %v2369 = vadd.f32 %v2110, %v2215
        %v2370 = vadd.f32 %v2111, %v2220
        %v2371 = vadd.f32 %v2112, %v2225
        %v2372 = vadd.f32 %v2113, %v2230
        %v2373 = vadd.f32 %v2114, %v2235
        %v2374 = vadd.f32 %v2115, %v2240
        %v2375 = vadd.f32 %v2116, %v2245
        %v2376 = vadd.f32 %v2117, %v2250
        %v2377 = vadd.f32 %v2118, %v2255
        %v2378 = vadd.f32 %v2119, %v2260
        %v2379 = vadd.f32 %v2120, %v2265
        %v2380 = vadd.f32 %v2121, %v2270
        %v2381 = vadd.f32 %v2122, %v2275
        %v2382 = vadd.f32 %v2123, %v2280
        %v2383 = vadd.f32 %v2124, %v2285
        %v2384 = vadd.f32 %v2125, %v2290
        %v2385 = vadd.f32 %v2126, %v2295
        %v2386 = vadd.f32 %v2127, %v2300
        %v2387 = vadd.f32 %v2128, %v2305
        %v2388 = vadd.f32 %v2129, %v2310
        %v2389 = vadd.f32 %v2130, %v2315
        %v2390 = vadd.f32 %v2131, %v2320
        %v2391 = vadd.f32 %v2132, %v2325
        %v2392 = vadd.f32 %v2133, %v2330
        %v2393 = vadd.f32 %v2134, %v2335
        %v2394 = vadd.f32 %v2135, %v2340
        %v2395 = vadd.f32 %v2136, %v2345
        %v2396 = vadd.f32 %v2137, %v2350
        %v2397 = vadd.f32 %v2138, %v2355
        %v2398 = vadd.f32 %v2139, %v2360
        %v2399 = vadd.f32 %v2140, %v2365
        %s2400 = scalar_lea.vmem %s3, 40
        %v2401 = vld [vmem:[%s2400] sm:$0xff]
        %2402 = vmatprep.subr.mxu0 0.0
        %2403 = vmatpush1.msra.mxu0 %v2401
        %2404 = vmatprep.subr.mxu0 0.0
        %2405 = vmatpush1.msra.mxu0 0.0
        %2406 = vmatprep.subr.mxu0 0.0
        %2407 = vmatpush1.msra.mxu0 0.0
        %2408 = vmatprep.subr.mxu0 0.0
        %2409 = vmatpush1.msra.mxu0 0.0
        %2410 = vmatprep.subr.mxu0 0.0
        %2411 = vmatpush1.msra.mxu0 0.0
        %2412 = vmatprep.subr.mxu0 0.0
        %2413 = vmatpush1.msra.mxu0 0.0
        %2414 = vmatprep.subr.mxu0 0.0
        %2415 = vmatpush1.msra.mxu0 0.0
        %2416 = vmatprep.subr.mxu0 0.0
        %2417 = vmatpush1.msra.mxu0 0.0
        %2418 = vmatprep.subr.mxu0 0.0
        %2419 = vmatpush1.msra.mxu0 0.0
        %2420 = vmatprep.subr.mxu0 0.0
        %2421 = vmatpush1.msra.mxu0 0.0
        %2422 = vmatprep.subr.mxu0 0.0
        %2423 = vmatpush1.msra.mxu0 0.0
        %2424 = vmatprep.subr.mxu0 0.0
        %2425 = vmatpush1.msra.mxu0 0.0
        %2426 = vmatprep.subr.mxu0 0.0
        %2427 = vmatpush1.msra.mxu0 0.0
        %2428 = vmatprep.subr.mxu0 0.0
        %2429 = vmatpush1.msra.mxu0 0.0
        %2430 = vmatprep.subr.mxu0 0.0
        %2431 = vmatpush1.msra.mxu0 0.0
        %2432 = vmatprep.subr.mxu0 0.0
        %2433 = vmatpush1.msra.mxu0 0.0
        %2434 = vmatprep.subr.mxu0 0.0
        %2435 = vmatpush1.msra.mxu0 0.0
        %2436 = vmatprep.subr.mxu0 0.0
        %2437 = vmatpush1.msra.mxu0 0.0
        %2438 = vmatprep.subr.mxu0 0.0
        %2439 = vmatpush1.msra.mxu0 0.0
        %2440 = vmatprep.subr.mxu0 0.0
        %2441 = vmatpush1.msra.mxu0 0.0
        %2442 = vmatprep.subr.mxu0 0.0
        %2443 = vmatpush1.msra.mxu0 0.0
        %2444 = vmatprep.subr.mxu0 0.0
        %2445 = vmatpush1.msra.mxu0 0.0
        %2446 = vmatprep.subr.mxu0 0.0
        %2447 = vmatpush1.msra.mxu0 0.0
        %2448 = vmatprep.subr.mxu0 0.0
        %2449 = vmatpush1.msra.mxu0 0.0
        %2450 = vmatprep.subr.mxu0 0.0
        %2451 = vmatpush1.msra.mxu0 0.0
        %2452 = vmatprep.subr.mxu0 0.0
        %2453 = vmatpush1.msra.mxu0 0.0
        %2454 = vmatprep.subr.mxu0 0.0
        %2455 = vmatpush1.msra.mxu0 0.0
        %2456 = vmatprep.subr.mxu0 0.0
        %2457 = vmatpush1.msra.mxu0 0.0
        %2458 = vmatprep.subr.mxu0 0.0
        %2459 = vmatpush1.msra.mxu0 0.0
        %2460 = vmatprep.subr.mxu0 0.0
        %2461 = vmatpush1.msra.mxu0 0.0
        %2462 = vmatprep.subr.mxu0 0.0
        %2463 = vmatpush1.msra.mxu0 0.0
        %2464 = vmatprep.subr.mxu0 0.0
        %2465 = vmatpush1.msra.mxu0 0.0
        %2466 = vmatprep.mubr.f32.mxu0 0.0
        %2467 = vmatmul.mubr.f32.gmra.mrb[0].mxu0 %v1565
        %v2468 = vpop.f32.mrb[0].mxu0
        %v2469 = vadd.f32 0.0, %v2468
        %v2470 = vpop.f32.mrb[0].mxu0
        %2471 = vmatprep.mubr.f32.mxu0 0.0
        %2472 = vmatmul.mubr.f32.gmra.mrb[0].mxu0 %v1567
        %v2473 = vpop.f32.mrb[0].mxu0
        %v2474 = vadd.f32 0.0, %v2473
        %v2475 = vpop.f32.mrb[0].mxu0
        %2476 = vmatprep.mubr.f32.mxu0 0.0
        %2477 = vmatmul.mubr.f32.gmra.mrb[0].mxu0 %v1569
        %v2478 = vpop.f32.mrb[0].mxu0
        %v2479 = vadd.f32 0.0, %v2478
        %v2480 = vpop.f32.mrb[0].mxu0
        %2481 = vmatprep.mubr.f32.mxu0 0.0
        %2482 = vmatmul.mubr.f32.gmra.mrb[0].mxu0 %v1571
        %v2483 = vpop.f32.mrb[0].mxu0
        %v2484 = vadd.f32 0.0, %v2483
        %v2485 = vpop.f32.mrb[0].mxu0
        %2486 = vmatprep.mubr.f32.mxu0 0.0
        %2487 = vmatmul.mubr.f32.gmra.mrb[0].mxu0 %v1573
        %v2488 = vpop.f32.mrb[0].mxu0
        %v2489 = vadd.f32 0.0, %v2488
        %v2490 = vpop.f32.mrb[0].mxu0
        %2491 = vmatprep.mubr.f32.mxu0 0.0
        %2492 = vmatmul.mubr.f32.gmra.mrb[0].mxu0 %v1575
        %v2493 = vpop.f32.mrb[0].mxu0
        %v2494 = vadd.f32 0.0, %v2493
        %v2495 = vpop.f32.mrb[0].mxu0
        %2496 = vmatprep.mubr.f32.mxu0 0.0
        %2497 = vmatmul.mubr.f32.gmra.mrb[0].mxu0 %v1577
        %v2498 = vpop.f32.mrb[0].mxu0
        %v2499 = vadd.f32 0.0, %v2498
        %v2500 = vpop.f32.mrb[0].mxu0
        %2501 = vmatprep.mubr.f32.mxu0 0.0
        %2502 = vmatmul.mubr.f32.gmra.mrb[0].mxu0 %v1579
        %v2503 = vpop.f32.mrb[0].mxu0
        %v2504 = vadd.f32 0.0, %v2503
        %v2505 = vpop.f32.mrb[0].mxu0
        %2506 = vmatprep.mubr.f32.mxu0 0.0
        %2507 = vmatmul.mubr.f32.gmra.mrb[0].mxu0 %v1581
        %v2508 = vpop.f32.mrb[0].mxu0
        %v2509 = vadd.f32 0.0, %v2508
        %v2510 = vpop.f32.mrb[0].mxu0
        %2511 = vmatprep.mubr.f32.mxu0 0.0
        %2512 = vmatmul.mubr.f32.gmra.mrb[0].mxu0 %v1583
        %v2513 = vpop.f32.mrb[0].mxu0
        %v2514 = vadd.f32 0.0, %v2513
        %v2515 = vpop.f32.mrb[0].mxu0
        %2516 = vmatprep.mubr.f32.mxu0 0.0
        %2517 = vmatmul.mubr.f32.gmra.mrb[0].mxu0 %v1585
        %v2518 = vpop.f32.mrb[0].mxu0
        %v2519 = vadd.f32 0.0, %v2518
        %v2520 = vpop.f32.mrb[0].mxu0
        %2521 = vmatprep.mubr.f32.mxu0 0.0
        %2522 = vmatmul.mubr.f32.gmra.mrb[0].mxu0 %v1587
        %v2523 = vpop.f32.mrb[0].mxu0
        %v2524 = vadd.f32 0.0, %v2523
        %v2525 = vpop.f32.mrb[0].mxu0
        %2526 = vmatprep.mubr.f32.mxu0 0.0
        %2527 = vmatmul.mubr.f32.gmra.mrb[0].mxu0 %v1589
        %v2528 = vpop.f32.mrb[0].mxu0
        %v2529 = vadd.f32 0.0, %v2528
        %v2530 = vpop.f32.mrb[0].mxu0
        %2531 = vmatprep.mubr.f32.mxu0 0.0
        %2532 = vmatmul.mubr.f32.gmra.mrb[0].mxu0 %v1591
        %v2533 = vpop.f32.mrb[0].mxu0
        %v2534 = vadd.f32 0.0, %v2533
        %v2535 = vpop.f32.mrb[0].mxu0
        %2536 = vmatprep.mubr.f32.mxu0 0.0
        %2537 = vmatmul.mubr.f32.gmra.mrb[0].mxu0 %v1593
        %v2538 = vpop.f32.mrb[0].mxu0
        %v2539 = vadd.f32 0.0, %v2538
        %v2540 = vpop.f32.mrb[0].mxu0
        %2541 = vmatprep.mubr.f32.mxu0 0.0
        %2542 = vmatmul.mubr.f32.gmra.mrb[0].mxu0 %v1595
        %v2543 = vpop.f32.mrb[0].mxu0
        %v2544 = vadd.f32 0.0, %v2543
        %v2545 = vpop.f32.mrb[0].mxu0
        %2546 = vmatprep.mubr.f32.mxu0 0.0
        %2547 = vmatmul.mubr.f32.gmra.mrb[0].mxu0 %v1597
        %v2548 = vpop.f32.mrb[0].mxu0
        %v2549 = vadd.f32 0.0, %v2548
        %v2550 = vpop.f32.mrb[0].mxu0
        %2551 = vmatprep.mubr.f32.mxu0 0.0
        %2552 = vmatmul.mubr.f32.gmra.mrb[0].mxu0 %v1599
        %v2553 = vpop.f32.mrb[0].mxu0
        %v2554 = vadd.f32 0.0, %v2553
        %v2555 = vpop.f32.mrb[0].mxu0
        %2556 = vmatprep.mubr.f32.mxu0 0.0
        %2557 = vmatmul.mubr.f32.gmra.mrb[0].mxu0 %v1601
        %v2558 = vpop.f32.mrb[0].mxu0
        %v2559 = vadd.f32 0.0, %v2558
        %v2560 = vpop.f32.mrb[0].mxu0
        %2561 = vmatprep.mubr.f32.mxu0 0.0
        %2562 = vmatmul.mubr.f32.gmra.mrb[0].mxu0 %v1603
        %v2563 = vpop.f32.mrb[0].mxu0
        %v2564 = vadd.f32 0.0, %v2563
        %v2565 = vpop.f32.mrb[0].mxu0
        %2566 = vmatprep.mubr.f32.mxu0 0.0
        %2567 = vmatmul.mubr.f32.gmra.mrb[0].mxu0 %v1605
        %v2568 = vpop.f32.mrb[0].mxu0
        %v2569 = vadd.f32 0.0, %v2568
        %v2570 = vpop.f32.mrb[0].mxu0
        %2571 = vmatprep.mubr.f32.mxu0 0.0
        %2572 = vmatmul.mubr.f32.gmra.mrb[0].mxu0 %v1607
        %v2573 = vpop.f32.mrb[0].mxu0
        %v2574 = vadd.f32 0.0, %v2573
        %v2575 = vpop.f32.mrb[0].mxu0
        %2576 = vmatprep.mubr.f32.mxu0 0.0
        %2577 = vmatmul.mubr.f32.gmra.mrb[0].mxu0 %v1609
        %v2578 = vpop.f32.mrb[0].mxu0
        %v2579 = vadd.f32 0.0, %v2578
        %v2580 = vpop.f32.mrb[0].mxu0
        %2581 = vmatprep.mubr.f32.mxu0 0.0
        %2582 = vmatmul.mubr.f32.gmra.mrb[0].mxu0 %v1611
        %v2583 = vpop.f32.mrb[0].mxu0
        %v2584 = vadd.f32 0.0, %v2583
        %v2585 = vpop.f32.mrb[0].mxu0
        %2586 = vmatprep.mubr.f32.mxu0 0.0
        %2587 = vmatmul.mubr.f32.gmra.mrb[0].mxu0 %v1613
        %v2588 = vpop.f32.mrb[0].mxu0
        %v2589 = vadd.f32 0.0, %v2588
        %v2590 = vpop.f32.mrb[0].mxu0
        %2591 = vmatprep.mubr.f32.mxu0 0.0
        %2592 = vmatmul.mubr.f32.gmra.mrb[0].mxu0 %v1615
        %v2593 = vpop.f32.mrb[0].mxu0
        %v2594 = vadd.f32 0.0, %v2593
        %v2595 = vpop.f32.mrb[0].mxu0
        %2596 = vmatprep.mubr.f32.mxu0 0.0
        %2597 = vmatmul.mubr.f32.gmra.mrb[0].mxu0 %v1617
        %v2598 = vpop.f32.mrb[0].mxu0
        %v2599 = vadd.f32 0.0, %v2598
        %v2600 = vpop.f32.mrb[0].mxu0
        %2601 = vmatprep.mubr.f32.mxu0 0.0
        %2602 = vmatmul.mubr.f32.gmra.mrb[0].mxu0 %v1619
        %v2603 = vpop.f32.mrb[0].mxu0
        %v2604 = vadd.f32 0.0, %v2603
        %v2605 = vpop.f32.mrb[0].mxu0
        %2606 = vmatprep.mubr.f32.mxu0 0.0
        %2607 = vmatmul.mubr.f32.gmra.mrb[0].mxu0 %v1621
        %v2608 = vpop.f32.mrb[0].mxu0
        %v2609 = vadd.f32 0.0, %v2608
        %v2610 = vpop.f32.mrb[0].mxu0
        %2611 = vmatprep.mubr.f32.mxu0 0.0
        %2612 = vmatmul.mubr.f32.gmra.mrb[0].mxu0 %v1623
        %v2613 = vpop.f32.mrb[0].mxu0
        %v2614 = vadd.f32 0.0, %v2613
        %v2615 = vpop.f32.mrb[0].mxu0
        %2616 = vmatprep.mubr.f32.mxu0 0.0
        %2617 = vmatmul.mubr.f32.gmra.mrb[0].mxu0 %v1561
        %v2618 = vpop.f32.mrb[0].mxu0
        %v2619 = vadd.f32 0.0, %v2618
        %v2620 = vpop.f32.mrb[0].mxu0
        %2621 = vmatprep.mubr.f32.mxu0 0.0
        %2622 = vmatmul.mubr.f32.gmra.mrb[0].mxu0 %v1563
        %v2623 = vpop.f32.mrb[0].mxu0
        %v2624 = vadd.f32 0.0, %v2623
        %v2625 = vpop.f32.mrb[0].mxu0
        %2626 = vdwg.mxu0
        %v2627 = vadd.f32 %v2368, %v2469
        %v2628 = vadd.f32 %v2369, %v2474
        %v2629 = vadd.f32 %v2370, %v2479
        %v2630 = vadd.f32 %v2371, %v2484
        %v2631 = vadd.f32 %v2372, %v2489
        %v2632 = vadd.f32 %v2373, %v2494
        %v2633 = vadd.f32 %v2374, %v2499
        %v2634 = vadd.f32 %v2375, %v2504
        %v2635 = vadd.f32 %v2376, %v2509
        %v2636 = vadd.f32 %v2377, %v2514
        %v2637 = vadd.f32 %v2378, %v2519
        %v2638 = vadd.f32 %v2379, %v2524
        %v2639 = vadd.f32 %v2380, %v2529
        %v2640 = vadd.f32 %v2381, %v2534
        %v2641 = vadd.f32 %v2382, %v2539
        %v2642 = vadd.f32 %v2383, %v2544
        %v2643 = vadd.f32 %v2384, %v2549
        %v2644 = vadd.f32 %v2385, %v2554
        %v2645 = vadd.f32 %v2386, %v2559
        %v2646 = vadd.f32 %v2387, %v2564
        %v2647 = vadd.f32 %v2388, %v2569
        %v2648 = vadd.f32 %v2389, %v2574
        %v2649 = vadd.f32 %v2390, %v2579
        %v2650 = vadd.f32 %v2391, %v2584
        %v2651 = vadd.f32 %v2392, %v2589
        %v2652 = vadd.f32 %v2393, %v2594
        %v2653 = vadd.f32 %v2394, %v2599
        %v2654 = vadd.f32 %v2395, %v2604
        %v2655 = vadd.f32 %v2396, %v2609
        %v2656 = vadd.f32 %v2397, %v2614
        %v2657 = vadd.f32 %v2398, %v2619
        %v2658 = vadd.f32 %v2399, %v2624
        %s2659 = scalar_lea.vmem %s3, 48
        %v2660 = vld [vmem:[%s2659] sm:$0xff]
        %2661 = vmatprep.subr.mxu0 0.0
        %2662 = vmatpush1.msra.mxu0 %v2660
        %2663 = vmatprep.subr.mxu0 0.0
        %2664 = vmatpush1.msra.mxu0 0.0
        %2665 = vmatprep.subr.mxu0 0.0
        %2666 = vmatpush1.msra.mxu0 0.0
        %2667 = vmatprep.subr.mxu0 0.0
        %2668 = vmatpush1.msra.mxu0 0.0
        %2669 = vmatprep.subr.mxu0 0.0
        %2670 = vmatpush1.msra.mxu0 0.0
        %2671 = vmatprep.subr.mxu0 0.0
        %2672 = vmatpush1.msra.mxu0 0.0
        %2673 = vmatprep.subr.mxu0 0.0
        %2674 = vmatpush1.msra.mxu0 0.0
        %2675 = vmatprep.subr.mxu0 0.0
        %2676 = vmatpush1.msra.mxu0 0.0
        %2677 = vmatprep.subr.mxu0 0.0
        %2678 = vmatpush1.msra.mxu0 0.0
        %2679 = vmatprep.subr.mxu0 0.0
        %2680 = vmatpush1.msra.mxu0 0.0
        %2681 = vmatprep.subr.mxu0 0.0
        %2682 = vmatpush1.msra.mxu0 0.0
        %2683 = vmatprep.subr.mxu0 0.0
        %2684 = vmatpush1.msra.mxu0 0.0
        %2685 = vmatprep.subr.mxu0 0.0
        %2686 = vmatpush1.msra.mxu0 0.0
        %2687 = vmatprep.subr.mxu0 0.0
        %2688 = vmatpush1.msra.mxu0 0.0
        %2689 = vmatprep.subr.mxu0 0.0
        %2690 = vmatpush1.msra.mxu0 0.0
        %2691 = vmatprep.subr.mxu0 0.0
        %2692 = vmatpush1.msra.mxu0 0.0
        %2693 = vmatprep.subr.mxu0 0.0
        %2694 = vmatpush1.msra.mxu0 0.0
        %2695 = vmatprep.subr.mxu0 0.0
        %2696 = vmatpush1.msra.mxu0 0.0
        %2697 = vmatprep.subr.mxu0 0.0
        %2698 = vmatpush1.msra.mxu0 0.0
        %2699 = vmatprep.subr.mxu0 0.0
        %2700 = vmatpush1.msra.mxu0 0.0
        %2701 = vmatprep.subr.mxu0 0.0
        %2702 = vmatpush1.msra.mxu0 0.0
        %2703 = vmatprep.subr.mxu0 0.0
        %2704 = vmatpush1.msra.mxu0 0.0
        %2705 = vmatprep.subr.mxu0 0.0
        %2706 = vmatpush1.msra.mxu0 0.0
        %2707 = vmatprep.subr.mxu0 0.0
        %2708 = vmatpush1.msra.mxu0 0.0
        %2709 = vmatprep.subr.mxu0 0.0
        %2710 = vmatpush1.msra.mxu0 0.0
        %2711 = vmatprep.subr.mxu0 0.0
        %2712 = vmatpush1.msra.mxu0 0.0
        %2713 = vmatprep.subr.mxu0 0.0
        %2714 = vmatpush1.msra.mxu0 0.0
        %2715 = vmatprep.subr.mxu0 0.0
        %2716 = vmatpush1.msra.mxu0 0.0
        %2717 = vmatprep.subr.mxu0 0.0
        %2718 = vmatpush1.msra.mxu0 0.0
        %2719 = vmatprep.subr.mxu0 0.0
        %2720 = vmatpush1.msra.mxu0 0.0
        %2721 = vmatprep.subr.mxu0 0.0
        %2722 = vmatpush1.msra.mxu0 0.0
        %2723 = vmatprep.subr.mxu0 0.0
        %2724 = vmatpush1.msra.mxu0 0.0
        %2725 = vmatprep.mubr.f32.mxu0 0.0
        %2726 = vmatmul.mubr.f32.gmra.mrb[0].mxu0 %v1213
        %v2727 = vpop.f32.mrb[0].mxu0
        %v2728 = vadd.f32 0.0, %v2727
        %v2729 = vpop.f32.mrb[0].mxu0
        %2730 = vmatprep.mubr.f32.mxu0 0.0
        %2731 = vmatmul.mubr.f32.gmra.mrb[0].mxu0 %v1215
        %v2732 = vpop.f32.mrb[0].mxu0
        %v2733 = vadd.f32 0.0, %v2732
        %v2734 = vpop.f32.mrb[0].mxu0
        %2735 = vmatprep.mubr.f32.mxu0 0.0
        %2736 = vmatmul.mubr.f32.gmra.mrb[0].mxu0 %v1217
        %v2737 = vpop.f32.mrb[0].mxu0
        %v2738 = vadd.f32 0.0, %v2737
        %v2739 = vpop.f32.mrb[0].mxu0
        %2740 = vmatprep.mubr.f32.mxu0 0.0
        %2741 = vmatmul.mubr.f32.gmra.mrb[0].mxu0 %v1219
        %v2742 = vpop.f32.mrb[0].mxu0
        %v2743 = vadd.f32 0.0, %v2742
        %v2744 = vpop.f32.mrb[0].mxu0
        %2745 = vmatprep.mubr.f32.mxu0 0.0
        %2746 = vmatmul.mubr.f32.gmra.mrb[0].mxu0 %v1221
        %v2747 = vpop.f32.mrb[0].mxu0
        %v2748 = vadd.f32 0.0, %v2747
        %v2749 = vpop.f32.mrb[0].mxu0
        %2750 = vmatprep.mubr.f32.mxu0 0.0
        %2751 = vmatmul.mubr.f32.gmra.mrb[0].mxu0 %v1223
        %v2752 = vpop.f32.mrb[0].mxu0
        %v2753 = vadd.f32 0.0, %v2752
        %v2754 = vpop.f32.mrb[0].mxu0
        %2755 = vmatprep.mubr.f32.mxu0 0.0
        %2756 = vmatmul.mubr.f32.gmra.mrb[0].mxu0 %v1225
        %v2757 = vpop.f32.mrb[0].mxu0
        %v2758 = vadd.f32 0.0, %v2757
        %v2759 = vpop.f32.mrb[0].mxu0
        %2760 = vmatprep.mubr.f32.mxu0 0.0
        %2761 = vmatmul.mubr.f32.gmra.mrb[0].mxu0 %v1227
        %v2762 = vpop.f32.mrb[0].mxu0
        %v2763 = vadd.f32 0.0, %v2762
        %v2764 = vpop.f32.mrb[0].mxu0
        %2765 = vmatprep.mubr.f32.mxu0 0.0
        %2766 = vmatmul.mubr.f32.gmra.mrb[0].mxu0 %v1229
        %v2767 = vpop.f32.mrb[0].mxu0
        %v2768 = vadd.f32 0.0, %v2767
        %v2769 = vpop.f32.mrb[0].mxu0
        %2770 = vmatprep.mubr.f32.mxu0 0.0
        %2771 = vmatmul.mubr.f32.gmra.mrb[0].mxu0 %v1231
        %v2772 = vpop.f32.mrb[0].mxu0
        %v2773 = vadd.f32 0.0, %v2772
        %v2774 = vpop.f32.mrb[0].mxu0
        %2775 = vmatprep.mubr.f32.mxu0 0.0
        %2776 = vmatmul.mubr.f32.gmra.mrb[0].mxu0 %v1233
        %v2777 = vpop.f32.mrb[0].mxu0
        %v2778 = vadd.f32 0.0, %v2777
        %v2779 = vpop.f32.mrb[0].mxu0
        %2780 = vmatprep.mubr.f32.mxu0 0.0
        %2781 = vmatmul.mubr.f32.gmra.mrb[0].mxu0 %v1235
        %v2782 = vpop.f32.mrb[0].mxu0
        %v2783 = vadd.f32 0.0, %v2782
        %v2784 = vpop.f32.mrb[0].mxu0
        %2785 = vmatprep.mubr.f32.mxu0 0.0
        %2786 = vmatmul.mubr.f32.gmra.mrb[0].mxu0 %v1237
        %v2787 = vpop.f32.mrb[0].mxu0
        %v2788 = vadd.f32 0.0, %v2787
        %v2789 = vpop.f32.mrb[0].mxu0
        %2790 = vmatprep.mubr.f32.mxu0 0.0
        %2791 = vmatmul.mubr.f32.gmra.mrb[0].mxu0 %v1239
        %v2792 = vpop.f32.mrb[0].mxu0
        %v2793 = vadd.f32 0.0, %v2792
        %v2794 = vpop.f32.mrb[0].mxu0
        %2795 = vmatprep.mubr.f32.mxu0 0.0
        %2796 = vmatmul.mubr.f32.gmra.mrb[0].mxu0 %v1241
        %v2797 = vpop.f32.mrb[0].mxu0
        %v2798 = vadd.f32 0.0, %v2797
        %v2799 = vpop.f32.mrb[0].mxu0
        %2800 = vmatprep.mubr.f32.mxu0 0.0
        %2801 = vmatmul.mubr.f32.gmra.mrb[0].mxu0 %v1243
        %v2802 = vpop.f32.mrb[0].mxu0
        %v2803 = vadd.f32 0.0, %v2802
        %v2804 = vpop.f32.mrb[0].mxu0
        %2805 = vmatprep.mubr.f32.mxu0 0.0
        %2806 = vmatmul.mubr.f32.gmra.mrb[0].mxu0 %v1245
        %v2807 = vpop.f32.mrb[0].mxu0
        %v2808 = vadd.f32 0.0, %v2807
        %v2809 = vpop.f32.mrb[0].mxu0
        %2810 = vmatprep.mubr.f32.mxu0 0.0
        %2811 = vmatmul.mubr.f32.gmra.mrb[0].mxu0 %v1247
        %v2812 = vpop.f32.mrb[0].mxu0
        %v2813 = vadd.f32 0.0, %v2812
        %v2814 = vpop.f32.mrb[0].mxu0
        %2815 = vmatprep.mubr.f32.mxu0 0.0
        %2816 = vmatmul.mubr.f32.gmra.mrb[0].mxu0 %v1249
        %v2817 = vpop.f32.mrb[0].mxu0
        %v2818 = vadd.f32 0.0, %v2817
        %v2819 = vpop.f32.mrb[0].mxu0
        %2820 = vmatprep.mubr.f32.mxu0 0.0
        %2821 = vmatmul.mubr.f32.gmra.mrb[0].mxu0 %v1251
        %v2822 = vpop.f32.mrb[0].mxu0
        %v2823 = vadd.f32 0.0, %v2822
        %v2824 = vpop.f32.mrb[0].mxu0
        %2825 = vmatprep.mubr.f32.mxu0 0.0
        %2826 = vmatmul.mubr.f32.gmra.mrb[0].mxu0 %v1253
        %v2827 = vpop.f32.mrb[0].mxu0
        %v2828 = vadd.f32 0.0, %v2827
        %v2829 = vpop.f32.mrb[0].mxu0
        %2830 = vmatprep.mubr.f32.mxu0 0.0
        %2831 = vmatmul.mubr.f32.gmra.mrb[0].mxu0 %v1255
        %v2832 = vpop.f32.mrb[0].mxu0
        %v2833 = vadd.f32 0.0, %v2832
        %v2834 = vpop.f32.mrb[0].mxu0
        %2835 = vmatprep.mubr.f32.mxu0 0.0
        %2836 = vmatmul.mubr.f32.gmra.mrb[0].mxu0 %v1257
        %v2837 = vpop.f32.mrb[0].mxu0
        %v2838 = vadd.f32 0.0, %v2837
        %v2839 = vpop.f32.mrb[0].mxu0
        %2840 = vmatprep.mubr.f32.mxu0 0.0
        %2841 = vmatmul.mubr.f32.gmra.mrb[0].mxu0 %v1259
        %v2842 = vpop.f32.mrb[0].mxu0
        %v2843 = vadd.f32 0.0, %v2842
        %v2844 = vpop.f32.mrb[0].mxu0
        %2845 = vmatprep.mubr.f32.mxu0 0.0
        %2846 = vmatmul.mubr.f32.gmra.mrb[0].mxu0 %v1261
        %v2847 = vpop.f32.mrb[0].mxu0
        %v2848 = vadd.f32 0.0, %v2847
        %v2849 = vpop.f32.mrb[0].mxu0
        %2850 = vmatprep.mubr.f32.mxu0 0.0
        %2851 = vmatmul.mubr.f32.gmra.mrb[0].mxu0 %v1263
        %v2852 = vpop.f32.mrb[0].mxu0
        %v2853 = vadd.f32 0.0, %v2852
        %v2854 = vpop.f32.mrb[0].mxu0
        %2855 = vmatprep.mubr.f32.mxu0 0.0
        %2856 = vmatmul.mubr.f32.gmra.mrb[0].mxu0 %v1265
        %v2857 = vpop.f32.mrb[0].mxu0
        %v2858 = vadd.f32 0.0, %v2857
        %v2859 = vpop.f32.mrb[0].mxu0
        %2860 = vmatprep.mubr.f32.mxu0 0.0
        %2861 = vmatmul.mubr.f32.gmra.mrb[0].mxu0 %v1267
        %v2862 = vpop.f32.mrb[0].mxu0
        %v2863 = vadd.f32 0.0, %v2862
        %v2864 = vpop.f32.mrb[0].mxu0
        %2865 = vmatprep.mubr.f32.mxu0 0.0
        %2866 = vmatmul.mubr.f32.gmra.mrb[0].mxu0 %v1205
        %v2867 = vpop.f32.mrb[0].mxu0
        %v2868 = vadd.f32 0.0, %v2867
        %v2869 = vpop.f32.mrb[0].mxu0
        %2870 = vmatprep.mubr.f32.mxu0 0.0
        %2871 = vmatmul.mubr.f32.gmra.mrb[0].mxu0 %v1207
        %v2872 = vpop.f32.mrb[0].mxu0
        %v2873 = vadd.f32 0.0, %v2872
        %v2874 = vpop.f32.mrb[0].mxu0
        %2875 = vmatprep.mubr.f32.mxu0 0.0
        %2876 = vmatmul.mubr.f32.gmra.mrb[0].mxu0 %v1209
        %v2877 = vpop.f32.mrb[0].mxu0
        %v2878 = vadd.f32 0.0, %v2877
        %v2879 = vpop.f32.mrb[0].mxu0
        %2880 = vmatprep.mubr.f32.mxu0 0.0
        %2881 = vmatmul.mubr.f32.gmra.mrb[0].mxu0 %v1211
        %v2882 = vpop.f32.mrb[0].mxu0
        %v2883 = vadd.f32 0.0, %v2882
        %v2884 = vpop.f32.mrb[0].mxu0
        %2885 = vdwg.mxu0
        %v2886 = vadd.f32 %v2627, %v2728
        %v2887 = vadd.f32 %v2628, %v2733
        %v2888 = vadd.f32 %v2629, %v2738
        %v2889 = vadd.f32 %v2630, %v2743
        %v2890 = vadd.f32 %v2631, %v2748
        %v2891 = vadd.f32 %v2632, %v2753
        %v2892 = vadd.f32 %v2633, %v2758
        %v2893 = vadd.f32 %v2634, %v2763
        %v2894 = vadd.f32 %v2635, %v2768
        %v2895 = vadd.f32 %v2636, %v2773
        %v2896 = vadd.f32 %v2637, %v2778
        %v2897 = vadd.f32 %v2638, %v2783
        %v2898 = vadd.f32 %v2639, %v2788
        %v2899 = vadd.f32 %v2640, %v2793
        %v2900 = vadd.f32 %v2641, %v2798
        %v2901 = vadd.f32 %v2642, %v2803
        %v2902 = vadd.f32 %v2643, %v2808
        %v2903 = vadd.f32 %v2644, %v2813
        %v2904 = vadd.f32 %v2645, %v2818
        %v2905 = vadd.f32 %v2646, %v2823
        %v2906 = vadd.f32 %v2647, %v2828
        %v2907 = vadd.f32 %v2648, %v2833
        %v2908 = vadd.f32 %v2649, %v2838
        %v2909 = vadd.f32 %v2650, %v2843
        %v2910 = vadd.f32 %v2651, %v2848
        %v2911 = vadd.f32 %v2652, %v2853
        %v2912 = vadd.f32 %v2653, %v2858
        %v2913 = vadd.f32 %v2654, %v2863
        %v2914 = vadd.f32 %v2655, %v2868
        %v2915 = vadd.f32 %v2656, %v2873
        %v2916 = vadd.f32 %v2657, %v2878
        %v2917 = vadd.f32 %v2658, %v2883
        %s2918 = scalar_lea.vmem %s3, 56
        %v2919 = vld [vmem:[%s2918] sm:$0xff]
        %2920 = vmatprep.subr.mxu0 0.0
        %2921 = vmatpush1.msra.mxu0 %v2919
        %2922 = vmatprep.subr.mxu0 0.0
        %2923 = vmatpush1.msra.mxu0 0.0
        %2924 = vmatprep.subr.mxu0 0.0
        %2925 = vmatpush1.msra.mxu0 0.0
        %2926 = vmatprep.subr.mxu0 0.0
        %2927 = vmatpush1.msra.mxu0 0.0
        %2928 = vmatprep.subr.mxu0 0.0
        %2929 = vmatpush1.msra.mxu0 0.0
        %2930 = vmatprep.subr.mxu0 0.0
        %2931 = vmatpush1.msra.mxu0 0.0
        %2932 = vmatprep.subr.mxu0 0.0
        %2933 = vmatpush1.msra.mxu0 0.0
        %2934 = vmatprep.subr.mxu0 0.0
        %2935 = vmatpush1.msra.mxu0 0.0
        %2936 = vmatprep.subr.mxu0 0.0
        %2937 = vmatpush1.msra.mxu0 0.0
        %2938 = vmatprep.subr.mxu0 0.0
        %2939 = vmatpush1.msra.mxu0 0.0
        %2940 = vmatprep.subr.mxu0 0.0
        %2941 = vmatpush1.msra.mxu0 0.0
        %2942 = vmatprep.subr.mxu0 0.0
        %2943 = vmatpush1.msra.mxu0 0.0
        %2944 = vmatprep.subr.mxu0 0.0
        %2945 = vmatpush1.msra.mxu0 0.0
        %2946 = vmatprep.subr.mxu0 0.0
        %2947 = vmatpush1.msra.mxu0 0.0
        %2948 = vmatprep.subr.mxu0 0.0
        %2949 = vmatpush1.msra.mxu0 0.0
        %2950 = vmatprep.subr.mxu0 0.0
        %2951 = vmatpush1.msra.mxu0 0.0
        %2952 = vmatprep.subr.mxu0 0.0
        %2953 = vmatpush1.msra.mxu0 0.0
        %2954 = vmatprep.subr.mxu0 0.0
        %2955 = vmatpush1.msra.mxu0 0.0
        %2956 = vmatprep.subr.mxu0 0.0
        %2957 = vmatpush1.msra.mxu0 0.0
        %2958 = vmatprep.subr.mxu0 0.0
        %2959 = vmatpush1.msra.mxu0 0.0
        %2960 = vmatprep.subr.mxu0 0.0
        %2961 = vmatpush1.msra.mxu0 0.0
        %2962 = vmatprep.subr.mxu0 0.0
        %2963 = vmatpush1.msra.mxu0 0.0
        %2964 = vmatprep.subr.mxu0 0.0
        %2965 = vmatpush1.msra.mxu0 0.0
        %2966 = vmatprep.subr.mxu0 0.0
        %2967 = vmatpush1.msra.mxu0 0.0
        %2968 = vmatprep.subr.mxu0 0.0
        %2969 = vmatpush1.msra.mxu0 0.0
        %2970 = vmatprep.subr.mxu0 0.0
        %2971 = vmatpush1.msra.mxu0 0.0
        %2972 = vmatprep.subr.mxu0 0.0
        %2973 = vmatpush1.msra.mxu0 0.0
        %2974 = vmatprep.subr.mxu0 0.0
        %2975 = vmatpush1.msra.mxu0 0.0
        %2976 = vmatprep.subr.mxu0 0.0
        %2977 = vmatpush1.msra.mxu0 0.0
        %2978 = vmatprep.subr.mxu0 0.0
        %2979 = vmatpush1.msra.mxu0 0.0
        %2980 = vmatprep.subr.mxu0 0.0
        %2981 = vmatpush1.msra.mxu0 0.0
        %2982 = vmatprep.subr.mxu0 0.0
        %2983 = vmatpush1.msra.mxu0 0.0
        %2984 = vmatprep.mubr.f32.mxu0 0.0
        %2985 = vmatmul.mubr.f32.gmra.mrb[0].mxu0 %v924
        %v2986 = vpop.f32.mrb[0].mxu0
        %v2987 = vadd.f32 0.0, %v2986
        %v2988 = vpop.f32.mrb[0].mxu0
        %2989 = vmatprep.mubr.f32.mxu0 0.0
        %2990 = vmatmul.mubr.f32.gmra.mrb[0].mxu0 %v926
        %v2991 = vpop.f32.mrb[0].mxu0
        %v2992 = vadd.f32 0.0, %v2991
        %v2993 = vpop.f32.mrb[0].mxu0
        %2994 = vmatprep.mubr.f32.mxu0 0.0
        %2995 = vmatmul.mubr.f32.gmra.mrb[0].mxu0 %v928
        %v2996 = vpop.f32.mrb[0].mxu0
        %v2997 = vadd.f32 0.0, %v2996
        %v2998 = vpop.f32.mrb[0].mxu0
        %2999 = vmatprep.mubr.f32.mxu0 0.0
        %3000 = vmatmul.mubr.f32.gmra.mrb[0].mxu0 %v930
        %v3001 = vpop.f32.mrb[0].mxu0
        %v3002 = vadd.f32 0.0, %v3001
        %v3003 = vpop.f32.mrb[0].mxu0
        %3004 = vmatprep.mubr.f32.mxu0 0.0
        %3005 = vmatmul.mubr.f32.gmra.mrb[0].mxu0 %v932
        %v3006 = vpop.f32.mrb[0].mxu0
        %v3007 = vadd.f32 0.0, %v3006
        %v3008 = vpop.f32.mrb[0].mxu0
        %3009 = vmatprep.mubr.f32.mxu0 0.0
        %3010 = vmatmul.mubr.f32.gmra.mrb[0].mxu0 %v934
        %v3011 = vpop.f32.mrb[0].mxu0
        %v3012 = vadd.f32 0.0, %v3011
        %v3013 = vpop.f32.mrb[0].mxu0
        %3014 = vmatprep.mubr.f32.mxu0 0.0
        %3015 = vmatmul.mubr.f32.gmra.mrb[0].mxu0 %v936
        %v3016 = vpop.f32.mrb[0].mxu0
        %v3017 = vadd.f32 0.0, %v3016
        %v3018 = vpop.f32.mrb[0].mxu0
        %3019 = vmatprep.mubr.f32.mxu0 0.0
        %3020 = vmatmul.mubr.f32.gmra.mrb[0].mxu0 %v938
        %v3021 = vpop.f32.mrb[0].mxu0
        %v3022 = vadd.f32 0.0, %v3021
        %v3023 = vpop.f32.mrb[0].mxu0
        %3024 = vmatprep.mubr.f32.mxu0 0.0
        %3025 = vmatmul.mubr.f32.gmra.mrb[0].mxu0 %v940
        %v3026 = vpop.f32.mrb[0].mxu0
        %v3027 = vadd.f32 0.0, %v3026
        %v3028 = vpop.f32.mrb[0].mxu0
        %3029 = vmatprep.mubr.f32.mxu0 0.0
        %3030 = vmatmul.mubr.f32.gmra.mrb[0].mxu0 %v942
        %v3031 = vpop.f32.mrb[0].mxu0
        %v3032 = vadd.f32 0.0, %v3031
        %v3033 = vpop.f32.mrb[0].mxu0
        %3034 = vmatprep.mubr.f32.mxu0 0.0
        %3035 = vmatmul.mubr.f32.gmra.mrb[0].mxu0 %v944
        %v3036 = vpop.f32.mrb[0].mxu0
        %v3037 = vadd.f32 0.0, %v3036
        %v3038 = vpop.f32.mrb[0].mxu0
        %3039 = vmatprep.mubr.f32.mxu0 0.0
        %3040 = vmatmul.mubr.f32.gmra.mrb[0].mxu0 %v946
        %v3041 = vpop.f32.mrb[0].mxu0
        %v3042 = vadd.f32 0.0, %v3041
        %v3043 = vpop.f32.mrb[0].mxu0
        %3044 = vmatprep.mubr.f32.mxu0 0.0
        %3045 = vmatmul.mubr.f32.gmra.mrb[0].mxu0 %v948
        %v3046 = vpop.f32.mrb[0].mxu0
        %v3047 = vadd.f32 0.0, %v3046
        %v3048 = vpop.f32.mrb[0].mxu0
        %3049 = vmatprep.mubr.f32.mxu0 0.0
        %3050 = vmatmul.mubr.f32.gmra.mrb[0].mxu0 %v950
        %v3051 = vpop.f32.mrb[0].mxu0
        %v3052 = vadd.f32 0.0, %v3051
        %v3053 = vpop.f32.mrb[0].mxu0
        %3054 = vmatprep.mubr.f32.mxu0 0.0
        %3055 = vmatmul.mubr.f32.gmra.mrb[0].mxu0 %v952
        %v3056 = vpop.f32.mrb[0].mxu0
        %v3057 = vadd.f32 0.0, %v3056
        %v3058 = vpop.f32.mrb[0].mxu0
        %3059 = vmatprep.mubr.f32.mxu0 0.0
        %3060 = vmatmul.mubr.f32.gmra.mrb[0].mxu0 %v954
        %v3061 = vpop.f32.mrb[0].mxu0
        %v3062 = vadd.f32 0.0, %v3061
        %v3063 = vpop.f32.mrb[0].mxu0
        %3064 = vmatprep.mubr.f32.mxu0 0.0
        %3065 = vmatmul.mubr.f32.gmra.mrb[0].mxu0 %v956
        %v3066 = vpop.f32.mrb[0].mxu0
        %v3067 = vadd.f32 0.0, %v3066
        %v3068 = vpop.f32.mrb[0].mxu0
        %3069 = vmatprep.mubr.f32.mxu0 0.0
        %3070 = vmatmul.mubr.f32.gmra.mrb[0].mxu0 %v958
        %v3071 = vpop.f32.mrb[0].mxu0
        %v3072 = vadd.f32 0.0, %v3071
        %v3073 = vpop.f32.mrb[0].mxu0
        %3074 = vmatprep.mubr.f32.mxu0 0.0
        %3075 = vmatmul.mubr.f32.gmra.mrb[0].mxu0 %v960
        %v3076 = vpop.f32.mrb[0].mxu0
        %v3077 = vadd.f32 0.0, %v3076
        %v3078 = vpop.f32.mrb[0].mxu0
        %3079 = vmatprep.mubr.f32.mxu0 0.0
        %3080 = vmatmul.mubr.f32.gmra.mrb[0].mxu0 %v962
        %v3081 = vpop.f32.mrb[0].mxu0
        %v3082 = vadd.f32 0.0, %v3081
        %v3083 = vpop.f32.mrb[0].mxu0
        %3084 = vmatprep.mubr.f32.mxu0 0.0
        %3085 = vmatmul.mubr.f32.gmra.mrb[0].mxu0 %v964
        %v3086 = vpop.f32.mrb[0].mxu0
        %v3087 = vadd.f32 0.0, %v3086
        %v3088 = vpop.f32.mrb[0].mxu0
        %3089 = vmatprep.mubr.f32.mxu0 0.0
        %3090 = vmatmul.mubr.f32.gmra.mrb[0].mxu0 %v966
        %v3091 = vpop.f32.mrb[0].mxu0
        %v3092 = vadd.f32 0.0, %v3091
        %v3093 = vpop.f32.mrb[0].mxu0
        %3094 = vmatprep.mubr.f32.mxu0 0.0
        %3095 = vmatmul.mubr.f32.gmra.mrb[0].mxu0 %v968
        %v3096 = vpop.f32.mrb[0].mxu0
        %v3097 = vadd.f32 0.0, %v3096
        %v3098 = vpop.f32.mrb[0].mxu0
        %3099 = vmatprep.mubr.f32.mxu0 0.0
        %3100 = vmatmul.mubr.f32.gmra.mrb[0].mxu0 %v970
        %v3101 = vpop.f32.mrb[0].mxu0
        %v3102 = vadd.f32 0.0, %v3101
        %v3103 = vpop.f32.mrb[0].mxu0
        %3104 = vmatprep.mubr.f32.mxu0 0.0
        %3105 = vmatmul.mubr.f32.gmra.mrb[0].mxu0 %v972
        %v3106 = vpop.f32.mrb[0].mxu0
        %v3107 = vadd.f32 0.0, %v3106
        %v3108 = vpop.f32.mrb[0].mxu0
        %3109 = vmatprep.mubr.f32.mxu0 0.0
        %3110 = vmatmul.mubr.f32.gmra.mrb[0].mxu0 %v974
        %v3111 = vpop.f32.mrb[0].mxu0
        %v3112 = vadd.f32 0.0, %v3111
        %v3113 = vpop.f32.mrb[0].mxu0
        %3114 = vmatprep.mubr.f32.mxu0 0.0
        %3115 = vmatmul.mubr.f32.gmra.mrb[0].mxu0 %v976
        %v3116 = vpop.f32.mrb[0].mxu0
        %v3117 = vadd.f32 0.0, %v3116
        %v3118 = vpop.f32.mrb[0].mxu0
        %3119 = vmatprep.mubr.f32.mxu0 0.0
        %3120 = vmatmul.mubr.f32.gmra.mrb[0].mxu0 %v978
        %v3121 = vpop.f32.mrb[0].mxu0
        %v3122 = vadd.f32 0.0, %v3121
        %v3123 = vpop.f32.mrb[0].mxu0
        %3124 = vmatprep.mubr.f32.mxu0 0.0
        %3125 = vmatmul.mubr.f32.gmra.mrb[0].mxu0 %v916
        %v3126 = vpop.f32.mrb[0].mxu0
        %v3127 = vadd.f32 0.0, %v3126
        %v3128 = vpop.f32.mrb[0].mxu0
        %3129 = vmatprep.mubr.f32.mxu0 0.0
        %3130 = vmatmul.mubr.f32.gmra.mrb[0].mxu0 %v918
        %v3131 = vpop.f32.mrb[0].mxu0
        %v3132 = vadd.f32 0.0, %v3131
        %v3133 = vpop.f32.mrb[0].mxu0
        %3134 = vmatprep.mubr.f32.mxu0 0.0
        %3135 = vmatmul.mubr.f32.gmra.mrb[0].mxu0 %v920
        %v3136 = vpop.f32.mrb[0].mxu0
        %v3137 = vadd.f32 0.0, %v3136
        %v3138 = vpop.f32.mrb[0].mxu0
        %3139 = vmatprep.mubr.f32.mxu0 0.0
        %3140 = vmatmul.mubr.f32.gmra.mrb[0].mxu0 %v922
        %v3141 = vpop.f32.mrb[0].mxu0
        %v3142 = vadd.f32 0.0, %v3141
        %v3143 = vpop.f32.mrb[0].mxu0
        %3144 = vdwg.mxu0
        %v3145 = vadd.f32 %v2886, %v2987
        %v3146 = vadd.f32 %v2887, %v2992
        %v3147 = vadd.f32 %v2888, %v2997
        %v3148 = vadd.f32 %v2889, %v3002
        %v3149 = vadd.f32 %v2890, %v3007
        %v3150 = vadd.f32 %v2891, %v3012
        %v3151 = vadd.f32 %v2892, %v3017
        %v3152 = vadd.f32 %v2893, %v3022
        %v3153 = vadd.f32 %v2894, %v3027
        %v3154 = vadd.f32 %v2895, %v3032
        %v3155 = vadd.f32 %v2896, %v3037
        %v3156 = vadd.f32 %v2897, %v3042
        %v3157 = vadd.f32 %v2898, %v3047
        %v3158 = vadd.f32 %v2899, %v3052
        %v3159 = vadd.f32 %v2900, %v3057
        %v3160 = vadd.f32 %v2901, %v3062
        %v3161 = vadd.f32 %v2902, %v3067
        %v3162 = vadd.f32 %v2903, %v3072
        %v3163 = vadd.f32 %v2904, %v3077
        %v3164 = vadd.f32 %v2905, %v3082
        %v3165 = vadd.f32 %v2906, %v3087
        %v3166 = vadd.f32 %v2907, %v3092
        %v3167 = vadd.f32 %v2908, %v3097
        %v3168 = vadd.f32 %v2909, %v3102
        %v3169 = vadd.f32 %v2910, %v3107
        %v3170 = vadd.f32 %v2911, %v3112
        %v3171 = vadd.f32 %v2912, %v3117
        %v3172 = vadd.f32 %v2913, %v3122
        %v3173 = vadd.f32 %v2914, %v3127
        %v3174 = vadd.f32 %v2915, %v3132
        %v3175 = vadd.f32 %v2916, %v3137
        %v3176 = vadd.f32 %v2917, %v3142
        %s3177 = scalar_lea.vmem %s3, 64
        %v3178 = vld [vmem:[%s3177] sm:$0xff]
        %3179 = vmatprep.subr.mxu0 0.0
        %3180 = vmatpush1.msra.mxu0 %v3178
        %3181 = vmatprep.subr.mxu0 0.0
        %3182 = vmatpush1.msra.mxu0 0.0
        %3183 = vmatprep.subr.mxu0 0.0
        %3184 = vmatpush1.msra.mxu0 0.0
        %3185 = vmatprep.subr.mxu0 0.0
        %3186 = vmatpush1.msra.mxu0 0.0
        %3187 = vmatprep.subr.mxu0 0.0
        %3188 = vmatpush1.msra.mxu0 0.0
        %3189 = vmatprep.subr.mxu0 0.0
        %3190 = vmatpush1.msra.mxu0 0.0
        %3191 = vmatprep.subr.mxu0 0.0
        %3192 = vmatpush1.msra.mxu0 0.0
        %3193 = vmatprep.subr.mxu0 0.0
        %3194 = vmatpush1.msra.mxu0 0.0
        %3195 = vmatprep.subr.mxu0 0.0
        %3196 = vmatpush1.msra.mxu0 0.0
        %3197 = vmatprep.subr.mxu0 0.0
        %3198 = vmatpush1.msra.mxu0 0.0
        %3199 = vmatprep.subr.mxu0 0.0
        %3200 = vmatpush1.msra.mxu0 0.0
        %3201 = vmatprep.subr.mxu0 0.0
        %3202 = vmatpush1.msra.mxu0 0.0
        %3203 = vmatprep.subr.mxu0 0.0
        %3204 = vmatpush1.msra.mxu0 0.0
        %3205 = vmatprep.subr.mxu0 0.0
        %3206 = vmatpush1.msra.mxu0 0.0
        %3207 = vmatprep.subr.mxu0 0.0
        %3208 = vmatpush1.msra.mxu0 0.0
        %3209 = vmatprep.subr.mxu0 0.0
        %3210 = vmatpush1.msra.mxu0 0.0
        %3211 = vmatprep.subr.mxu0 0.0
        %3212 = vmatpush1.msra.mxu0 0.0
        %3213 = vmatprep.subr.mxu0 0.0
        %3214 = vmatpush1.msra.mxu0 0.0
        %3215 = vmatprep.subr.mxu0 0.0
        %3216 = vmatpush1.msra.mxu0 0.0
        %3217 = vmatprep.subr.mxu0 0.0
        %3218 = vmatpush1.msra.mxu0 0.0
        %3219 = vmatprep.subr.mxu0 0.0
        %3220 = vmatpush1.msra.mxu0 0.0
        %3221 = vmatprep.subr.mxu0 0.0
        %3222 = vmatpush1.msra.mxu0 0.0
        %3223 = vmatprep.subr.mxu0 0.0
        %3224 = vmatpush1.msra.mxu0 0.0
        %3225 = vmatprep.subr.mxu0 0.0
        %3226 = vmatpush1.msra.mxu0 0.0
        %3227 = vmatprep.subr.mxu0 0.0
        %3228 = vmatpush1.msra.mxu0 0.0
        %3229 = vmatprep.subr.mxu0 0.0
        %3230 = vmatpush1.msra.mxu0 0.0
        %3231 = vmatprep.subr.mxu0 0.0
        %3232 = vmatpush1.msra.mxu0 0.0
        %3233 = vmatprep.subr.mxu0 0.0
        %3234 = vmatpush1.msra.mxu0 0.0
        %3235 = vmatprep.subr.mxu0 0.0
        %3236 = vmatpush1.msra.mxu0 0.0
        %3237 = vmatprep.subr.mxu0 0.0
        %3238 = vmatpush1.msra.mxu0 0.0
        %3239 = vmatprep.subr.mxu0 0.0
        %3240 = vmatpush1.msra.mxu0 0.0
        %3241 = vmatprep.subr.mxu0 0.0
        %3242 = vmatpush1.msra.mxu0 0.0
        %3243 = vmatprep.mubr.f32.mxu0 0.0
        %3244 = vmatmul.mubr.f32.gmra.mrb[0].mxu0 %v1569
        %v3245 = vpop.f32.mrb[0].mxu0
        %v3246 = vadd.f32 0.0, %v3245
        %v3247 = vpop.f32.mrb[0].mxu0
        %3248 = vmatprep.mubr.f32.mxu0 0.0
        %3249 = vmatmul.mubr.f32.gmra.mrb[0].mxu0 %v1571
        %v3250 = vpop.f32.mrb[0].mxu0
        %v3251 = vadd.f32 0.0, %v3250
        %v3252 = vpop.f32.mrb[0].mxu0
        %3253 = vmatprep.mubr.f32.mxu0 0.0
        %3254 = vmatmul.mubr.f32.gmra.mrb[0].mxu0 %v1573
        %v3255 = vpop.f32.mrb[0].mxu0
        %v3256 = vadd.f32 0.0, %v3255
        %v3257 = vpop.f32.mrb[0].mxu0
        %3258 = vmatprep.mubr.f32.mxu0 0.0
        %3259 = vmatmul.mubr.f32.gmra.mrb[0].mxu0 %v1575
        %v3260 = vpop.f32.mrb[0].mxu0
        %v3261 = vadd.f32 0.0, %v3260
        %v3262 = vpop.f32.mrb[0].mxu0
        %3263 = vmatprep.mubr.f32.mxu0 0.0
        %3264 = vmatmul.mubr.f32.gmra.mrb[0].mxu0 %v1577
        %v3265 = vpop.f32.mrb[0].mxu0
        %v3266 = vadd.f32 0.0, %v3265
        %v3267 = vpop.f32.mrb[0].mxu0
        %3268 = vmatprep.mubr.f32.mxu0 0.0
        %3269 = vmatmul.mubr.f32.gmra.mrb[0].mxu0 %v1579
        %v3270 = vpop.f32.mrb[0].mxu0
        %v3271 = vadd.f32 0.0, %v3270
        %v3272 = vpop.f32.mrb[0].mxu0
        %3273 = vmatprep.mubr.f32.mxu0 0.0
        %3274 = vmatmul.mubr.f32.gmra.mrb[0].mxu0 %v1581
        %v3275 = vpop.f32.mrb[0].mxu0
        %v3276 = vadd.f32 0.0, %v3275
        %v3277 = vpop.f32.mrb[0].mxu0
        %3278 = vmatprep.mubr.f32.mxu0 0.0
        %3279 = vmatmul.mubr.f32.gmra.mrb[0].mxu0 %v1583
        %v3280 = vpop.f32.mrb[0].mxu0
        %v3281 = vadd.f32 0.0, %v3280
        %v3282 = vpop.f32.mrb[0].mxu0
        %3283 = vmatprep.mubr.f32.mxu0 0.0
        %3284 = vmatmul.mubr.f32.gmra.mrb[0].mxu0 %v1585
        %v3285 = vpop.f32.mrb[0].mxu0
        %v3286 = vadd.f32 0.0, %v3285
        %v3287 = vpop.f32.mrb[0].mxu0
        %3288 = vmatprep.mubr.f32.mxu0 0.0
        %3289 = vmatmul.mubr.f32.gmra.mrb[0].mxu0 %v1587
        %v3290 = vpop.f32.mrb[0].mxu0
        %v3291 = vadd.f32 0.0, %v3290
        %v3292 = vpop.f32.mrb[0].mxu0
        %3293 = vmatprep.mubr.f32.mxu0 0.0
        %3294 = vmatmul.mubr.f32.gmra.mrb[0].mxu0 %v1589
        %v3295 = vpop.f32.mrb[0].mxu0
        %v3296 = vadd.f32 0.0, %v3295
        %v3297 = vpop.f32.mrb[0].mxu0
        %3298 = vmatprep.mubr.f32.mxu0 0.0
        %3299 = vmatmul.mubr.f32.gmra.mrb[0].mxu0 %v1591
        %v3300 = vpop.f32.mrb[0].mxu0
        %v3301 = vadd.f32 0.0, %v3300
        %v3302 = vpop.f32.mrb[0].mxu0
        %3303 = vmatprep.mubr.f32.mxu0 0.0
        %3304 = vmatmul.mubr.f32.gmra.mrb[0].mxu0 %v1593
        %v3305 = vpop.f32.mrb[0].mxu0
        %v3306 = vadd.f32 0.0, %v3305
        %v3307 = vpop.f32.mrb[0].mxu0
        %3308 = vmatprep.mubr.f32.mxu0 0.0
        %3309 = vmatmul.mubr.f32.gmra.mrb[0].mxu0 %v1595
        %v3310 = vpop.f32.mrb[0].mxu0
        %v3311 = vadd.f32 0.0, %v3310
        %v3312 = vpop.f32.mrb[0].mxu0
        %3313 = vmatprep.mubr.f32.mxu0 0.0
        %3314 = vmatmul.mubr.f32.gmra.mrb[0].mxu0 %v1597
        %v3315 = vpop.f32.mrb[0].mxu0
        %v3316 = vadd.f32 0.0, %v3315
        %v3317 = vpop.f32.mrb[0].mxu0
        %3318 = vmatprep.mubr.f32.mxu0 0.0
        %3319 = vmatmul.mubr.f32.gmra.mrb[0].mxu0 %v1599
        %v3320 = vpop.f32.mrb[0].mxu0
        %v3321 = vadd.f32 0.0, %v3320
        %v3322 = vpop.f32.mrb[0].mxu0
        %3323 = vmatprep.mubr.f32.mxu0 0.0
        %3324 = vmatmul.mubr.f32.gmra.mrb[0].mxu0 %v1601
        %v3325 = vpop.f32.mrb[0].mxu0
        %v3326 = vadd.f32 0.0, %v3325
        %v3327 = vpop.f32.mrb[0].mxu0
        %3328 = vmatprep.mubr.f32.mxu0 0.0
        %3329 = vmatmul.mubr.f32.gmra.mrb[0].mxu0 %v1603
        %v3330 = vpop.f32.mrb[0].mxu0
        %v3331 = vadd.f32 0.0, %v3330
        %v3332 = vpop.f32.mrb[0].mxu0
        %3333 = vmatprep.mubr.f32.mxu0 0.0
        %3334 = vmatmul.mubr.f32.gmra.mrb[0].mxu0 %v1605
        %v3335 = vpop.f32.mrb[0].mxu0
        %v3336 = vadd.f32 0.0, %v3335
        %v3337 = vpop.f32.mrb[0].mxu0
        %3338 = vmatprep.mubr.f32.mxu0 0.0
        %3339 = vmatmul.mubr.f32.gmra.mrb[0].mxu0 %v1607
        %v3340 = vpop.f32.mrb[0].mxu0
        %v3341 = vadd.f32 0.0, %v3340
        %v3342 = vpop.f32.mrb[0].mxu0
        %3343 = vmatprep.mubr.f32.mxu0 0.0
        %3344 = vmatmul.mubr.f32.gmra.mrb[0].mxu0 %v1609
        %v3345 = vpop.f32.mrb[0].mxu0
        %v3346 = vadd.f32 0.0, %v3345
        %v3347 = vpop.f32.mrb[0].mxu0
        %3348 = vmatprep.mubr.f32.mxu0 0.0
        %3349 = vmatmul.mubr.f32.gmra.mrb[0].mxu0 %v1611
        %v3350 = vpop.f32.mrb[0].mxu0
        %v3351 = vadd.f32 0.0, %v3350
        %v3352 = vpop.f32.mrb[0].mxu0
        %3353 = vmatprep.mubr.f32.mxu0 0.0
        %3354 = vmatmul.mubr.f32.gmra.mrb[0].mxu0 %v1613
        %v3355 = vpop.f32.mrb[0].mxu0
        %v3356 = vadd.f32 0.0, %v3355
        %v3357 = vpop.f32.mrb[0].mxu0
        %3358 = vmatprep.mubr.f32.mxu0 0.0
        %3359 = vmatmul.mubr.f32.gmra.mrb[0].mxu0 %v1615
        %v3360 = vpop.f32.mrb[0].mxu0
        %v3361 = vadd.f32 0.0, %v3360
        %v3362 = vpop.f32.mrb[0].mxu0
        %3363 = vmatprep.mubr.f32.mxu0 0.0
        %3364 = vmatmul.mubr.f32.gmra.mrb[0].mxu0 %v1617
        %v3365 = vpop.f32.mrb[0].mxu0
        %v3366 = vadd.f32 0.0, %v3365
        %v3367 = vpop.f32.mrb[0].mxu0
        %3368 = vmatprep.mubr.f32.mxu0 0.0
        %3369 = vmatmul.mubr.f32.gmra.mrb[0].mxu0 %v1619
        %v3370 = vpop.f32.mrb[0].mxu0
        %v3371 = vadd.f32 0.0, %v3370
        %v3372 = vpop.f32.mrb[0].mxu0
        %3373 = vmatprep.mubr.f32.mxu0 0.0
        %3374 = vmatmul.mubr.f32.gmra.mrb[0].mxu0 %v1621
        %v3375 = vpop.f32.mrb[0].mxu0
        %v3376 = vadd.f32 0.0, %v3375
        %v3377 = vpop.f32.mrb[0].mxu0
        %3378 = vmatprep.mubr.f32.mxu0 0.0
        %3379 = vmatmul.mubr.f32.gmra.mrb[0].mxu0 %v1623
        %v3380 = vpop.f32.mrb[0].mxu0
        %v3381 = vadd.f32 0.0, %v3380
        %v3382 = vpop.f32.mrb[0].mxu0
        %3383 = vmatprep.mubr.f32.mxu0 0.0
        %3384 = vmatmul.mubr.f32.gmra.mrb[0].mxu0 %v1561
        %v3385 = vpop.f32.mrb[0].mxu0
        %v3386 = vadd.f32 0.0, %v3385
        %v3387 = vpop.f32.mrb[0].mxu0
        %3388 = vmatprep.mubr.f32.mxu0 0.0
        %3389 = vmatmul.mubr.f32.gmra.mrb[0].mxu0 %v1563
        %v3390 = vpop.f32.mrb[0].mxu0
        %v3391 = vadd.f32 0.0, %v3390
        %v3392 = vpop.f32.mrb[0].mxu0
        %3393 = vmatprep.mubr.f32.mxu0 0.0
        %3394 = vmatmul.mubr.f32.gmra.mrb[0].mxu0 %v1565
        %v3395 = vpop.f32.mrb[0].mxu0
        %v3396 = vadd.f32 0.0, %v3395
        %v3397 = vpop.f32.mrb[0].mxu0
        %3398 = vmatprep.mubr.f32.mxu0 0.0
        %3399 = vmatmul.mubr.f32.gmra.mrb[0].mxu0 %v1567
        %v3400 = vpop.f32.mrb[0].mxu0
        %v3401 = vadd.f32 0.0, %v3400
        %v3402 = vpop.f32.mrb[0].mxu0
        %3403 = vdwg.mxu0
        %v3404 = vadd.f32 %v3145, %v3246
        %v3405 = vadd.f32 %v3146, %v3251
        %v3406 = vadd.f32 %v3147, %v3256
        %v3407 = vadd.f32 %v3148, %v3261
        %v3408 = vadd.f32 %v3149, %v3266
        %v3409 = vadd.f32 %v3150, %v3271
        %v3410 = vadd.f32 %v3151, %v3276
        %v3411 = vadd.f32 %v3152, %v3281
        %v3412 = vadd.f32 %v3153, %v3286
        %v3413 = vadd.f32 %v3154, %v3291
        %v3414 = vadd.f32 %v3155, %v3296
        %v3415 = vadd.f32 %v3156, %v3301
        %v3416 = vadd.f32 %v3157, %v3306
        %v3417 = vadd.f32 %v3158, %v3311
        %v3418 = vadd.f32 %v3159, %v3316
        %v3419 = vadd.f32 %v3160, %v3321
        %v3420 = vadd.f32 %v3161, %v3326
        %v3421 = vadd.f32 %v3162, %v3331
        %v3422 = vadd.f32 %v3163, %v3336
        %v3423 = vadd.f32 %v3164, %v3341
        %v3424 = vadd.f32 %v3165, %v3346
        %v3425 = vadd.f32 %v3166, %v3351
        %v3426 = vadd.f32 %v3167, %v3356
        %v3427 = vadd.f32 %v3168, %v3361
        %v3428 = vadd.f32 %v3169, %v3366
        %v3429 = vadd.f32 %v3170, %v3371
        %v3430 = vadd.f32 %v3171, %v3376
        %v3431 = vadd.f32 %v3172, %v3381
        %v3432 = vadd.f32 %v3173, %v3386
        %v3433 = vadd.f32 %v3174, %v3391
        %v3434 = vadd.f32 %v3175, %v3396
        %v3435 = vadd.f32 %v3176, %v3401
        %v3436 = vld [vmem:[%s4] sm:$0x1]
        %v3438 = vlaneseq
        %v3439 = vshrl.u32 %v3438, 7
        %v3440 = vsub.s32 0, %v3439
        %v3441 = vrot.slane %v3436, %v3440
        %v3443 = vadd.f32 %v3404, %v3441
        %v3444 = vadd.f32 %v3405, %v3441
        %v3445 = vadd.f32 %v3406, %v3441
        %v3446 = vadd.f32 %v3407, %v3441
        %v3447 = vadd.f32 %v3408, %v3441
        %v3448 = vadd.f32 %v3409, %v3441
        %v3449 = vadd.f32 %v3410, %v3441
        %v3450 = vadd.f32 %v3411, %v3441
        %v3451 = vadd.f32 %v3412, %v3441
        %v3452 = vadd.f32 %v3413, %v3441
        %v3453 = vadd.f32 %v3414, %v3441
        %v3454 = vadd.f32 %v3415, %v3441
        %v3455 = vadd.f32 %v3416, %v3441
        %v3456 = vadd.f32 %v3417, %v3441
        %v3457 = vadd.f32 %v3418, %v3441
        %v3458 = vadd.f32 %v3419, %v3441
        %v3459 = vadd.f32 %v3420, %v3441
        %v3460 = vadd.f32 %v3421, %v3441
        %v3461 = vadd.f32 %v3422, %v3441
        %v3462 = vadd.f32 %v3423, %v3441
        %v3463 = vadd.f32 %v3424, %v3441
        %v3464 = vadd.f32 %v3425, %v3441
        %v3465 = vadd.f32 %v3426, %v3441
        %v3466 = vadd.f32 %v3427, %v3441
        %v3467 = vadd.f32 %v3428, %v3441
        %v3468 = vadd.f32 %v3429, %v3441
        %v3469 = vadd.f32 %v3430, %v3441
        %v3470 = vadd.f32 %v3431, %v3441
        %v3471 = vadd.f32 %v3432, %v3441
        %v3472 = vadd.f32 %v3433, %v3441
        %v3473 = vadd.f32 %v3434, %v3441
        %v3474 = vadd.f32 %v3435, %v3441
        %v3475 = vld [vmem:[%s5] sm:$0xff]
        %v3476 = vld [vmem:[%s5 + $0x8] sm:$0xff]
        %v3477 = vld [vmem:[%s5 + $0x10] sm:$0xff]
        %v3478 = vld [vmem:[%s5 + $0x18] sm:$0xff]
        %v3479 = vld [vmem:[%s6] sm:$0xff]
        %v3480 = vld [vmem:[%s6 + $0x8] sm:$0xff]
        %v3481 = vld [vmem:[%s6 + $0x10] sm:$0xff]
        %v3482 = vld [vmem:[%s6 + $0x18] sm:$0xff]
        %3484 = vset.pattern.permute.xlu0 0
        %3485 = vperm.xlu0 %3484, %v3479
        %v3486 = vpop.permute.xlu0 %3485
        %3489 = vset.pattern.permute.xlu0 0
        %3490 = vperm.xlu0 %3489, %v3480
        %v3491 = vpop.permute.xlu0 %3490
        %3494 = vset.pattern.permute.xlu0 0
        %3495 = vperm.xlu0 %3494, %v3481
        %v3496 = vpop.permute.xlu0 %3495
        %3499 = vset.pattern.permute.xlu0 0
        %3500 = vperm.xlu0 %3499, %v3482
        %v3501 = vpop.permute.xlu0 %3500
        %v3504 = vsel %vm915, %v3475, 0
        %v3507 = vsel %vm915, %v3476, 0
        %v3510 = vsel %vm915, %v3477, 0
        %v3513 = vsel %vm915, %v3478, 0
        %v3516 = vsel %vm915, %v3443, 0
        %v3519 = vsel %vm915, %v3444, 0
        %v3522 = vsel %vm915, %v3445, 0
        %v3525 = vsel %vm915, %v3446, 0
        %v3528 = vsel %vm915, %v3447, 0
        %v3531 = vsel %vm915, %v3448, 0
        %v3534 = vsel %vm915, %v3449, 0
        %v3537 = vsel %vm915, %v3450, 0
        %v3540 = vsel %vm915, %v3451, 0
        %v3543 = vsel %vm915, %v3452, 0
        %v3546 = vsel %vm915, %v3453, 0
        %v3549 = vsel %vm915, %v3454, 0
        %v3552 = vsel %vm915, %v3455, 0
        %v3555 = vsel %vm915, %v3456, 0
        %v3558 = vsel %vm915, %v3457, 0
        %v3561 = vsel %vm915, %v3458, 0
        %v3564 = vsel %vm915, %v3459, 0
        %v3567 = vsel %vm915, %v3460, 0
        %v3570 = vsel %vm915, %v3461, 0
        %v3573 = vsel %vm915, %v3462, 0
        %v3576 = vsel %vm915, %v3463, 0
        %v3579 = vsel %vm915, %v3464, 0
        %v3582 = vsel %vm915, %v3465, 0
        %v3585 = vsel %vm915, %v3466, 0
        %v3588 = vsel %vm915, %v3467, 0
        %v3591 = vsel %vm915, %v3468, 0
        %v3594 = vsel %vm915, %v3469, 0
        %v3597 = vsel %vm915, %v3470, 0
        %v3600 = vsel %vm915, %v3471, 0
        %v3603 = vsel %vm915, %v3472, 0
        %v3606 = vsel %vm915, %v3473, 0
        %v3609 = vsel %vm915, %v3474, 0
        %3611 = vmatprep.subr.mxu0 0.0
        %3612 = vmatpush1.xpose.msra.mxu0 %v3516
        %3613 = vmatprep.subr.mxu0 0.0
        %3614 = vmatpush1.xpose.msra.mxu0 %v3519
        %3615 = vmatprep.subr.mxu0 0.0
        %3616 = vmatpush1.xpose.msra.mxu0 %v3522
        %3617 = vmatprep.subr.mxu0 0.0
        %3618 = vmatpush1.xpose.msra.mxu0 %v3525
        %3619 = vmatprep.subr.mxu0 0.0
        %3620 = vmatpush1.xpose.msra.mxu0 %v3528
        %3621 = vmatprep.subr.mxu0 0.0
        %3622 = vmatpush1.xpose.msra.mxu0 %v3531
        %3623 = vmatprep.subr.mxu0 0.0
        %3624 = vmatpush1.xpose.msra.mxu0 %v3534
        %3625 = vmatprep.subr.mxu0 0.0
        %3626 = vmatpush1.xpose.msra.mxu0 %v3537
        %3627 = vmatprep.subr.mxu0 0.0
        %3628 = vmatpush1.xpose.msra.mxu0 %v3540
        %3629 = vmatprep.subr.mxu0 0.0
        %3630 = vmatpush1.xpose.msra.mxu0 %v3543
        %3631 = vmatprep.subr.mxu0 0.0
        %3632 = vmatpush1.xpose.msra.mxu0 %v3546
        %3633 = vmatprep.subr.mxu0 0.0
        %3634 = vmatpush1.xpose.msra.mxu0 %v3549
        %3635 = vmatprep.subr.mxu0 0.0
        %3636 = vmatpush1.xpose.msra.mxu0 %v3552
        %3637 = vmatprep.subr.mxu0 0.0
        %3638 = vmatpush1.xpose.msra.mxu0 %v3555
        %3639 = vmatprep.subr.mxu0 0.0
        %3640 = vmatpush1.xpose.msra.mxu0 %v3558
        %3641 = vmatprep.subr.mxu0 0.0
        %3642 = vmatpush1.xpose.msra.mxu0 %v3561
        %3643 = vmatprep.subr.mxu0 0.0
        %3644 = vmatpush1.xpose.msra.mxu0 %v3564
        %3645 = vmatprep.subr.mxu0 0.0
        %3646 = vmatpush1.xpose.msra.mxu0 %v3567
        %3647 = vmatprep.subr.mxu0 0.0
        %3648 = vmatpush1.xpose.msra.mxu0 %v3570
        %3649 = vmatprep.subr.mxu0 0.0
        %3650 = vmatpush1.xpose.msra.mxu0 %v3573
        %3651 = vmatprep.subr.mxu0 0.0
        %3652 = vmatpush1.xpose.msra.mxu0 %v3576
        %3653 = vmatprep.subr.mxu0 0.0
        %3654 = vmatpush1.xpose.msra.mxu0 %v3579
        %3655 = vmatprep.subr.mxu0 0.0
        %3656 = vmatpush1.xpose.msra.mxu0 %v3582
        %3657 = vmatprep.subr.mxu0 0.0
        %3658 = vmatpush1.xpose.msra.mxu0 %v3585
        %3659 = vmatprep.subr.mxu0 0.0
        %3660 = vmatpush1.xpose.msra.mxu0 %v3588
        %3661 = vmatprep.subr.mxu0 0.0
        %3662 = vmatpush1.xpose.msra.mxu0 %v3591
        %3663 = vmatprep.subr.mxu0 0.0
        %3664 = vmatpush1.xpose.msra.mxu0 %v3594
        %3665 = vmatprep.subr.mxu0 0.0
        %3666 = vmatpush1.xpose.msra.mxu0 %v3597
        %3667 = vmatprep.subr.mxu0 0.0
        %3668 = vmatpush1.xpose.msra.mxu0 %v3600
        %3669 = vmatprep.subr.mxu0 0.0
        %3670 = vmatpush1.xpose.msra.mxu0 %v3603
        %3671 = vmatprep.subr.mxu0 0.0
        %3672 = vmatpush1.xpose.msra.mxu0 %v3606
        %3673 = vmatprep.subr.mxu0 0.0
        %3674 = vmatpush1.xpose.msra.mxu0 %v3609
        %3675 = vmatprep.mubr.f32.mxu0 0.0
        %3676 = vmatmul.mubr.f32.gmra.mrb[0].mxu0 %v3504
        %v3677 = vpop.f32.mrb[0].mxu0
        %v3678 = vadd.f32 %v3486, %v3677
        %v3679 = vpop.f32.mrb[0].mxu0
        %v3680 = vadd.f32 %v3486, %v3679
        %3681 = vmatprep.mubr.f32.mxu0 0.0
        %3682 = vmatmul.mubr.f32.gmra.mrb[0].mxu0 %v3507
        %v3683 = vpop.f32.mrb[0].mxu0
        %v3684 = vadd.f32 %v3491, %v3683
        %v3685 = vpop.f32.mrb[0].mxu0
        %v3686 = vadd.f32 %v3491, %v3685
        %3687 = vmatprep.mubr.f32.mxu0 0.0
        %3688 = vmatmul.mubr.f32.gmra.mrb[0].mxu0 %v3510
        %v3689 = vpop.f32.mrb[0].mxu0
        %v3690 = vadd.f32 %v3496, %v3689
        %v3691 = vpop.f32.mrb[0].mxu0
        %v3692 = vadd.f32 %v3496, %v3691
        %3693 = vmatprep.mubr.f32.mxu0 0.0
        %3694 = vmatmul.mubr.f32.gmra.mrb[0].mxu0 %v3513
        %v3695 = vpop.f32.mrb[0].mxu0
        %v3696 = vadd.f32 %v3501, %v3695
        %v3697 = vpop.f32.mrb[0].mxu0
        %v3698 = vadd.f32 %v3501, %v3697
        %3699 = vdwg.mxu0
        %3700 = vst [vmem:[%s296] sm:$0xff] %v3678
        %3701 = vst [vmem:[%s296 + $0x8] sm:$0xff] %v3680
        %3702 = vst [vmem:[%s296 + $0x10] sm:$0xff] %v3684
        %3703 = vst [vmem:[%s296 + $0x18] sm:$0xff] %v3686
        %3704 = vst [vmem:[%s296 + $0x20] sm:$0xff] %v3690
        %3705 = vst [vmem:[%s296 + $0x28] sm:$0xff] %v3692
        %3706 = vst [vmem:[%s296 + $0x30] sm:$0xff] %v3696
        %3707 = vst [vmem:[%s296 + $0x38] sm:$0xff] %v3698
        %s3708 = sand.u32 %s184, 1
        %s3709 = scalar_lea.sflag [#allocation4], %s3708
        %s3710 = sand.u32 %s184, 1
        %s3711 = smul.addr %s3710, 64
        %s3712 = scalar_lea.vmem [#allocation5], %s3711
        // Predicated region
        $region53: #{tpu_custom_call.1} parent=47 // pred_check
          %p3713 = pneg %p194
        $region54: #{tpu_custom_call.1} parent=47 // pred_check_branch
          %3715 = sbr.rel (%p3713) target = $region56
        $region55: #{tpu_custom_call.1} parent=47 // pred_region
          %s3717 = ssub.s32 1024, 1024
          %3718 = vsyncadd %s3709, %s3717
          %s3719 = smul.addr %s24, 8
          %s3720 = smul.addr %s3719, 128
          %s3721 = scalar_lea.hbm %s7, %s3720
          %s3722 = sshll.u32 %s3712, 4
          %s3723 = int_to_ptr.vmem [resolvable:$true] %s3722
          %3728 = dma.vmem_to_hbm [thread:$0]  %s3723, 1024, %s3721, %s3709, 256, 256, 16
        $region56: #{tpu_custom_call.1} parent=47 // pred_fallthru
          _
      $region48: #{tpu_custom_call.1} parent=5 // pred_fallthru
        _
      %p3729 = scmp.le.s32.totalorder 2, %s19
      // Predicated region
      $region57: #{tpu_custom_call.1} parent=5 // pred_check
        %p3730 = pneg %p3729
      $region58: #{tpu_custom_call.1} parent=5 // pred_check_branch
        %3732 = sbr.rel (%p3730) target = $region60
      $region59: #{tpu_custom_call.1} parent=5 // pred_region
        %s3733 = ssub.s32 %s19, 2
        // Predicated region
        $region61: #{tpu_custom_call.1} parent=59 // pred_check
          %p3734 = pneg %p200
        $region62: #{tpu_custom_call.1} parent=59 // pred_check_branch
          %3736 = sbr.rel (%p3734) target = $region64
        $region63: #{tpu_custom_call.1} parent=59 // pred_region
          %s3737 = sand.u32 %s185, 1
          %s3738 = scalar_lea.sflag [#allocation4], %s3737
          %s3739 = sand.u32 %s185, 1
          %s3740 = smul.addr %s3739, 64
          %s3741 = scalar_lea.vmem [#allocation5], %s3740
          %3742 = dma.done %s3738, 1024
        $region64: #{tpu_custom_call.1} parent=59 // pred_fallthru
          _
      $region60: #{tpu_custom_call.1} parent=5 // pred_fallthru
        _
    $region6: #{tpu_custom_call.1} parent=1 // loop_footer
      %s23 = sadd.s32 1, %s19
    $region7: #{tpu_custom_call.1} parent=1 // loop_footer_branch
      %18 = sbr.rel target = $region3
    $region8: #{tpu_custom_call.1} parent=1 // loop_exit
      _
    %3743 = vsyncpa [#allocation3], 1
    %s3744 = scalar_lea.sflag [#allocation3], 1
    %3745 = vsyncpa %s3744, 1
    %3746 = vsyncpa [#allocation4], 1
    %s3747 = scalar_lea.sflag [#allocation4], 1
    %3748 = vsyncpa %s3747, 1

</llo_original>
